<compile_context>
chip_gen: v6e
topology: v6e:2x2x1
jax: 0.10.0
libtpu: 0.0.40
codegen_flags: <defaults>
</compile_context>

<pallas_src>
import jax
import jax.numpy as jnp
from jax.experimental import pallas as pl
from jax.experimental.pallas import tpu as pltpu

K = 5            # conv kernel size
PAD = K // 2     # "same" padding


def _attention_gate(m_max, m_mean, w_ref, widx, pad_ref):
    """One AttentionGate on a pair of 2-D reduced maps.

    m_max, m_mean : (R, Cc) f32 (channel-max / channel-mean maps).
    w_ref         : SMEM ref (3, 2*K*K); row `widx`, layout [in_channel, kh, kw].
    pad_ref       : VMEM scratch (2*(R+2*PAD), Cc+2*PAD) f32 — both ZPool channels stacked so
                    one lane-shifted window per kw serves all 5 kh offsets and both channels.
    Returns sigmoid(relu(conv)) * relu(conv), shape (R, Cc), f32.
    """
    R, Cc = m_max.shape
    RP = R + 2 * PAD          # padded rows per stacked channel
    CP = Cc + 2 * PAD         # padded cols

    # Read this branch's 50 taps from SMEM once, up front.
    w_max = [w_ref[widx, t] for t in range(K * K)]            # in-channel 0: max map
    w_mean = [w_ref[widx, K * K + t] for t in range(K * K)]   # in-channel 1: mean map

    # Zero only the pad-border strips (interiors are fully overwritten right after).
    pad_ref[0:PAD, :] = jnp.zeros((PAD, CP), jnp.float32)                 # top of ch0
    pad_ref[PAD + R:RP + PAD, :] = jnp.zeros((2 * PAD, CP), jnp.float32)  # bottom ch0 + top ch1
    pad_ref[RP + PAD + R:, :] = jnp.zeros((PAD, CP), jnp.float32)         # bottom of ch1
    pad_ref[:, 0:PAD] = jnp.zeros((2 * RP, PAD), jnp.float32)             # left border
    pad_ref[:, PAD + Cc:] = jnp.zeros((2 * RP, PAD), jnp.float32)         # right border

    # Interiors: max map on top, mean map below.
    pad_ref[PAD:PAD + R, PAD:PAD + Cc] = m_max
    pad_ref[RP + PAD:RP + PAD + R, PAD:PAD + Cc] = m_mean

    # 5x5 conv over 2 input channels: kw (lane shift) hoisted to the outer loop — one
    # lane-shifted window per kw, reused across the 5 kh sublane offsets and both channels.
    acc = jnp.zeros((R, Cc), jnp.float32)
    for kw in range(K):
        win = pad_ref[:, kw:kw + Cc]                       # (2*RP, Cc), one shifted load
        for kh in range(K):
            t = kh * K + kw
            acc = acc + w_max[t] * win[kh:kh + R, :]
            acc = acc + w_mean[t] * win[RP + kh:RP + kh + R, :]

    y = jnp.maximum(acc, 0.0)                     # ReLU (inside the module's conv Sequential)
    return y * (1.0 / (1.0 + jnp.exp(-y)))        # sigmoid(y) * y


def _make_kernel(C, H, W, out_dtype, c_chunk):
    HW = H * W

    def kernel(w_ref, x_ref, o_ref, pad_cw, pad_hc, pad_hw):
        xr = x_ref.at[0]          # (C, H*W) ref view, lane-dense
        orf = o_ref.at[0]         # (C, H*W) ref view

        # ---- Phase 1: ZPool reductions, single pass over the block -------------------
        # max reductions stay in the input dtype (exact); means accumulate in f32.
        cw_mx = None
        cw_sm = None
        hc_mx_cols, hc_sm_cols = [], []
        hw_mx_rows, hw_sm_rows = [], []
        for h in range(H):
            ch = xr[:, h * W:(h + 1) * W]                 # (C, W), input dtype
            chf = ch.astype(jnp.float32)                  # small per-slice upcast only
            cw_mx = ch if h == 0 else jnp.maximum(cw_mx, ch)
            cw_sm = chf if h == 0 else cw_sm + chf
            hc_mx_cols.append(jnp.max(ch, axis=1, keepdims=True))    # (C, 1)
            hc_sm_cols.append(jnp.sum(chf, axis=1, keepdims=True))   # (C, 1)
            hw_mx_rows.append(jnp.max(ch, axis=0, keepdims=True))    # (1, W)
            hw_sm_rows.append(jnp.sum(chf, axis=0, keepdims=True))   # (1, W)

        cw_max = cw_mx.astype(jnp.float32)                                   # (C, W)
        cw_mean = cw_sm * (1.0 / H)
        hc_max = jnp.concatenate(hc_mx_cols, axis=1).astype(jnp.float32)     # (C, H)
        hc_mean = jnp.concatenate(hc_sm_cols, axis=1) * (1.0 / W)
        hw_max = jnp.concatenate(hw_mx_rows, axis=0).astype(jnp.float32)     # (H, W)
        hw_mean = jnp.concatenate(hw_sm_rows, axis=0) * (1.0 / C)

        # ---- Phase 2: the three attention gates on the small reduced maps ------------
        cw_g = _attention_gate(cw_max, cw_mean, w_ref, 0, pad_cw)   # (C, W)
        hc_g = _attention_gate(hc_max, hc_mean, w_ref, 1, pad_hc)   # (C, H) (transposed w)
        hw_g = _attention_gate(hw_max, hw_mean, w_ref, 2, pad_hw)   # (H, W)

        # ---- Phase 3: broadcast-combine + cast + store, lane-dense rows per C-slab ---
        for c0 in range(0, C, c_chunk):
            c1 = min(c0 + c_chunk, C)
            cw_s = cw_g[c0:c1]                                       # (cc, W)
            hc_s = hc_g[c0:c1]                                       # (cc, H)
            pieces = [cw_s + hc_s[:, h:h + 1] + hw_g[h:h + 1, :] for h in range(H)]
            row = jnp.concatenate(pieces, axis=1)                    # (cc, H*W) f32
            orf[c0:c1, :] = (row * (1.0 / 3.0)).astype(out_dtype)

    return kernel


def triplet_attention(x, w_cw, w_hc, w_hw):
    """x: (B, C, H, W).  w_*: (1, 2, K, K) conv weights (no bias)."""
    B, C, H, W = x.shape
    HW = H * W
    x2 = x.reshape(B, C, HW)                          # free, contiguous in HBM

    # Flatten conv weights into a scalar-prefetch table (3, 2*K*K).  The hc branch runs its
    # conv in (C, H) orientation, so its spatial axes are swapped here (== the (H, C) conv).
    w_hc_t = jnp.transpose(w_hc, (0, 1, 3, 2))
    w_tab = jnp.stack(
        [w_cw.reshape(-1), w_hc_t.reshape(-1), w_hw.reshape(-1)], axis=0
    ).astype(jnp.float32)                             # (3, 50)

    c_chunk = C if C <= 128 else 128
    kernel = _make_kernel(C, H, W, x.dtype, c_chunk)

    # VMEM budget: double-buffered in + out blocks plus small maps/scratch; cap at 64 MiB.
    blk_bytes = C * HW * x.dtype.itemsize
    vmem_limit = int(min(64 * 2**20, max(32 * 2**20, 4 * blk_bytes + 8 * 2**20)))

    grid_spec = pltpu.PrefetchScalarGridSpec(
        num_scalar_prefetch=1,
        grid=(B,),
        in_specs=[pl.BlockSpec((1, C, HW), lambda b, w_s: (b, 0, 0))],
        out_specs=pl.BlockSpec((1, C, HW), lambda b, w_s: (b, 0, 0)),
        scratch_shapes=[
            pltpu.VMEM((2 * (C + 2 * PAD), W + 2 * PAD), jnp.float32),   # cw pad (max|mean)
            pltpu.VMEM((2 * (C + 2 * PAD), H + 2 * PAD), jnp.float32),   # hc pad
            pltpu.VMEM((2 * (H + 2 * PAD), W + 2 * PAD), jnp.float32),   # hw pad
        ],
    )

    out2 = pl.pallas_call(
        kernel,
        grid_spec=grid_spec,
        out_shape=jax.ShapeDtypeStruct((B, C, HW), x.dtype),
        compiler_params=pltpu.CompilerParams(
            dimension_semantics=("parallel",),
            vmem_limit_bytes=vmem_limit,
        ),
    )(w_tab, x2)
    return out2.reshape(B, C, H, W)


# ------------------------- pure-JAX reference -------------------------------
def _gate_ref(x, w):
    m = jnp.max(x, axis=1, keepdims=True)
    a = jnp.mean(x, axis=1, keepdims=True)
    cat = jnp.concatenate([m, a], axis=1)
    y = jax.lax.conv_general_dilated(
        cat, w, window_strides=(1, 1), padding=((PAD, PAD), (PAD, PAD)),
        dimension_numbers=("NCHW", "OIHW", "NCHW"),
        precision=jax.lax.Precision.HIGHEST)
    y = jnp.maximum(y, 0.0)
    return jax.nn.sigmoid(y) * y


def triplet_attention_ref(x, w_cw, w_hc, w_hw):
    sh = jnp.transpose(x, (0, 2, 1, 3))
    sw = jnp.transpose(x, (0, 3, 2, 1))
    cw = jnp.transpose(_gate_ref(sh, w_cw), (0, 2, 1, 3))
    hc = jnp.transpose(_gate_ref(sw, w_hc), (0, 3, 2, 1))
    hw = _gate_ref(x, w_hw)
    return (cw + hc + hw) / 3.0


if __name__ == "__main__":
    key = jax.random.PRNGKey(0)
    kx, k1, k2, k3 = jax.random.split(key, 4)
    B, C, H, W = 2, 4, 16, 16
    x = jax.random.normal(kx, (B, C, H, W), jnp.float32)
    # Deterministic synthetic conv weights (Conv2d(2, 1, 5, bias=False) per gate).
    w_cw = 0.2 * jax.random.normal(k1, (1, 2, K, K), jnp.float32)
    w_hc = 0.2 * jax.random.normal(k2, (1, 2, K, K), jnp.float32)
    w_hw = 0.2 * jax.random.normal(k3, (1, 2, K, K), jnp.float32)

    out = jax.block_until_ready(triplet_attention(x, w_cw, w_hc, w_hw))
    ref = triplet_attention_ref(x, w_cw, w_hc, w_hw)

    assert out.shape == (B, C, H, W), out.shape
    max_err = float(jnp.max(jnp.abs(out - ref)))
    assert max_err < 1e-3, f"max abs error too large: {max_err}"
    print("KERNEL_OK")
</pallas_src>

<mosaic_0001>
module attributes {stable_mosaic.version = 11 : i64} {
  func.func @kernel(%arg0: i32, %arg1: memref<3x50xf32, #tpu.memory_space<smem>>, %arg2: memref<1x4x256xf32, #tpu.memory_space<vmem>>, %arg3: memref<1x4x256xf32, #tpu.memory_space<vmem>>, %arg4: memref<16x20xf32, #tpu.memory_space<vmem>>, %arg5: memref<16x20xf32, #tpu.memory_space<vmem>>, %arg6: memref<40x20xf32, #tpu.memory_space<vmem>>) attributes {dimension_semantics = [#tpu.dimension_semantics<parallel>], iteration_bounds = array<i64: 2>, scalar_prefetch = 1 : i64, scratch_operands = 3 : i64, tpu.core_type = #tpu.core_type<tc>, window_params = [{transform_indices = @transform_0, window_bounds = array<i64: 1, 4, 256>}, {transform_indices = @transform_1, window_bounds = array<i64: 1, 4, 256>}]} {
    %c0_i32 = arith.constant 0 : i32
    %c0_i32_0 = arith.constant 0 : i32
    %c0_i32_1 = arith.constant 0 : i32
    %0 = tpu.memref_slice %arg2[%c0_i32, %c0_i32_0, %c0_i32_1] : memref<1x4x256xf32, #tpu.memory_space<vmem>> -> memref<1x4x256xf32, #tpu.memory_space<vmem>>
    %1 = tpu.memref_squeeze %0 : memref<1x4x256xf32, #tpu.memory_space<vmem>> -> memref<4x256xf32, #tpu.memory_space<vmem>>
    %c0 = arith.constant 0 : index
    %c0_2 = arith.constant 0 : index
    %2 = vector.load %1[%c0, %c0_2] : memref<4x256xf32, #tpu.memory_space<vmem>>, vector<4x16xf32>
    %cst = arith.constant dense<0xFF800000> : vector<4xf32>
    %3 = vector.multi_reduction <maximumf>, %2, %cst [1] : vector<4x16xf32> to vector<4xf32>
    %4 = vector.shape_cast %3 : vector<4xf32> to vector<4x1xf32>
    %cst_3 = arith.constant dense<0.000000e+00> : vector<4xf32>
    %5 = vector.multi_reduction <add>, %2, %cst_3 [1] : vector<4x16xf32> to vector<4xf32>
    %6 = vector.shape_cast %5 : vector<4xf32> to vector<4x1xf32>
    %cst_4 = arith.constant dense<0xFF800000> : vector<16xf32>
    %7 = vector.multi_reduction <maximumf>, %2, %cst_4 [0] : vector<4x16xf32> to vector<16xf32>
    %8 = vector.shape_cast %7 : vector<16xf32> to vector<1x16xf32>
    %cst_5 = arith.constant dense<0.000000e+00> : vector<16xf32>
    %9 = vector.multi_reduction <add>, %2, %cst_5 [0] : vector<4x16xf32> to vector<16xf32>
    %10 = vector.shape_cast %9 : vector<16xf32> to vector<1x16xf32>
    %c0_i32_6 = arith.constant 0 : i32
    %c0_i32_7 = arith.constant 0 : i32
    %c0_i32_8 = arith.constant 0 : i32
    %11 = tpu.memref_slice %arg2[%c0_i32_6, %c0_i32_7, %c0_i32_8] : memref<1x4x256xf32, #tpu.memory_space<vmem>> -> memref<1x4x256xf32, #tpu.memory_space<vmem>>
    %12 = tpu.memref_squeeze %11 : memref<1x4x256xf32, #tpu.memory_space<vmem>> -> memref<4x256xf32, #tpu.memory_space<vmem>>
    %c0_9 = arith.constant 0 : index
    %c16 = arith.constant 16 : index
    %13 = vector.load %12[%c0_9, %c16] : memref<4x256xf32, #tpu.memory_space<vmem>>, vector<4x16xf32>
    %14 = arith.maximumf %2, %13 : vector<4x16xf32>
    %15 = arith.addf %2, %13 : vector<4x16xf32>
    %cst_10 = arith.constant dense<0xFF800000> : vector<4xf32>
    %16 = vector.multi_reduction <maximumf>, %13, %cst_10 [1] : vector<4x16xf32> to vector<4xf32>
    %17 = vector.shape_cast %16 : vector<4xf32> to vector<4x1xf32>
    %cst_11 = arith.constant dense<0.000000e+00> : vector<4xf32>
    %18 = vector.multi_reduction <add>, %13, %cst_11 [1] : vector<4x16xf32> to vector<4xf32>
    %19 = vector.shape_cast %18 : vector<4xf32> to vector<4x1xf32>
    %cst_12 = arith.constant dense<0xFF800000> : vector<16xf32>
    %20 = vector.multi_reduction <maximumf>, %13, %cst_12 [0] : vector<4x16xf32> to vector<16xf32>
    %21 = vector.shape_cast %20 : vector<16xf32> to vector<1x16xf32>
    %cst_13 = arith.constant dense<0.000000e+00> : vector<16xf32>
    %22 = vector.multi_reduction <add>, %13, %cst_13 [0] : vector<4x16xf32> to vector<16xf32>
    %23 = vector.shape_cast %22 : vector<16xf32> to vector<1x16xf32>
    %c0_i32_14 = arith.constant 0 : i32
    %c0_i32_15 = arith.constant 0 : i32
    %c0_i32_16 = arith.constant 0 : i32
    %24 = tpu.memref_slice %arg2[%c0_i32_14, %c0_i32_15, %c0_i32_16] : memref<1x4x256xf32, #tpu.memory_space<vmem>> -> memref<1x4x256xf32, #tpu.memory_space<vmem>>
    %25 = tpu.memref_squeeze %24 : memref<1x4x256xf32, #tpu.memory_space<vmem>> -> memref<4x256xf32, #tpu.memory_space<vmem>>
    %c0_17 = arith.constant 0 : index
    %c32 = arith.constant 32 : index
    %26 = vector.load %25[%c0_17, %c32] : memref<4x256xf32, #tpu.memory_space<vmem>>, vector<4x16xf32>
    %27 = arith.maximumf %14, %26 : vector<4x16xf32>
    %28 = arith.addf %15, %26 : vector<4x16xf32>
    %cst_18 = arith.constant dense<0xFF800000> : vector<4xf32>
    %29 = vector.multi_reduction <maximumf>, %26, %cst_18 [1] : vector<4x16xf32> to vector<4xf32>
    %30 = vector.shape_cast %29 : vector<4xf32> to vector<4x1xf32>
    %cst_19 = arith.constant dense<0.000000e+00> : vector<4xf32>
    %31 = vector.multi_reduction <add>, %26, %cst_19 [1] : vector<4x16xf32> to vector<4xf32>
    %32 = vector.shape_cast %31 : vector<4xf32> to vector<4x1xf32>
    %cst_20 = arith.constant dense<0xFF800000> : vector<16xf32>
    %33 = vector.multi_reduction <maximumf>, %26, %cst_20 [0] : vector<4x16xf32> to vector<16xf32>
    %34 = vector.shape_cast %33 : vector<16xf32> to vector<1x16xf32>
    %cst_21 = arith.constant dense<0.000000e+00> : vector<16xf32>
    %35 = vector.multi_reduction <add>, %26, %cst_21 [0] : vector<4x16xf32> to vector<16xf32>
    %36 = vector.shape_cast %35 : vector<16xf32> to vector<1x16xf32>
    %c0_i32_22 = arith.constant 0 : i32
    %c0_i32_23 = arith.constant 0 : i32
    %c0_i32_24 = arith.constant 0 : i32
    %37 = tpu.memref_slice %arg2[%c0_i32_22, %c0_i32_23, %c0_i32_24] : memref<1x4x256xf32, #tpu.memory_space<vmem>> -> memref<1x4x256xf32, #tpu.memory_space<vmem>>
    %38 = tpu.memref_squeeze %37 : memref<1x4x256xf32, #tpu.memory_space<vmem>> -> memref<4x256xf32, #tpu.memory_space<vmem>>
    %c0_25 = arith.constant 0 : index
    %c48 = arith.constant 48 : index
    %39 = vector.load %38[%c0_25, %c48] : memref<4x256xf32, #tpu.memory_space<vmem>>, vector<4x16xf32>
    %40 = arith.maximumf %27, %39 : vector<4x16xf32>
    %41 = arith.addf %28, %39 : vector<4x16xf32>
    %cst_26 = arith.constant dense<0xFF800000> : vector<4xf32>
    %42 = vector.multi_reduction <maximumf>, %39, %cst_26 [1] : vector<4x16xf32> to vector<4xf32>
    %43 = vector.shape_cast %42 : vector<4xf32> to vector<4x1xf32>
    %cst_27 = arith.constant dense<0.000000e+00> : vector<4xf32>
    %44 = vector.multi_reduction <add>, %39, %cst_27 [1] : vector<4x16xf32> to vector<4xf32>
    %45 = vector.shape_cast %44 : vector<4xf32> to vector<4x1xf32>
    %cst_28 = arith.constant dense<0xFF800000> : vector<16xf32>
    %46 = vector.multi_reduction <maximumf>, %39, %cst_28 [0] : vector<4x16xf32> to vector<16xf32>
    %47 = vector.shape_cast %46 : vector<16xf32> to vector<1x16xf32>
    %cst_29 = arith.constant dense<0.000000e+00> : vector<16xf32>
    %48 = vector.multi_reduction <add>, %39, %cst_29 [0] : vector<4x16xf32> to vector<16xf32>
    %49 = vector.shape_cast %48 : vector<16xf32> to vector<1x16xf32>
    %c0_i32_30 = arith.constant 0 : i32
    %c0_i32_31 = arith.constant 0 : i32
    %c0_i32_32 = arith.constant 0 : i32
    %50 = tpu.memref_slice %arg2[%c0_i32_30, %c0_i32_31, %c0_i32_32] : memref<1x4x256xf32, #tpu.memory_space<vmem>> -> memref<1x4x256xf32, #tpu.memory_space<vmem>>
    %51 = tpu.memref_squeeze %50 : memref<1x4x256xf32, #tpu.memory_space<vmem>> -> memref<4x256xf32, #tpu.memory_space<vmem>>
    %c0_33 = arith.constant 0 : index
    %c64 = arith.constant 64 : index
    %52 = vector.load %51[%c0_33, %c64] : memref<4x256xf32, #tpu.memory_space<vmem>>, vector<4x16xf32>
    %53 = arith.maximumf %40, %52 : vector<4x16xf32>
    %54 = arith.addf %41, %52 : vector<4x16xf32>
    %cst_34 = arith.constant dense<0xFF800000> : vector<4xf32>
    %55 = vector.multi_reduction <maximumf>, %52, %cst_34 [1] : vector<4x16xf32> to vector<4xf32>
    %56 = vector.shape_cast %55 : vector<4xf32> to vector<4x1xf32>
    %cst_35 = arith.constant dense<0.000000e+00> : vector<4xf32>
    %57 = vector.multi_reduction <add>, %52, %cst_35 [1] : vector<4x16xf32> to vector<4xf32>
    %58 = vector.shape_cast %57 : vector<4xf32> to vector<4x1xf32>
    %cst_36 = arith.constant dense<0xFF800000> : vector<16xf32>
    %59 = vector.multi_reduction <maximumf>, %52, %cst_36 [0] : vector<4x16xf32> to vector<16xf32>
    %60 = vector.shape_cast %59 : vector<16xf32> to vector<1x16xf32>
    %cst_37 = arith.constant dense<0.000000e+00> : vector<16xf32>
    %61 = vector.multi_reduction <add>, %52, %cst_37 [0] : vector<4x16xf32> to vector<16xf32>
    %62 = vector.shape_cast %61 : vector<16xf32> to vector<1x16xf32>
    %c0_i32_38 = arith.constant 0 : i32
    %c0_i32_39 = arith.constant 0 : i32
    %c0_i32_40 = arith.constant 0 : i32
    %63 = tpu.memref_slice %arg2[%c0_i32_38, %c0_i32_39, %c0_i32_40] : memref<1x4x256xf32, #tpu.memory_space<vmem>> -> memref<1x4x256xf32, #tpu.memory_space<vmem>>
    %64 = tpu.memref_squeeze %63 : memref<1x4x256xf32, #tpu.memory_space<vmem>> -> memref<4x256xf32, #tpu.memory_space<vmem>>
    %c0_41 = arith.constant 0 : index
    %c80 = arith.constant 80 : index
    %65 = vector.load %64[%c0_41, %c80] : memref<4x256xf32, #tpu.memory_space<vmem>>, vector<4x16xf32>
    %66 = arith.maximumf %53, %65 : vector<4x16xf32>
    %67 = arith.addf %54, %65 : vector<4x16xf32>
    %cst_42 = arith.constant dense<0xFF800000> : vector<4xf32>
    %68 = vector.multi_reduction <maximumf>, %65, %cst_42 [1] : vector<4x16xf32> to vector<4xf32>
    %69 = vector.shape_cast %68 : vector<4xf32> to vector<4x1xf32>
    %cst_43 = arith.constant dense<0.000000e+00> : vector<4xf32>
    %70 = vector.multi_reduction <add>, %65, %cst_43 [1] : vector<4x16xf32> to vector<4xf32>
    %71 = vector.shape_cast %70 : vector<4xf32> to vector<4x1xf32>
    %cst_44 = arith.constant dense<0xFF800000> : vector<16xf32>
    %72 = vector.multi_reduction <maximumf>, %65, %cst_44 [0] : vector<4x16xf32> to vector<16xf32>
    %73 = vector.shape_cast %72 : vector<16xf32> to vector<1x16xf32>
    %cst_45 = arith.constant dense<0.000000e+00> : vector<16xf32>
    %74 = vector.multi_reduction <add>, %65, %cst_45 [0] : vector<4x16xf32> to vector<16xf32>
    %75 = vector.shape_cast %74 : vector<16xf32> to vector<1x16xf32>
    %c0_i32_46 = arith.constant 0 : i32
    %c0_i32_47 = arith.constant 0 : i32
    %c0_i32_48 = arith.constant 0 : i32
    %76 = tpu.memref_slice %arg2[%c0_i32_46, %c0_i32_47, %c0_i32_48] : memref<1x4x256xf32, #tpu.memory_space<vmem>> -> memref<1x4x256xf32, #tpu.memory_space<vmem>>
    %77 = tpu.memref_squeeze %76 : memref<1x4x256xf32, #tpu.memory_space<vmem>> -> memref<4x256xf32, #tpu.memory_space<vmem>>
    %c0_49 = arith.constant 0 : index
    %c96 = arith.constant 96 : index
    %78 = vector.load %77[%c0_49, %c96] : memref<4x256xf32, #tpu.memory_space<vmem>>, vector<4x16xf32>
    %79 = arith.maximumf %66, %78 : vector<4x16xf32>
    %80 = arith.addf %67, %78 : vector<4x16xf32>
    %cst_50 = arith.constant dense<0xFF800000> : vector<4xf32>
    %81 = vector.multi_reduction <maximumf>, %78, %cst_50 [1] : vector<4x16xf32> to vector<4xf32>
    %82 = vector.shape_cast %81 : vector<4xf32> to vector<4x1xf32>
    %cst_51 = arith.constant dense<0.000000e+00> : vector<4xf32>
    %83 = vector.multi_reduction <add>, %78, %cst_51 [1] : vector<4x16xf32> to vector<4xf32>
    %84 = vector.shape_cast %83 : vector<4xf32> to vector<4x1xf32>
    %cst_52 = arith.constant dense<0xFF800000> : vector<16xf32>
    %85 = vector.multi_reduction <maximumf>, %78, %cst_52 [0] : vector<4x16xf32> to vector<16xf32>
    %86 = vector.shape_cast %85 : vector<16xf32> to vector<1x16xf32>
    %cst_53 = arith.constant dense<0.000000e+00> : vector<16xf32>
    %87 = vector.multi_reduction <add>, %78, %cst_53 [0] : vector<4x16xf32> to vector<16xf32>
    %88 = vector.shape_cast %87 : vector<16xf32> to vector<1x16xf32>
    %c0_i32_54 = arith.constant 0 : i32
    %c0_i32_55 = arith.constant 0 : i32
    %c0_i32_56 = arith.constant 0 : i32
    %89 = tpu.memref_slice %arg2[%c0_i32_54, %c0_i32_55, %c0_i32_56] : memref<1x4x256xf32, #tpu.memory_space<vmem>> -> memref<1x4x256xf32, #tpu.memory_space<vmem>>
    %90 = tpu.memref_squeeze %89 : memref<1x4x256xf32, #tpu.memory_space<vmem>> -> memref<4x256xf32, #tpu.memory_space<vmem>>
    %c0_57 = arith.constant 0 : index
    %c112 = arith.constant 112 : index
    %91 = vector.load %90[%c0_57, %c112] : memref<4x256xf32, #tpu.memory_space<vmem>>, vector<4x16xf32>
    %92 = arith.maximumf %79, %91 : vector<4x16xf32>
    %93 = arith.addf %80, %91 : vector<4x16xf32>
    %cst_58 = arith.constant dense<0xFF800000> : vector<4xf32>
    %94 = vector.multi_reduction <maximumf>, %91, %cst_58 [1] : vector<4x16xf32> to vector<4xf32>
    %95 = vector.shape_cast %94 : vector<4xf32> to vector<4x1xf32>
    %cst_59 = arith.constant dense<0.000000e+00> : vector<4xf32>
    %96 = vector.multi_reduction <add>, %91, %cst_59 [1] : vector<4x16xf32> to vector<4xf32>
    %97 = vector.shape_cast %96 : vector<4xf32> to vector<4x1xf32>
    %cst_60 = arith.constant dense<0xFF800000> : vector<16xf32>
    %98 = vector.multi_reduction <maximumf>, %91, %cst_60 [0] : vector<4x16xf32> to vector<16xf32>
    %99 = vector.shape_cast %98 : vector<16xf32> to vector<1x16xf32>
    %cst_61 = arith.constant dense<0.000000e+00> : vector<16xf32>
    %100 = vector.multi_reduction <add>, %91, %cst_61 [0] : vector<4x16xf32> to vector<16xf32>
    %101 = vector.shape_cast %100 : vector<16xf32> to vector<1x16xf32>
    %c0_i32_62 = arith.constant 0 : i32
    %c0_i32_63 = arith.constant 0 : i32
    %c0_i32_64 = arith.constant 0 : i32
    %102 = tpu.memref_slice %arg2[%c0_i32_62, %c0_i32_63, %c0_i32_64] : memref<1x4x256xf32, #tpu.memory_space<vmem>> -> memref<1x4x256xf32, #tpu.memory_space<vmem>>
    %103 = tpu.memref_squeeze %102 : memref<1x4x256xf32, #tpu.memory_space<vmem>> -> memref<4x256xf32, #tpu.memory_space<vmem>>
    %c0_65 = arith.constant 0 : index
    %c128 = arith.constant 128 : index
    %104 = vector.load %103[%c0_65, %c128] : memref<4x256xf32, #tpu.memory_space<vmem>>, vector<4x16xf32>
    %105 = arith.maximumf %92, %104 : vector<4x16xf32>
    %106 = arith.addf %93, %104 : vector<4x16xf32>
    %cst_66 = arith.constant dense<0xFF800000> : vector<4xf32>
    %107 = vector.multi_reduction <maximumf>, %104, %cst_66 [1] : vector<4x16xf32> to vector<4xf32>
    %108 = vector.shape_cast %107 : vector<4xf32> to vector<4x1xf32>
    %cst_67 = arith.constant dense<0.000000e+00> : vector<4xf32>
    %109 = vector.multi_reduction <add>, %104, %cst_67 [1] : vector<4x16xf32> to vector<4xf32>
    %110 = vector.shape_cast %109 : vector<4xf32> to vector<4x1xf32>
    %cst_68 = arith.constant dense<0xFF800000> : vector<16xf32>
    %111 = vector.multi_reduction <maximumf>, %104, %cst_68 [0] : vector<4x16xf32> to vector<16xf32>
    %112 = vector.shape_cast %111 : vector<16xf32> to vector<1x16xf32>
    %cst_69 = arith.constant dense<0.000000e+00> : vector<16xf32>
    %113 = vector.multi_reduction <add>, %104, %cst_69 [0] : vector<4x16xf32> to vector<16xf32>
    %114 = vector.shape_cast %113 : vector<16xf32> to vector<1x16xf32>
    %c0_i32_70 = arith.constant 0 : i32
    %c0_i32_71 = arith.constant 0 : i32
    %c0_i32_72 = arith.constant 0 : i32
    %115 = tpu.memref_slice %arg2[%c0_i32_70, %c0_i32_71, %c0_i32_72] : memref<1x4x256xf32, #tpu.memory_space<vmem>> -> memref<1x4x256xf32, #tpu.memory_space<vmem>>
    %116 = tpu.memref_squeeze %115 : memref<1x4x256xf32, #tpu.memory_space<vmem>> -> memref<4x256xf32, #tpu.memory_space<vmem>>
    %c0_73 = arith.constant 0 : index
    %c144 = arith.constant 144 : index
    %117 = vector.load %116[%c0_73, %c144] : memref<4x256xf32, #tpu.memory_space<vmem>>, vector<4x16xf32>
    %118 = arith.maximumf %105, %117 : vector<4x16xf32>
    %119 = arith.addf %106, %117 : vector<4x16xf32>
    %cst_74 = arith.constant dense<0xFF800000> : vector<4xf32>
    %120 = vector.multi_reduction <maximumf>, %117, %cst_74 [1] : vector<4x16xf32> to vector<4xf32>
    %121 = vector.shape_cast %120 : vector<4xf32> to vector<4x1xf32>
    %cst_75 = arith.constant dense<0.000000e+00> : vector<4xf32>
    %122 = vector.multi_reduction <add>, %117, %cst_75 [1] : vector<4x16xf32> to vector<4xf32>
    %123 = vector.shape_cast %122 : vector<4xf32> to vector<4x1xf32>
    %cst_76 = arith.constant dense<0xFF800000> : vector<16xf32>
    %124 = vector.multi_reduction <maximumf>, %117, %cst_76 [0] : vector<4x16xf32> to vector<16xf32>
    %125 = vector.shape_cast %124 : vector<16xf32> to vector<1x16xf32>
    %cst_77 = arith.constant dense<0.000000e+00> : vector<16xf32>
    %126 = vector.multi_reduction <add>, %117, %cst_77 [0] : vector<4x16xf32> to vector<16xf32>
    %127 = vector.shape_cast %126 : vector<16xf32> to vector<1x16xf32>
    %c0_i32_78 = arith.constant 0 : i32
    %c0_i32_79 = arith.constant 0 : i32
    %c0_i32_80 = arith.constant 0 : i32
    %128 = tpu.memref_slice %arg2[%c0_i32_78, %c0_i32_79, %c0_i32_80] : memref<1x4x256xf32, #tpu.memory_space<vmem>> -> memref<1x4x256xf32, #tpu.memory_space<vmem>>
    %129 = tpu.memref_squeeze %128 : memref<1x4x256xf32, #tpu.memory_space<vmem>> -> memref<4x256xf32, #tpu.memory_space<vmem>>
    %c0_81 = arith.constant 0 : index
    %c160 = arith.constant 160 : index
    %130 = vector.load %129[%c0_81, %c160] : memref<4x256xf32, #tpu.memory_space<vmem>>, vector<4x16xf32>
    %131 = arith.maximumf %118, %130 : vector<4x16xf32>
    %132 = arith.addf %119, %130 : vector<4x16xf32>
    %cst_82 = arith.constant dense<0xFF800000> : vector<4xf32>
    %133 = vector.multi_reduction <maximumf>, %130, %cst_82 [1] : vector<4x16xf32> to vector<4xf32>
    %134 = vector.shape_cast %133 : vector<4xf32> to vector<4x1xf32>
    %cst_83 = arith.constant dense<0.000000e+00> : vector<4xf32>
    %135 = vector.multi_reduction <add>, %130, %cst_83 [1] : vector<4x16xf32> to vector<4xf32>
    %136 = vector.shape_cast %135 : vector<4xf32> to vector<4x1xf32>
    %cst_84 = arith.constant dense<0xFF800000> : vector<16xf32>
    %137 = vector.multi_reduction <maximumf>, %130, %cst_84 [0] : vector<4x16xf32> to vector<16xf32>
    %138 = vector.shape_cast %137 : vector<16xf32> to vector<1x16xf32>
    %cst_85 = arith.constant dense<0.000000e+00> : vector<16xf32>
    %139 = vector.multi_reduction <add>, %130, %cst_85 [0] : vector<4x16xf32> to vector<16xf32>
    %140 = vector.shape_cast %139 : vector<16xf32> to vector<1x16xf32>
    %c0_i32_86 = arith.constant 0 : i32
    %c0_i32_87 = arith.constant 0 : i32
    %c0_i32_88 = arith.constant 0 : i32
    %141 = tpu.memref_slice %arg2[%c0_i32_86, %c0_i32_87, %c0_i32_88] : memref<1x4x256xf32, #tpu.memory_space<vmem>> -> memref<1x4x256xf32, #tpu.memory_space<vmem>>
    %142 = tpu.memref_squeeze %141 : memref<1x4x256xf32, #tpu.memory_space<vmem>> -> memref<4x256xf32, #tpu.memory_space<vmem>>
    %c0_89 = arith.constant 0 : index
    %c176 = arith.constant 176 : index
    %143 = vector.load %142[%c0_89, %c176] : memref<4x256xf32, #tpu.memory_space<vmem>>, vector<4x16xf32>
    %144 = arith.maximumf %131, %143 : vector<4x16xf32>
    %145 = arith.addf %132, %143 : vector<4x16xf32>
    %cst_90 = arith.constant dense<0xFF800000> : vector<4xf32>
    %146 = vector.multi_reduction <maximumf>, %143, %cst_90 [1] : vector<4x16xf32> to vector<4xf32>
    %147 = vector.shape_cast %146 : vector<4xf32> to vector<4x1xf32>
    %cst_91 = arith.constant dense<0.000000e+00> : vector<4xf32>
    %148 = vector.multi_reduction <add>, %143, %cst_91 [1] : vector<4x16xf32> to vector<4xf32>
    %149 = vector.shape_cast %148 : vector<4xf32> to vector<4x1xf32>
    %cst_92 = arith.constant dense<0xFF800000> : vector<16xf32>
    %150 = vector.multi_reduction <maximumf>, %143, %cst_92 [0] : vector<4x16xf32> to vector<16xf32>
    %151 = vector.shape_cast %150 : vector<16xf32> to vector<1x16xf32>
    %cst_93 = arith.constant dense<0.000000e+00> : vector<16xf32>
    %152 = vector.multi_reduction <add>, %143, %cst_93 [0] : vector<4x16xf32> to vector<16xf32>
    %153 = vector.shape_cast %152 : vector<16xf32> to vector<1x16xf32>
    %c0_i32_94 = arith.constant 0 : i32
    %c0_i32_95 = arith.constant 0 : i32
    %c0_i32_96 = arith.constant 0 : i32
    %154 = tpu.memref_slice %arg2[%c0_i32_94, %c0_i32_95, %c0_i32_96] : memref<1x4x256xf32, #tpu.memory_space<vmem>> -> memref<1x4x256xf32, #tpu.memory_space<vmem>>
    %155 = tpu.memref_squeeze %154 : memref<1x4x256xf32, #tpu.memory_space<vmem>> -> memref<4x256xf32, #tpu.memory_space<vmem>>
    %c0_97 = arith.constant 0 : index
    %c192 = arith.constant 192 : index
    %156 = vector.load %155[%c0_97, %c192] : memref<4x256xf32, #tpu.memory_space<vmem>>, vector<4x16xf32>
    %157 = arith.maximumf %144, %156 : vector<4x16xf32>
    %158 = arith.addf %145, %156 : vector<4x16xf32>
    %cst_98 = arith.constant dense<0xFF800000> : vector<4xf32>
    %159 = vector.multi_reduction <maximumf>, %156, %cst_98 [1] : vector<4x16xf32> to vector<4xf32>
    %160 = vector.shape_cast %159 : vector<4xf32> to vector<4x1xf32>
    %cst_99 = arith.constant dense<0.000000e+00> : vector<4xf32>
    %161 = vector.multi_reduction <add>, %156, %cst_99 [1] : vector<4x16xf32> to vector<4xf32>
    %162 = vector.shape_cast %161 : vector<4xf32> to vector<4x1xf32>
    %cst_100 = arith.constant dense<0xFF800000> : vector<16xf32>
    %163 = vector.multi_reduction <maximumf>, %156, %cst_100 [0] : vector<4x16xf32> to vector<16xf32>
    %164 = vector.shape_cast %163 : vector<16xf32> to vector<1x16xf32>
    %cst_101 = arith.constant dense<0.000000e+00> : vector<16xf32>
    %165 = vector.multi_reduction <add>, %156, %cst_101 [0] : vector<4x16xf32> to vector<16xf32>
    %166 = vector.shape_cast %165 : vector<16xf32> to vector<1x16xf32>
    %c0_i32_102 = arith.constant 0 : i32
    %c0_i32_103 = arith.constant 0 : i32
    %c0_i32_104 = arith.constant 0 : i32
    %167 = tpu.memref_slice %arg2[%c0_i32_102, %c0_i32_103, %c0_i32_104] : memref<1x4x256xf32, #tpu.memory_space<vmem>> -> memref<1x4x256xf32, #tpu.memory_space<vmem>>
    %168 = tpu.memref_squeeze %167 : memref<1x4x256xf32, #tpu.memory_space<vmem>> -> memref<4x256xf32, #tpu.memory_space<vmem>>
    %c0_105 = arith.constant 0 : index
    %c208 = arith.constant 208 : index
    %169 = vector.load %168[%c0_105, %c208] : memref<4x256xf32, #tpu.memory_space<vmem>>, vector<4x16xf32>
    %170 = arith.maximumf %157, %169 : vector<4x16xf32>
    %171 = arith.addf %158, %169 : vector<4x16xf32>
    %cst_106 = arith.constant dense<0xFF800000> : vector<4xf32>
    %172 = vector.multi_reduction <maximumf>, %169, %cst_106 [1] : vector<4x16xf32> to vector<4xf32>
    %173 = vector.shape_cast %172 : vector<4xf32> to vector<4x1xf32>
    %cst_107 = arith.constant dense<0.000000e+00> : vector<4xf32>
    %174 = vector.multi_reduction <add>, %169, %cst_107 [1] : vector<4x16xf32> to vector<4xf32>
    %175 = vector.shape_cast %174 : vector<4xf32> to vector<4x1xf32>
    %cst_108 = arith.constant dense<0xFF800000> : vector<16xf32>
    %176 = vector.multi_reduction <maximumf>, %169, %cst_108 [0] : vector<4x16xf32> to vector<16xf32>
    %177 = vector.shape_cast %176 : vector<16xf32> to vector<1x16xf32>
    %cst_109 = arith.constant dense<0.000000e+00> : vector<16xf32>
    %178 = vector.multi_reduction <add>, %169, %cst_109 [0] : vector<4x16xf32> to vector<16xf32>
    %179 = vector.shape_cast %178 : vector<16xf32> to vector<1x16xf32>
    %c0_i32_110 = arith.constant 0 : i32
    %c0_i32_111 = arith.constant 0 : i32
    %c0_i32_112 = arith.constant 0 : i32
    %180 = tpu.memref_slice %arg2[%c0_i32_110, %c0_i32_111, %c0_i32_112] : memref<1x4x256xf32, #tpu.memory_space<vmem>> -> memref<1x4x256xf32, #tpu.memory_space<vmem>>
    %181 = tpu.memref_squeeze %180 : memref<1x4x256xf32, #tpu.memory_space<vmem>> -> memref<4x256xf32, #tpu.memory_space<vmem>>
    %c0_113 = arith.constant 0 : index
    %c224 = arith.constant 224 : index
    %182 = vector.load %181[%c0_113, %c224] : memref<4x256xf32, #tpu.memory_space<vmem>>, vector<4x16xf32>
    %183 = arith.maximumf %170, %182 : vector<4x16xf32>
    %184 = arith.addf %171, %182 : vector<4x16xf32>
    %cst_114 = arith.constant dense<0xFF800000> : vector<4xf32>
    %185 = vector.multi_reduction <maximumf>, %182, %cst_114 [1] : vector<4x16xf32> to vector<4xf32>
    %186 = vector.shape_cast %185 : vector<4xf32> to vector<4x1xf32>
    %cst_115 = arith.constant dense<0.000000e+00> : vector<4xf32>
    %187 = vector.multi_reduction <add>, %182, %cst_115 [1] : vector<4x16xf32> to vector<4xf32>
    %188 = vector.shape_cast %187 : vector<4xf32> to vector<4x1xf32>
    %cst_116 = arith.constant dense<0xFF800000> : vector<16xf32>
    %189 = vector.multi_reduction <maximumf>, %182, %cst_116 [0] : vector<4x16xf32> to vector<16xf32>
    %190 = vector.shape_cast %189 : vector<16xf32> to vector<1x16xf32>
    %cst_117 = arith.constant dense<0.000000e+00> : vector<16xf32>
    %191 = vector.multi_reduction <add>, %182, %cst_117 [0] : vector<4x16xf32> to vector<16xf32>
    %192 = vector.shape_cast %191 : vector<16xf32> to vector<1x16xf32>
    %c0_i32_118 = arith.constant 0 : i32
    %c0_i32_119 = arith.constant 0 : i32
    %c0_i32_120 = arith.constant 0 : i32
    %193 = tpu.memref_slice %arg2[%c0_i32_118, %c0_i32_119, %c0_i32_120] : memref<1x4x256xf32, #tpu.memory_space<vmem>> -> memref<1x4x256xf32, #tpu.memory_space<vmem>>
    %194 = tpu.memref_squeeze %193 : memref<1x4x256xf32, #tpu.memory_space<vmem>> -> memref<4x256xf32, #tpu.memory_space<vmem>>
    %c0_121 = arith.constant 0 : index
    %c240 = arith.constant 240 : index
    %195 = vector.load %194[%c0_121, %c240] : memref<4x256xf32, #tpu.memory_space<vmem>>, vector<4x16xf32>
    %196 = arith.maximumf %183, %195 : vector<4x16xf32>
    %197 = arith.addf %184, %195 : vector<4x16xf32>
    %cst_122 = arith.constant dense<0xFF800000> : vector<4xf32>
    %198 = vector.multi_reduction <maximumf>, %195, %cst_122 [1] : vector<4x16xf32> to vector<4xf32>
    %199 = vector.shape_cast %198 : vector<4xf32> to vector<4x1xf32>
    %cst_123 = arith.constant dense<0.000000e+00> : vector<4xf32>
    %200 = vector.multi_reduction <add>, %195, %cst_123 [1] : vector<4x16xf32> to vector<4xf32>
    %201 = vector.shape_cast %200 : vector<4xf32> to vector<4x1xf32>
    %cst_124 = arith.constant dense<0xFF800000> : vector<16xf32>
    %202 = vector.multi_reduction <maximumf>, %195, %cst_124 [0] : vector<4x16xf32> to vector<16xf32>
    %203 = vector.shape_cast %202 : vector<16xf32> to vector<1x16xf32>
    %cst_125 = arith.constant dense<0.000000e+00> : vector<16xf32>
    %204 = vector.multi_reduction <add>, %195, %cst_125 [0] : vector<4x16xf32> to vector<16xf32>
    %205 = vector.shape_cast %204 : vector<16xf32> to vector<1x16xf32>
    %cst_126 = arith.constant 6.250000e-02 : f32
    %206 = vector.broadcast %cst_126 : f32 to vector<4x16xf32>
    %207 = arith.mulf %197, %206 : vector<4x16xf32>
    %208 = tpu.concatenate %4, %17, %30, %43, %56, %69, %82, %95, %108, %121, %134, %147, %160, %173, %186, %199 in 1 : vector<4x1xf32>, vector<4x1xf32>, vector<4x1xf32>, vector<4x1xf32>, vector<4x1xf32>, vector<4x1xf32>, vector<4x1xf32>, vector<4x1xf32>, vector<4x1xf32>, vector<4x1xf32>, vector<4x1xf32>, vector<4x1xf32>, vector<4x1xf32>, vector<4x1xf32>, vector<4x1xf32>, vector<4x1xf32> -> vector<4x16xf32>
    %209 = tpu.concatenate %6, %19, %32, %45, %58, %71, %84, %97, %110, %123, %136, %149, %162, %175, %188, %201 in 1 : vector<4x1xf32>, vector<4x1xf32>, vector<4x1xf32>, vector<4x1xf32>, vector<4x1xf32>, vector<4x1xf32>, vector<4x1xf32>, vector<4x1xf32>, vector<4x1xf32>, vector<4x1xf32>, vector<4x1xf32>, vector<4x1xf32>, vector<4x1xf32>, vector<4x1xf32>, vector<4x1xf32>, vector<4x1xf32> -> vector<4x16xf32>
    %cst_127 = arith.constant 6.250000e-02 : f32
    %210 = vector.broadcast %cst_127 : f32 to vector<4x16xf32>
    %211 = arith.mulf %209, %210 : vector<4x16xf32>
    %212 = tpu.concatenate %8, %21, %34, %47, %60, %73, %86, %99, %112, %125, %138, %151, %164, %177, %190, %203 in 0 : vector<1x16xf32>, vector<1x16xf32>, vector<1x16xf32>, vector<1x16xf32>, vector<1x16xf32>, vector<1x16xf32>, vector<1x16xf32>, vector<1x16xf32>, vector<1x16xf32>, vector<1x16xf32>, vector<1x16xf32>, vector<1x16xf32>, vector<1x16xf32>, vector<1x16xf32>, vector<1x16xf32>, vector<1x16xf32> -> vector<16x16xf32>
    %213 = tpu.concatenate %10, %23, %36, %49, %62, %75, %88, %101, %114, %127, %140, %153, %166, %179, %192, %205 in 0 : vector<1x16xf32>, vector<1x16xf32>, vector<1x16xf32>, vector<1x16xf32>, vector<1x16xf32>, vector<1x16xf32>, vector<1x16xf32>, vector<1x16xf32>, vector<1x16xf32>, vector<1x16xf32>, vector<1x16xf32>, vector<1x16xf32>, vector<1x16xf32>, vector<1x16xf32>, vector<1x16xf32>, vector<1x16xf32> -> vector<16x16xf32>
    %cst_128 = arith.constant 2.500000e-01 : f32
    %214 = vector.broadcast %cst_128 : f32 to vector<16x16xf32>
    %215 = arith.mulf %213, %214 : vector<16x16xf32>
    %c0_129 = arith.constant 0 : index
    %c0_130 = arith.constant 0 : index
    %216 = memref.load %arg1[%c0_129, %c0_130] : memref<3x50xf32, #tpu.memory_space<smem>>
    %c0_131 = arith.constant 0 : index
    %c1 = arith.constant 1 : index
    %217 = memref.load %arg1[%c0_131, %c1] : memref<3x50xf32, #tpu.memory_space<smem>>
    %c0_132 = arith.constant 0 : index
    %c2 = arith.constant 2 : index
    %218 = memref.load %arg1[%c0_132, %c2] : memref<3x50xf32, #tpu.memory_space<smem>>
    %c0_133 = arith.constant 0 : index
    %c3 = arith.constant 3 : index
    %219 = memref.load %arg1[%c0_133, %c3] : memref<3x50xf32, #tpu.memory_space<smem>>
    %c0_134 = arith.constant 0 : index
    %c4 = arith.constant 4 : index
    %220 = memref.load %arg1[%c0_134, %c4] : memref<3x50xf32, #tpu.memory_space<smem>>
    %c0_135 = arith.constant 0 : index
    %c5 = arith.constant 5 : index
    %221 = memref.load %arg1[%c0_135, %c5] : memref<3x50xf32, #tpu.memory_space<smem>>
    %c0_136 = arith.constant 0 : index
    %c6 = arith.constant 6 : index
    %222 = memref.load %arg1[%c0_136, %c6] : memref<3x50xf32, #tpu.memory_space<smem>>
    %c0_137 = arith.constant 0 : index
    %c7 = arith.constant 7 : index
    %223 = memref.load %arg1[%c0_137, %c7] : memref<3x50xf32, #tpu.memory_space<smem>>
    %c0_138 = arith.constant 0 : index
    %c8 = arith.constant 8 : index
    %224 = memref.load %arg1[%c0_138, %c8] : memref<3x50xf32, #tpu.memory_space<smem>>
    %c0_139 = arith.constant 0 : index
    %c9 = arith.constant 9 : index
    %225 = memref.load %arg1[%c0_139, %c9] : memref<3x50xf32, #tpu.memory_space<smem>>
    %c0_140 = arith.constant 0 : index
    %c10 = arith.constant 10 : index
    %226 = memref.load %arg1[%c0_140, %c10] : memref<3x50xf32, #tpu.memory_space<smem>>
    %c0_141 = arith.constant 0 : index
    %c11 = arith.constant 11 : index
    %227 = memref.load %arg1[%c0_141, %c11] : memref<3x50xf32, #tpu.memory_space<smem>>
    %c0_142 = arith.constant 0 : index
    %c12 = arith.constant 12 : index
    %228 = memref.load %arg1[%c0_142, %c12] : memref<3x50xf32, #tpu.memory_space<smem>>
    %c0_143 = arith.constant 0 : index
    %c13 = arith.constant 13 : index
    %229 = memref.load %arg1[%c0_143, %c13] : memref<3x50xf32, #tpu.memory_space<smem>>
    %c0_144 = arith.constant 0 : index
    %c14 = arith.constant 14 : index
    %230 = memref.load %arg1[%c0_144, %c14] : memref<3x50xf32, #tpu.memory_space<smem>>
    %c0_145 = arith.constant 0 : index
    %c15 = arith.constant 15 : index
    %231 = memref.load %arg1[%c0_145, %c15] : memref<3x50xf32, #tpu.memory_space<smem>>
    %c0_146 = arith.constant 0 : index
    %c16_147 = arith.constant 16 : index
    %232 = memref.load %arg1[%c0_146, %c16_147] : memref<3x50xf32, #tpu.memory_space<smem>>
    %c0_148 = arith.constant 0 : index
    %c17 = arith.constant 17 : index
    %233 = memref.load %arg1[%c0_148, %c17] : memref<3x50xf32, #tpu.memory_space<smem>>
    %c0_149 = arith.constant 0 : index
    %c18 = arith.constant 18 : index
    %234 = memref.load %arg1[%c0_149, %c18] : memref<3x50xf32, #tpu.memory_space<smem>>
    %c0_150 = arith.constant 0 : index
    %c19 = arith.constant 19 : index
    %235 = memref.load %arg1[%c0_150, %c19] : memref<3x50xf32, #tpu.memory_space<smem>>
    %c0_151 = arith.constant 0 : index
    %c20 = arith.constant 20 : index
    %236 = memref.load %arg1[%c0_151, %c20] : memref<3x50xf32, #tpu.memory_space<smem>>
    %c0_152 = arith.constant 0 : index
    %c21 = arith.constant 21 : index
    %237 = memref.load %arg1[%c0_152, %c21] : memref<3x50xf32, #tpu.memory_space<smem>>
    %c0_153 = arith.constant 0 : index
    %c22 = arith.constant 22 : index
    %238 = memref.load %arg1[%c0_153, %c22] : memref<3x50xf32, #tpu.memory_space<smem>>
    %c0_154 = arith.constant 0 : index
    %c23 = arith.constant 23 : index
    %239 = memref.load %arg1[%c0_154, %c23] : memref<3x50xf32, #tpu.memory_space<smem>>
    %c0_155 = arith.constant 0 : index
    %c24 = arith.constant 24 : index
    %240 = memref.load %arg1[%c0_155, %c24] : memref<3x50xf32, #tpu.memory_space<smem>>
    %c0_156 = arith.constant 0 : index
    %c25 = arith.constant 25 : index
    %241 = memref.load %arg1[%c0_156, %c25] : memref<3x50xf32, #tpu.memory_space<smem>>
    %c0_157 = arith.constant 0 : index
    %c26 = arith.constant 26 : index
    %242 = memref.load %arg1[%c0_157, %c26] : memref<3x50xf32, #tpu.memory_space<smem>>
    %c0_158 = arith.constant 0 : index
    %c27 = arith.constant 27 : index
    %243 = memref.load %arg1[%c0_158, %c27] : memref<3x50xf32, #tpu.memory_space<smem>>
    %c0_159 = arith.constant 0 : index
    %c28 = arith.constant 28 : index
    %244 = memref.load %arg1[%c0_159, %c28] : memref<3x50xf32, #tpu.memory_space<smem>>
    %c0_160 = arith.constant 0 : index
    %c29 = arith.constant 29 : index
    %245 = memref.load %arg1[%c0_160, %c29] : memref<3x50xf32, #tpu.memory_space<smem>>
    %c0_161 = arith.constant 0 : index
    %c30 = arith.constant 30 : index
    %246 = memref.load %arg1[%c0_161, %c30] : memref<3x50xf32, #tpu.memory_space<smem>>
    %c0_162 = arith.constant 0 : index
    %c31 = arith.constant 31 : index
    %247 = memref.load %arg1[%c0_162, %c31] : memref<3x50xf32, #tpu.memory_space<smem>>
    %c0_163 = arith.constant 0 : index
    %c32_164 = arith.constant 32 : index
    %248 = memref.load %arg1[%c0_163, %c32_164] : memref<3x50xf32, #tpu.memory_space<smem>>
    %c0_165 = arith.constant 0 : index
    %c33 = arith.constant 33 : index
    %249 = memref.load %arg1[%c0_165, %c33] : memref<3x50xf32, #tpu.memory_space<smem>>
    %c0_166 = arith.constant 0 : index
    %c34 = arith.constant 34 : index
    %250 = memref.load %arg1[%c0_166, %c34] : memref<3x50xf32, #tpu.memory_space<smem>>
    %c0_167 = arith.constant 0 : index
    %c35 = arith.constant 35 : index
    %251 = memref.load %arg1[%c0_167, %c35] : memref<3x50xf32, #tpu.memory_space<smem>>
    %c0_168 = arith.constant 0 : index
    %c36 = arith.constant 36 : index
    %252 = memref.load %arg1[%c0_168, %c36] : memref<3x50xf32, #tpu.memory_space<smem>>
    %c0_169 = arith.constant 0 : index
    %c37 = arith.constant 37 : index
    %253 = memref.load %arg1[%c0_169, %c37] : memref<3x50xf32, #tpu.memory_space<smem>>
    %c0_170 = arith.constant 0 : index
    %c38 = arith.constant 38 : index
    %254 = memref.load %arg1[%c0_170, %c38] : memref<3x50xf32, #tpu.memory_space<smem>>
    %c0_171 = arith.constant 0 : index
    %c39 = arith.constant 39 : index
    %255 = memref.load %arg1[%c0_171, %c39] : memref<3x50xf32, #tpu.memory_space<smem>>
    %c0_172 = arith.constant 0 : index
    %c40 = arith.constant 40 : index
    %256 = memref.load %arg1[%c0_172, %c40] : memref<3x50xf32, #tpu.memory_space<smem>>
    %c0_173 = arith.constant 0 : index
    %c41 = arith.constant 41 : index
    %257 = memref.load %arg1[%c0_173, %c41] : memref<3x50xf32, #tpu.memory_space<smem>>
    %c0_174 = arith.constant 0 : index
    %c42 = arith.constant 42 : index
    %258 = memref.load %arg1[%c0_174, %c42] : memref<3x50xf32, #tpu.memory_space<smem>>
    %c0_175 = arith.constant 0 : index
    %c43 = arith.constant 43 : index
    %259 = memref.load %arg1[%c0_175, %c43] : memref<3x50xf32, #tpu.memory_space<smem>>
    %c0_176 = arith.constant 0 : index
    %c44 = arith.constant 44 : index
    %260 = memref.load %arg1[%c0_176, %c44] : memref<3x50xf32, #tpu.memory_space<smem>>
    %c0_177 = arith.constant 0 : index
    %c45 = arith.constant 45 : index
    %261 = memref.load %arg1[%c0_177, %c45] : memref<3x50xf32, #tpu.memory_space<smem>>
    %c0_178 = arith.constant 0 : index
    %c46 = arith.constant 46 : index
    %262 = memref.load %arg1[%c0_178, %c46] : memref<3x50xf32, #tpu.memory_space<smem>>
    %c0_179 = arith.constant 0 : index
    %c47 = arith.constant 47 : index
    %263 = memref.load %arg1[%c0_179, %c47] : memref<3x50xf32, #tpu.memory_space<smem>>
    %c0_180 = arith.constant 0 : index
    %c48_181 = arith.constant 48 : index
    %264 = memref.load %arg1[%c0_180, %c48_181] : memref<3x50xf32, #tpu.memory_space<smem>>
    %c0_182 = arith.constant 0 : index
    %c49 = arith.constant 49 : index
    %265 = memref.load %arg1[%c0_182, %c49] : memref<3x50xf32, #tpu.memory_space<smem>>
    %cst_183 = arith.constant 0.000000e+00 : f32
    %266 = vector.broadcast %cst_183 : f32 to vector<2x20xf32>
    %c0_184 = arith.constant 0 : index
    %c0_185 = arith.constant 0 : index
    %267 = vector.load %arg4[%c0_184, %c0_185] : memref<16x20xf32, #tpu.memory_space<vmem>>, vector<2x20xf32>
    tpu.vector_store %arg4[%c0_184, %c0_185], %266 {strides = array<i32>} : memref<16x20xf32, #tpu.memory_space<vmem>>, vector<2x20xf32>,
    %cst_186 = arith.constant 0.000000e+00 : f32
    %268 = vector.broadcast %cst_186 : f32 to vector<4x20xf32>
    %c6_187 = arith.constant 6 : index
    %c0_188 = arith.constant 0 : index
    %269 = vector.load %arg4[%c6_187, %c0_188] : memref<16x20xf32, #tpu.memory_space<vmem>>, vector<4x20xf32>
    tpu.vector_store %arg4[%c6_187, %c0_188], %268 {strides = array<i32>} : memref<16x20xf32, #tpu.memory_space<vmem>>, vector<4x20xf32>,
    %cst_189 = arith.constant 0.000000e+00 : f32
    %270 = vector.broadcast %cst_189 : f32 to vector<2x20xf32>
    %c14_190 = arith.constant 14 : index
    %c0_191 = arith.constant 0 : index
    %271 = vector.load %arg4[%c14_190, %c0_191] : memref<16x20xf32, #tpu.memory_space<vmem>>, vector<2x20xf32>
    tpu.vector_store %arg4[%c14_190, %c0_191], %270 {strides = array<i32>} : memref<16x20xf32, #tpu.memory_space<vmem>>, vector<2x20xf32>,
    %cst_192 = arith.constant 0.000000e+00 : f32
    %272 = vector.broadcast %cst_192 : f32 to vector<16x2xf32>
    %c0_193 = arith.constant 0 : index
    %c0_194 = arith.constant 0 : index
    %273 = vector.load %arg4[%c0_193, %c0_194] : memref<16x20xf32, #tpu.memory_space<vmem>>, vector<16x2xf32>
    tpu.vector_store %arg4[%c0_193, %c0_194], %272 {strides = array<i32>} : memref<16x20xf32, #tpu.memory_space<vmem>>, vector<16x2xf32>,
    %cst_195 = arith.constant 0.000000e+00 : f32
    %274 = vector.broadcast %cst_195 : f32 to vector<16x2xf32>
    %c0_196 = arith.constant 0 : index
    %c18_197 = arith.constant 18 : index
    %275 = vector.load %arg4[%c0_196, %c18_197] : memref<16x20xf32, #tpu.memory_space<vmem>>, vector<16x2xf32>
    tpu.vector_store %arg4[%c0_196, %c18_197], %274 {strides = array<i32>} : memref<16x20xf32, #tpu.memory_space<vmem>>, vector<16x2xf32>,
    %c2_198 = arith.constant 2 : index
    %c2_199 = arith.constant 2 : index
    %276 = vector.load %arg4[%c2_198, %c2_199] : memref<16x20xf32, #tpu.memory_space<vmem>>, vector<4x16xf32>
    tpu.vector_store %arg4[%c2_198, %c2_199], %196 {strides = array<i32>} : memref<16x20xf32, #tpu.memory_space<vmem>>, vector<4x16xf32>,
    %c10_200 = arith.constant 10 : index
    %c2_201 = arith.constant 2 : index
    %277 = vector.load %arg4[%c10_200, %c2_201] : memref<16x20xf32, #tpu.memory_space<vmem>>, vector<4x16xf32>
    tpu.vector_store %arg4[%c10_200, %c2_201], %207 {strides = array<i32>} : memref<16x20xf32, #tpu.memory_space<vmem>>, vector<4x16xf32>,
    %cst_202 = arith.constant 0.000000e+00 : f32
    %278 = vector.broadcast %cst_202 : f32 to vector<4x16xf32>
    %c0_203 = arith.constant 0 : index
    %c0_204 = arith.constant 0 : index
    %279 = vector.load %arg4[%c0_203, %c0_204] : memref<16x20xf32, #tpu.memory_space<vmem>>, vector<16x16xf32>
    %280 = vector.extract_strided_slice %279 {offsets = [0, 0], sizes = [4, 16], strides = [1, 1]} : vector<16x16xf32> to vector<4x16xf32>
    %281 = vector.broadcast %216 : f32 to vector<4x16xf32>
    %282 = arith.mulf %281, %280 : vector<4x16xf32>
    %283 = arith.addf %278, %282 : vector<4x16xf32>
    %284 = vector.extract_strided_slice %279 {offsets = [8, 0], sizes = [4, 16], strides = [1, 1]} : vector<16x16xf32> to vector<4x16xf32>
    %285 = vector.broadcast %241 : f32 to vector<4x16xf32>
    %286 = arith.mulf %285, %284 : vector<4x16xf32>
    %287 = arith.addf %283, %286 : vector<4x16xf32>
    %288 = vector.extract_strided_slice %279 {offsets = [1, 0], sizes = [4, 16], strides = [1, 1]} : vector<16x16xf32> to vector<4x16xf32>
    %289 = vector.broadcast %221 : f32 to vector<4x16xf32>
    %290 = arith.mulf %289, %288 : vector<4x16xf32>
    %291 = arith.addf %287, %290 : vector<4x16xf32>
    %292 = vector.extract_strided_slice %279 {offsets = [9, 0], sizes = [4, 16], strides = [1, 1]} : vector<16x16xf32> to vector<4x16xf32>
    %293 = vector.broadcast %246 : f32 to vector<4x16xf32>
    %294 = arith.mulf %293, %292 : vector<4x16xf32>
    %295 = arith.addf %291, %294 : vector<4x16xf32>
    %296 = vector.extract_strided_slice %279 {offsets = [2, 0], sizes = [4, 16], strides = [1, 1]} : vector<16x16xf32> to vector<4x16xf32>
    %297 = vector.broadcast %226 : f32 to vector<4x16xf32>
    %298 = arith.mulf %297, %296 : vector<4x16xf32>
    %299 = arith.addf %295, %298 : vector<4x16xf32>
    %300 = vector.extract_strided_slice %279 {offsets = [10, 0], sizes = [4, 16], strides = [1, 1]} : vector<16x16xf32> to vector<4x16xf32>
    %301 = vector.broadcast %251 : f32 to vector<4x16xf32>
    %302 = arith.mulf %301, %300 : vector<4x16xf32>
    %303 = arith.addf %299, %302 : vector<4x16xf32>
    %304 = vector.extract_strided_slice %279 {offsets = [3, 0], sizes = [4, 16], strides = [1, 1]} : vector<16x16xf32> to vector<4x16xf32>
    %305 = vector.broadcast %231 : f32 to vector<4x16xf32>
    %306 = arith.mulf %305, %304 : vector<4x16xf32>
    %307 = arith.addf %303, %306 : vector<4x16xf32>
    %308 = vector.extract_strided_slice %279 {offsets = [11, 0], sizes = [4, 16], strides = [1, 1]} : vector<16x16xf32> to vector<4x16xf32>
    %309 = vector.broadcast %256 : f32 to vector<4x16xf32>
    %310 = arith.mulf %309, %308 : vector<4x16xf32>
    %311 = arith.addf %307, %310 : vector<4x16xf32>
    %312 = vector.extract_strided_slice %279 {offsets = [4, 0], sizes = [4, 16], strides = [1, 1]} : vector<16x16xf32> to vector<4x16xf32>
    %313 = vector.broadcast %236 : f32 to vector<4x16xf32>
    %314 = arith.mulf %313, %312 : vector<4x16xf32>
    %315 = arith.addf %311, %314 : vector<4x16xf32>
    %316 = vector.extract_strided_slice %279 {offsets = [12, 0], sizes = [4, 16], strides = [1, 1]} : vector<16x16xf32> to vector<4x16xf32>
    %317 = vector.broadcast %261 : f32 to vector<4x16xf32>
    %318 = arith.mulf %317, %316 : vector<4x16xf32>
    %319 = arith.addf %315, %318 : vector<4x16xf32>
    %c0_205 = arith.constant 0 : index
    %c1_206 = arith.constant 1 : index
    %320 = vector.load %arg4[%c0_205, %c1_206] : memref<16x20xf32, #tpu.memory_space<vmem>>, vector<16x16xf32>
    %321 = vector.extract_strided_slice %320 {offsets = [0, 0], sizes = [4, 16], strides = [1, 1]} : vector<16x16xf32> to vector<4x16xf32>
    %322 = vector.broadcast %217 : f32 to vector<4x16xf32>
    %323 = arith.mulf %322, %321 : vector<4x16xf32>
    %324 = arith.addf %319, %323 : vector<4x16xf32>
    %325 = vector.extract_strided_slice %320 {offsets = [8, 0], sizes = [4, 16], strides = [1, 1]} : vector<16x16xf32> to vector<4x16xf32>
    %326 = vector.broadcast %242 : f32 to vector<4x16xf32>
    %327 = arith.mulf %326, %325 : vector<4x16xf32>
    %328 = arith.addf %324, %327 : vector<4x16xf32>
    %329 = vector.extract_strided_slice %320 {offsets = [1, 0], sizes = [4, 16], strides = [1, 1]} : vector<16x16xf32> to vector<4x16xf32>
    %330 = vector.broadcast %222 : f32 to vector<4x16xf32>
    %331 = arith.mulf %330, %329 : vector<4x16xf32>
    %332 = arith.addf %328, %331 : vector<4x16xf32>
    %333 = vector.extract_strided_slice %320 {offsets = [9, 0], sizes = [4, 16], strides = [1, 1]} : vector<16x16xf32> to vector<4x16xf32>
    %334 = vector.broadcast %247 : f32 to vector<4x16xf32>
    %335 = arith.mulf %334, %333 : vector<4x16xf32>
    %336 = arith.addf %332, %335 : vector<4x16xf32>
    %337 = vector.extract_strided_slice %320 {offsets = [2, 0], sizes = [4, 16], strides = [1, 1]} : vector<16x16xf32> to vector<4x16xf32>
    %338 = vector.broadcast %227 : f32 to vector<4x16xf32>
    %339 = arith.mulf %338, %337 : vector<4x16xf32>
    %340 = arith.addf %336, %339 : vector<4x16xf32>
    %341 = vector.extract_strided_slice %320 {offsets = [10, 0], sizes = [4, 16], strides = [1, 1]} : vector<16x16xf32> to vector<4x16xf32>
    %342 = vector.broadcast %252 : f32 to vector<4x16xf32>
    %343 = arith.mulf %342, %341 : vector<4x16xf32>
    %344 = arith.addf %340, %343 : vector<4x16xf32>
    %345 = vector.extract_strided_slice %320 {offsets = [3, 0], sizes = [4, 16], strides = [1, 1]} : vector<16x16xf32> to vector<4x16xf32>
    %346 = vector.broadcast %232 : f32 to vector<4x16xf32>
    %347 = arith.mulf %346, %345 : vector<4x16xf32>
    %348 = arith.addf %344, %347 : vector<4x16xf32>
    %349 = vector.extract_strided_slice %320 {offsets = [11, 0], sizes = [4, 16], strides = [1, 1]} : vector<16x16xf32> to vector<4x16xf32>
    %350 = vector.broadcast %257 : f32 to vector<4x16xf32>
    %351 = arith.mulf %350, %349 : vector<4x16xf32>
    %352 = arith.addf %348, %351 : vector<4x16xf32>
    %353 = vector.extract_strided_slice %320 {offsets = [4, 0], sizes = [4, 16], strides = [1, 1]} : vector<16x16xf32> to vector<4x16xf32>
    %354 = vector.broadcast %237 : f32 to vector<4x16xf32>
    %355 = arith.mulf %354, %353 : vector<4x16xf32>
    %356 = arith.addf %352, %355 : vector<4x16xf32>
    %357 = vector.extract_strided_slice %320 {offsets = [12, 0], sizes = [4, 16], strides = [1, 1]} : vector<16x16xf32> to vector<4x16xf32>
    %358 = vector.broadcast %262 : f32 to vector<4x16xf32>
    %359 = arith.mulf %358, %357 : vector<4x16xf32>
    %360 = arith.addf %356, %359 : vector<4x16xf32>
    %c0_207 = arith.constant 0 : index
    %c2_208 = arith.constant 2 : index
    %361 = vector.load %arg4[%c0_207, %c2_208] : memref<16x20xf32, #tpu.memory_space<vmem>>, vector<16x16xf32>
    %362 = vector.extract_strided_slice %361 {offsets = [0, 0], sizes = [4, 16], strides = [1, 1]} : vector<16x16xf32> to vector<4x16xf32>
    %363 = vector.broadcast %218 : f32 to vector<4x16xf32>
    %364 = arith.mulf %363, %362 : vector<4x16xf32>
    %365 = arith.addf %360, %364 : vector<4x16xf32>
    %366 = vector.extract_strided_slice %361 {offsets = [8, 0], sizes = [4, 16], strides = [1, 1]} : vector<16x16xf32> to vector<4x16xf32>
    %367 = vector.broadcast %243 : f32 to vector<4x16xf32>
    %368 = arith.mulf %367, %366 : vector<4x16xf32>
    %369 = arith.addf %365, %368 : vector<4x16xf32>
    %370 = vector.extract_strided_slice %361 {offsets = [1, 0], sizes = [4, 16], strides = [1, 1]} : vector<16x16xf32> to vector<4x16xf32>
    %371 = vector.broadcast %223 : f32 to vector<4x16xf32>
    %372 = arith.mulf %371, %370 : vector<4x16xf32>
    %373 = arith.addf %369, %372 : vector<4x16xf32>
    %374 = vector.extract_strided_slice %361 {offsets = [9, 0], sizes = [4, 16], strides = [1, 1]} : vector<16x16xf32> to vector<4x16xf32>
    %375 = vector.broadcast %248 : f32 to vector<4x16xf32>
    %376 = arith.mulf %375, %374 : vector<4x16xf32>
    %377 = arith.addf %373, %376 : vector<4x16xf32>
    %378 = vector.extract_strided_slice %361 {offsets = [2, 0], sizes = [4, 16], strides = [1, 1]} : vector<16x16xf32> to vector<4x16xf32>
    %379 = vector.broadcast %228 : f32 to vector<4x16xf32>
    %380 = arith.mulf %379, %378 : vector<4x16xf32>
    %381 = arith.addf %377, %380 : vector<4x16xf32>
    %382 = vector.extract_strided_slice %361 {offsets = [10, 0], sizes = [4, 16], strides = [1, 1]} : vector<16x16xf32> to vector<4x16xf32>
    %383 = vector.broadcast %253 : f32 to vector<4x16xf32>
    %384 = arith.mulf %383, %382 : vector<4x16xf32>
    %385 = arith.addf %381, %384 : vector<4x16xf32>
    %386 = vector.extract_strided_slice %361 {offsets = [3, 0], sizes = [4, 16], strides = [1, 1]} : vector<16x16xf32> to vector<4x16xf32>
    %387 = vector.broadcast %233 : f32 to vector<4x16xf32>
    %388 = arith.mulf %387, %386 : vector<4x16xf32>
    %389 = arith.addf %385, %388 : vector<4x16xf32>
    %390 = vector.extract_strided_slice %361 {offsets = [11, 0], sizes = [4, 16], strides = [1, 1]} : vector<16x16xf32> to vector<4x16xf32>
    %391 = vector.broadcast %258 : f32 to vector<4x16xf32>
    %392 = arith.mulf %391, %390 : vector<4x16xf32>
    %393 = arith.addf %389, %392 : vector<4x16xf32>
    %394 = vector.extract_strided_slice %361 {offsets = [4, 0], sizes = [4, 16], strides = [1, 1]} : vector<16x16xf32> to vector<4x16xf32>
    %395 = vector.broadcast %238 : f32 to vector<4x16xf32>
    %396 = arith.mulf %395, %394 : vector<4x16xf32>
    %397 = arith.addf %393, %396 : vector<4x16xf32>
    %398 = vector.extract_strided_slice %361 {offsets = [12, 0], sizes = [4, 16], strides = [1, 1]} : vector<16x16xf32> to vector<4x16xf32>
    %399 = vector.broadcast %263 : f32 to vector<4x16xf32>
    %400 = arith.mulf %399, %398 : vector<4x16xf32>
    %401 = arith.addf %397, %400 : vector<4x16xf32>
    %c0_209 = arith.constant 0 : index
    %c3_210 = arith.constant 3 : index
    %402 = vector.load %arg4[%c0_209, %c3_210] : memref<16x20xf32, #tpu.memory_space<vmem>>, vector<16x16xf32>
    %403 = vector.extract_strided_slice %402 {offsets = [0, 0], sizes = [4, 16], strides = [1, 1]} : vector<16x16xf32> to vector<4x16xf32>
    %404 = vector.broadcast %219 : f32 to vector<4x16xf32>
    %405 = arith.mulf %404, %403 : vector<4x16xf32>
    %406 = arith.addf %401, %405 : vector<4x16xf32>
    %407 = vector.extract_strided_slice %402 {offsets = [8, 0], sizes = [4, 16], strides = [1, 1]} : vector<16x16xf32> to vector<4x16xf32>
    %408 = vector.broadcast %244 : f32 to vector<4x16xf32>
    %409 = arith.mulf %408, %407 : vector<4x16xf32>
    %410 = arith.addf %406, %409 : vector<4x16xf32>
    %411 = vector.extract_strided_slice %402 {offsets = [1, 0], sizes = [4, 16], strides = [1, 1]} : vector<16x16xf32> to vector<4x16xf32>
    %412 = vector.broadcast %224 : f32 to vector<4x16xf32>
    %413 = arith.mulf %412, %411 : vector<4x16xf32>
    %414 = arith.addf %410, %413 : vector<4x16xf32>
    %415 = vector.extract_strided_slice %402 {offsets = [9, 0], sizes = [4, 16], strides = [1, 1]} : vector<16x16xf32> to vector<4x16xf32>
    %416 = vector.broadcast %249 : f32 to vector<4x16xf32>
    %417 = arith.mulf %416, %415 : vector<4x16xf32>
    %418 = arith.addf %414, %417 : vector<4x16xf32>
    %419 = vector.extract_strided_slice %402 {offsets = [2, 0], sizes = [4, 16], strides = [1, 1]} : vector<16x16xf32> to vector<4x16xf32>
    %420 = vector.broadcast %229 : f32 to vector<4x16xf32>
    %421 = arith.mulf %420, %419 : vector<4x16xf32>
    %422 = arith.addf %418, %421 : vector<4x16xf32>
    %423 = vector.extract_strided_slice %402 {offsets = [10, 0], sizes = [4, 16], strides = [1, 1]} : vector<16x16xf32> to vector<4x16xf32>
    %424 = vector.broadcast %254 : f32 to vector<4x16xf32>
    %425 = arith.mulf %424, %423 : vector<4x16xf32>
    %426 = arith.addf %422, %425 : vector<4x16xf32>
    %427 = vector.extract_strided_slice %402 {offsets = [3, 0], sizes = [4, 16], strides = [1, 1]} : vector<16x16xf32> to vector<4x16xf32>
    %428 = vector.broadcast %234 : f32 to vector<4x16xf32>
    %429 = arith.mulf %428, %427 : vector<4x16xf32>
    %430 = arith.addf %426, %429 : vector<4x16xf32>
    %431 = vector.extract_strided_slice %402 {offsets = [11, 0], sizes = [4, 16], strides = [1, 1]} : vector<16x16xf32> to vector<4x16xf32>
    %432 = vector.broadcast %259 : f32 to vector<4x16xf32>
    %433 = arith.mulf %432, %431 : vector<4x16xf32>
    %434 = arith.addf %430, %433 : vector<4x16xf32>
    %435 = vector.extract_strided_slice %402 {offsets = [4, 0], sizes = [4, 16], strides = [1, 1]} : vector<16x16xf32> to vector<4x16xf32>
    %436 = vector.broadcast %239 : f32 to vector<4x16xf32>
    %437 = arith.mulf %436, %435 : vector<4x16xf32>
    %438 = arith.addf %434, %437 : vector<4x16xf32>
    %439 = vector.extract_strided_slice %402 {offsets = [12, 0], sizes = [4, 16], strides = [1, 1]} : vector<16x16xf32> to vector<4x16xf32>
    %440 = vector.broadcast %264 : f32 to vector<4x16xf32>
    %441 = arith.mulf %440, %439 : vector<4x16xf32>
    %442 = arith.addf %438, %441 : vector<4x16xf32>
    %c0_211 = arith.constant 0 : index
    %c4_212 = arith.constant 4 : index
    %443 = vector.load %arg4[%c0_211, %c4_212] : memref<16x20xf32, #tpu.memory_space<vmem>>, vector<16x16xf32>
    %444 = vector.extract_strided_slice %443 {offsets = [0, 0], sizes = [4, 16], strides = [1, 1]} : vector<16x16xf32> to vector<4x16xf32>
    %445 = vector.broadcast %220 : f32 to vector<4x16xf32>
    %446 = arith.mulf %445, %444 : vector<4x16xf32>
    %447 = arith.addf %442, %446 : vector<4x16xf32>
    %448 = vector.extract_strided_slice %443 {offsets = [8, 0], sizes = [4, 16], strides = [1, 1]} : vector<16x16xf32> to vector<4x16xf32>
    %449 = vector.broadcast %245 : f32 to vector<4x16xf32>
    %450 = arith.mulf %449, %448 : vector<4x16xf32>
    %451 = arith.addf %447, %450 : vector<4x16xf32>
    %452 = vector.extract_strided_slice %443 {offsets = [1, 0], sizes = [4, 16], strides = [1, 1]} : vector<16x16xf32> to vector<4x16xf32>
    %453 = vector.broadcast %225 : f32 to vector<4x16xf32>
    %454 = arith.mulf %453, %452 : vector<4x16xf32>
    %455 = arith.addf %451, %454 : vector<4x16xf32>
    %456 = vector.extract_strided_slice %443 {offsets = [9, 0], sizes = [4, 16], strides = [1, 1]} : vector<16x16xf32> to vector<4x16xf32>
    %457 = vector.broadcast %250 : f32 to vector<4x16xf32>
    %458 = arith.mulf %457, %456 : vector<4x16xf32>
    %459 = arith.addf %455, %458 : vector<4x16xf32>
    %460 = vector.extract_strided_slice %443 {offsets = [2, 0], sizes = [4, 16], strides = [1, 1]} : vector<16x16xf32> to vector<4x16xf32>
    %461 = vector.broadcast %230 : f32 to vector<4x16xf32>
    %462 = arith.mulf %461, %460 : vector<4x16xf32>
    %463 = arith.addf %459, %462 : vector<4x16xf32>
    %464 = vector.extract_strided_slice %443 {offsets = [10, 0], sizes = [4, 16], strides = [1, 1]} : vector<16x16xf32> to vector<4x16xf32>
    %465 = vector.broadcast %255 : f32 to vector<4x16xf32>
    %466 = arith.mulf %465, %464 : vector<4x16xf32>
    %467 = arith.addf %463, %466 : vector<4x16xf32>
    %468 = vector.extract_strided_slice %443 {offsets = [3, 0], sizes = [4, 16], strides = [1, 1]} : vector<16x16xf32> to vector<4x16xf32>
    %469 = vector.broadcast %235 : f32 to vector<4x16xf32>
    %470 = arith.mulf %469, %468 : vector<4x16xf32>
    %471 = arith.addf %467, %470 : vector<4x16xf32>
    %472 = vector.extract_strided_slice %443 {offsets = [11, 0], sizes = [4, 16], strides = [1, 1]} : vector<16x16xf32> to vector<4x16xf32>
    %473 = vector.broadcast %260 : f32 to vector<4x16xf32>
    %474 = arith.mulf %473, %472 : vector<4x16xf32>
    %475 = arith.addf %471, %474 : vector<4x16xf32>
    %476 = vector.extract_strided_slice %443 {offsets = [4, 0], sizes = [4, 16], strides = [1, 1]} : vector<16x16xf32> to vector<4x16xf32>
    %477 = vector.broadcast %240 : f32 to vector<4x16xf32>
    %478 = arith.mulf %477, %476 : vector<4x16xf32>
    %479 = arith.addf %475, %478 : vector<4x16xf32>
    %480 = vector.extract_strided_slice %443 {offsets = [12, 0], sizes = [4, 16], strides = [1, 1]} : vector<16x16xf32> to vector<4x16xf32>
    %481 = vector.broadcast %265 : f32 to vector<4x16xf32>
    %482 = arith.mulf %481, %480 : vector<4x16xf32>
    %483 = arith.addf %479, %482 : vector<4x16xf32>
    %cst_213 = arith.constant 0.000000e+00 : f32
    %484 = vector.broadcast %cst_213 : f32 to vector<4x16xf32>
    %485 = arith.maximumf %483, %484 : vector<4x16xf32>
    %cst_214 = arith.constant 0.000000e+00 : f32
    %486 = vector.broadcast %cst_214 : f32 to vector<4x16xf32>
    %487 = arith.subf %486, %485 : vector<4x16xf32>
    %488 = math.exp %487 : vector<4x16xf32>
    %cst_215 = arith.constant 1.000000e+00 : f32
    %489 = vector.broadcast %cst_215 : f32 to vector<4x16xf32>
    %490 = arith.addf %489, %488 : vector<4x16xf32>
    %cst_216 = arith.constant 1.000000e+00 : f32
    %491 = vector.broadcast %cst_216 : f32 to vector<4x16xf32>
    %492 = arith.divf %491, %490 : vector<4x16xf32>
    %493 = arith.mulf %485, %492 : vector<4x16xf32>
    %c1_217 = arith.constant 1 : index
    %c0_218 = arith.constant 0 : index
    %494 = memref.load %arg1[%c1_217, %c0_218] : memref<3x50xf32, #tpu.memory_space<smem>>
    %c1_219 = arith.constant 1 : index
    %c1_220 = arith.constant 1 : index
    %495 = memref.load %arg1[%c1_219, %c1_220] : memref<3x50xf32, #tpu.memory_space<smem>>
    %c1_221 = arith.constant 1 : index
    %c2_222 = arith.constant 2 : index
    %496 = memref.load %arg1[%c1_221, %c2_222] : memref<3x50xf32, #tpu.memory_space<smem>>
    %c1_223 = arith.constant 1 : index
    %c3_224 = arith.constant 3 : index
    %497 = memref.load %arg1[%c1_223, %c3_224] : memref<3x50xf32, #tpu.memory_space<smem>>
    %c1_225 = arith.constant 1 : index
    %c4_226 = arith.constant 4 : index
    %498 = memref.load %arg1[%c1_225, %c4_226] : memref<3x50xf32, #tpu.memory_space<smem>>
    %c1_227 = arith.constant 1 : index
    %c5_228 = arith.constant 5 : index
    %499 = memref.load %arg1[%c1_227, %c5_228] : memref<3x50xf32, #tpu.memory_space<smem>>
    %c1_229 = arith.constant 1 : index
    %c6_230 = arith.constant 6 : index
    %500 = memref.load %arg1[%c1_229, %c6_230] : memref<3x50xf32, #tpu.memory_space<smem>>
    %c1_231 = arith.constant 1 : index
    %c7_232 = arith.constant 7 : index
    %501 = memref.load %arg1[%c1_231, %c7_232] : memref<3x50xf32, #tpu.memory_space<smem>>
    %c1_233 = arith.constant 1 : index
    %c8_234 = arith.constant 8 : index
    %502 = memref.load %arg1[%c1_233, %c8_234] : memref<3x50xf32, #tpu.memory_space<smem>>
    %c1_235 = arith.constant 1 : index
    %c9_236 = arith.constant 9 : index
    %503 = memref.load %arg1[%c1_235, %c9_236] : memref<3x50xf32, #tpu.memory_space<smem>>
    %c1_237 = arith.constant 1 : index
    %c10_238 = arith.constant 10 : index
    %504 = memref.load %arg1[%c1_237, %c10_238] : memref<3x50xf32, #tpu.memory_space<smem>>
    %c1_239 = arith.constant 1 : index
    %c11_240 = arith.constant 11 : index
    %505 = memref.load %arg1[%c1_239, %c11_240] : memref<3x50xf32, #tpu.memory_space<smem>>
    %c1_241 = arith.constant 1 : index
    %c12_242 = arith.constant 12 : index
    %506 = memref.load %arg1[%c1_241, %c12_242] : memref<3x50xf32, #tpu.memory_space<smem>>
    %c1_243 = arith.constant 1 : index
    %c13_244 = arith.constant 13 : index
    %507 = memref.load %arg1[%c1_243, %c13_244] : memref<3x50xf32, #tpu.memory_space<smem>>
    %c1_245 = arith.constant 1 : index
    %c14_246 = arith.constant 14 : index
    %508 = memref.load %arg1[%c1_245, %c14_246] : memref<3x50xf32, #tpu.memory_space<smem>>
    %c1_247 = arith.constant 1 : index
    %c15_248 = arith.constant 15 : index
    %509 = memref.load %arg1[%c1_247, %c15_248] : memref<3x50xf32, #tpu.memory_space<smem>>
    %c1_249 = arith.constant 1 : index
    %c16_250 = arith.constant 16 : index
    %510 = memref.load %arg1[%c1_249, %c16_250] : memref<3x50xf32, #tpu.memory_space<smem>>
    %c1_251 = arith.constant 1 : index
    %c17_252 = arith.constant 17 : index
    %511 = memref.load %arg1[%c1_251, %c17_252] : memref<3x50xf32, #tpu.memory_space<smem>>
    %c1_253 = arith.constant 1 : index
    %c18_254 = arith.constant 18 : index
    %512 = memref.load %arg1[%c1_253, %c18_254] : memref<3x50xf32, #tpu.memory_space<smem>>
    %c1_255 = arith.constant 1 : index
    %c19_256 = arith.constant 19 : index
    %513 = memref.load %arg1[%c1_255, %c19_256] : memref<3x50xf32, #tpu.memory_space<smem>>
    %c1_257 = arith.constant 1 : index
    %c20_258 = arith.constant 20 : index
    %514 = memref.load %arg1[%c1_257, %c20_258] : memref<3x50xf32, #tpu.memory_space<smem>>
    %c1_259 = arith.constant 1 : index
    %c21_260 = arith.constant 21 : index
    %515 = memref.load %arg1[%c1_259, %c21_260] : memref<3x50xf32, #tpu.memory_space<smem>>
    %c1_261 = arith.constant 1 : index
    %c22_262 = arith.constant 22 : index
    %516 = memref.load %arg1[%c1_261, %c22_262] : memref<3x50xf32, #tpu.memory_space<smem>>
    %c1_263 = arith.constant 1 : index
    %c23_264 = arith.constant 23 : index
    %517 = memref.load %arg1[%c1_263, %c23_264] : memref<3x50xf32, #tpu.memory_space<smem>>
    %c1_265 = arith.constant 1 : index
    %c24_266 = arith.constant 24 : index
    %518 = memref.load %arg1[%c1_265, %c24_266] : memref<3x50xf32, #tpu.memory_space<smem>>
    %c1_267 = arith.constant 1 : index
    %c25_268 = arith.constant 25 : index
    %519 = memref.load %arg1[%c1_267, %c25_268] : memref<3x50xf32, #tpu.memory_space<smem>>
    %c1_269 = arith.constant 1 : index
    %c26_270 = arith.constant 26 : index
    %520 = memref.load %arg1[%c1_269, %c26_270] : memref<3x50xf32, #tpu.memory_space<smem>>
    %c1_271 = arith.constant 1 : index
    %c27_272 = arith.constant 27 : index
    %521 = memref.load %arg1[%c1_271, %c27_272] : memref<3x50xf32, #tpu.memory_space<smem>>
    %c1_273 = arith.constant 1 : index
    %c28_274 = arith.constant 28 : index
    %522 = memref.load %arg1[%c1_273, %c28_274] : memref<3x50xf32, #tpu.memory_space<smem>>
    %c1_275 = arith.constant 1 : index
    %c29_276 = arith.constant 29 : index
    %523 = memref.load %arg1[%c1_275, %c29_276] : memref<3x50xf32, #tpu.memory_space<smem>>
    %c1_277 = arith.constant 1 : index
    %c30_278 = arith.constant 30 : index
    %524 = memref.load %arg1[%c1_277, %c30_278] : memref<3x50xf32, #tpu.memory_space<smem>>
    %c1_279 = arith.constant 1 : index
    %c31_280 = arith.constant 31 : index
    %525 = memref.load %arg1[%c1_279, %c31_280] : memref<3x50xf32, #tpu.memory_space<smem>>
    %c1_281 = arith.constant 1 : index
    %c32_282 = arith.constant 32 : index
    %526 = memref.load %arg1[%c1_281, %c32_282] : memref<3x50xf32, #tpu.memory_space<smem>>
    %c1_283 = arith.constant 1 : index
    %c33_284 = arith.constant 33 : index
    %527 = memref.load %arg1[%c1_283, %c33_284] : memref<3x50xf32, #tpu.memory_space<smem>>
    %c1_285 = arith.constant 1 : index
    %c34_286 = arith.constant 34 : index
    %528 = memref.load %arg1[%c1_285, %c34_286] : memref<3x50xf32, #tpu.memory_space<smem>>
    %c1_287 = arith.constant 1 : index
    %c35_288 = arith.constant 35 : index
    %529 = memref.load %arg1[%c1_287, %c35_288] : memref<3x50xf32, #tpu.memory_space<smem>>
    %c1_289 = arith.constant 1 : index
    %c36_290 = arith.constant 36 : index
    %530 = memref.load %arg1[%c1_289, %c36_290] : memref<3x50xf32, #tpu.memory_space<smem>>
    %c1_291 = arith.constant 1 : index
    %c37_292 = arith.constant 37 : index
    %531 = memref.load %arg1[%c1_291, %c37_292] : memref<3x50xf32, #tpu.memory_space<smem>>
    %c1_293 = arith.constant 1 : index
    %c38_294 = arith.constant 38 : index
    %532 = memref.load %arg1[%c1_293, %c38_294] : memref<3x50xf32, #tpu.memory_space<smem>>
    %c1_295 = arith.constant 1 : index
    %c39_296 = arith.constant 39 : index
    %533 = memref.load %arg1[%c1_295, %c39_296] : memref<3x50xf32, #tpu.memory_space<smem>>
    %c1_297 = arith.constant 1 : index
    %c40_298 = arith.constant 40 : index
    %534 = memref.load %arg1[%c1_297, %c40_298] : memref<3x50xf32, #tpu.memory_space<smem>>
    %c1_299 = arith.constant 1 : index
    %c41_300 = arith.constant 41 : index
    %535 = memref.load %arg1[%c1_299, %c41_300] : memref<3x50xf32, #tpu.memory_space<smem>>
    %c1_301 = arith.constant 1 : index
    %c42_302 = arith.constant 42 : index
    %536 = memref.load %arg1[%c1_301, %c42_302] : memref<3x50xf32, #tpu.memory_space<smem>>
    %c1_303 = arith.constant 1 : index
    %c43_304 = arith.constant 43 : index
    %537 = memref.load %arg1[%c1_303, %c43_304] : memref<3x50xf32, #tpu.memory_space<smem>>
    %c1_305 = arith.constant 1 : index
    %c44_306 = arith.constant 44 : index
    %538 = memref.load %arg1[%c1_305, %c44_306] : memref<3x50xf32, #tpu.memory_space<smem>>
    %c1_307 = arith.constant 1 : index
    %c45_308 = arith.constant 45 : index
    %539 = memref.load %arg1[%c1_307, %c45_308] : memref<3x50xf32, #tpu.memory_space<smem>>
    %c1_309 = arith.constant 1 : index
    %c46_310 = arith.constant 46 : index
    %540 = memref.load %arg1[%c1_309, %c46_310] : memref<3x50xf32, #tpu.memory_space<smem>>
    %c1_311 = arith.constant 1 : index
    %c47_312 = arith.constant 47 : index
    %541 = memref.load %arg1[%c1_311, %c47_312] : memref<3x50xf32, #tpu.memory_space<smem>>
    %c1_313 = arith.constant 1 : index
    %c48_314 = arith.constant 48 : index
    %542 = memref.load %arg1[%c1_313, %c48_314] : memref<3x50xf32, #tpu.memory_space<smem>>
    %c1_315 = arith.constant 1 : index
    %c49_316 = arith.constant 49 : index
    %543 = memref.load %arg1[%c1_315, %c49_316] : memref<3x50xf32, #tpu.memory_space<smem>>
    %cst_317 = arith.constant 0.000000e+00 : f32
    %544 = vector.broadcast %cst_317 : f32 to vector<2x20xf32>
    %c0_318 = arith.constant 0 : index
    %c0_319 = arith.constant 0 : index
    %545 = vector.load %arg5[%c0_318, %c0_319] : memref<16x20xf32, #tpu.memory_space<vmem>>, vector<2x20xf32>
    tpu.vector_store %arg5[%c0_318, %c0_319], %544 {strides = array<i32>} : memref<16x20xf32, #tpu.memory_space<vmem>>, vector<2x20xf32>,
    %cst_320 = arith.constant 0.000000e+00 : f32
    %546 = vector.broadcast %cst_320 : f32 to vector<4x20xf32>
    %c6_321 = arith.constant 6 : index
    %c0_322 = arith.constant 0 : index
    %547 = vector.load %arg5[%c6_321, %c0_322] : memref<16x20xf32, #tpu.memory_space<vmem>>, vector<4x20xf32>
    tpu.vector_store %arg5[%c6_321, %c0_322], %546 {strides = array<i32>} : memref<16x20xf32, #tpu.memory_space<vmem>>, vector<4x20xf32>,
    %cst_323 = arith.constant 0.000000e+00 : f32
    %548 = vector.broadcast %cst_323 : f32 to vector<2x20xf32>
    %c14_324 = arith.constant 14 : index
    %c0_325 = arith.constant 0 : index
    %549 = vector.load %arg5[%c14_324, %c0_325] : memref<16x20xf32, #tpu.memory_space<vmem>>, vector<2x20xf32>
    tpu.vector_store %arg5[%c14_324, %c0_325], %548 {strides = array<i32>} : memref<16x20xf32, #tpu.memory_space<vmem>>, vector<2x20xf32>,
    %cst_326 = arith.constant 0.000000e+00 : f32
    %550 = vector.broadcast %cst_326 : f32 to vector<16x2xf32>
    %c0_327 = arith.constant 0 : index
    %c0_328 = arith.constant 0 : index
    %551 = vector.load %arg5[%c0_327, %c0_328] : memref<16x20xf32, #tpu.memory_space<vmem>>, vector<16x2xf32>
    tpu.vector_store %arg5[%c0_327, %c0_328], %550 {strides = array<i32>} : memref<16x20xf32, #tpu.memory_space<vmem>>, vector<16x2xf32>,
    %cst_329 = arith.constant 0.000000e+00 : f32
    %552 = vector.broadcast %cst_329 : f32 to vector<16x2xf32>
    %c0_330 = arith.constant 0 : index
    %c18_331 = arith.constant 18 : index
    %553 = vector.load %arg5[%c0_330, %c18_331] : memref<16x20xf32, #tpu.memory_space<vmem>>, vector<16x2xf32>
    tpu.vector_store %arg5[%c0_330, %c18_331], %552 {strides = array<i32>} : memref<16x20xf32, #tpu.memory_space<vmem>>, vector<16x2xf32>,
    %c2_332 = arith.constant 2 : index
    %c2_333 = arith.constant 2 : index
    %554 = vector.load %arg5[%c2_332, %c2_333] : memref<16x20xf32, #tpu.memory_space<vmem>>, vector<4x16xf32>
    tpu.vector_store %arg5[%c2_332, %c2_333], %208 {strides = array<i32>} : memref<16x20xf32, #tpu.memory_space<vmem>>, vector<4x16xf32>,
    %c10_334 = arith.constant 10 : index
    %c2_335 = arith.constant 2 : index
    %555 = vector.load %arg5[%c10_334, %c2_335] : memref<16x20xf32, #tpu.memory_space<vmem>>, vector<4x16xf32>
    tpu.vector_store %arg5[%c10_334, %c2_335], %211 {strides = array<i32>} : memref<16x20xf32, #tpu.memory_space<vmem>>, vector<4x16xf32>,
    %cst_336 = arith.constant 0.000000e+00 : f32
    %556 = vector.broadcast %cst_336 : f32 to vector<4x16xf32>
    %c0_337 = arith.constant 0 : index
    %c0_338 = arith.constant 0 : index
    %557 = vector.load %arg5[%c0_337, %c0_338] : memref<16x20xf32, #tpu.memory_space<vmem>>, vector<16x16xf32>
    %558 = vector.extract_strided_slice %557 {offsets = [0, 0], sizes = [4, 16], strides = [1, 1]} : vector<16x16xf32> to vector<4x16xf32>
    %559 = vector.broadcast %494 : f32 to vector<4x16xf32>
    %560 = arith.mulf %559, %558 : vector<4x16xf32>
    %561 = arith.addf %556, %560 : vector<4x16xf32>
    %562 = vector.extract_strided_slice %557 {offsets = [8, 0], sizes = [4, 16], strides = [1, 1]} : vector<16x16xf32> to vector<4x16xf32>
    %563 = vector.broadcast %519 : f32 to vector<4x16xf32>
    %564 = arith.mulf %563, %562 : vector<4x16xf32>
    %565 = arith.addf %561, %564 : vector<4x16xf32>
    %566 = vector.extract_strided_slice %557 {offsets = [1, 0], sizes = [4, 16], strides = [1, 1]} : vector<16x16xf32> to vector<4x16xf32>
    %567 = vector.broadcast %499 : f32 to vector<4x16xf32>
    %568 = arith.mulf %567, %566 : vector<4x16xf32>
    %569 = arith.addf %565, %568 : vector<4x16xf32>
    %570 = vector.extract_strided_slice %557 {offsets = [9, 0], sizes = [4, 16], strides = [1, 1]} : vector<16x16xf32> to vector<4x16xf32>
    %571 = vector.broadcast %524 : f32 to vector<4x16xf32>
    %572 = arith.mulf %571, %570 : vector<4x16xf32>
    %573 = arith.addf %569, %572 : vector<4x16xf32>
    %574 = vector.extract_strided_slice %557 {offsets = [2, 0], sizes = [4, 16], strides = [1, 1]} : vector<16x16xf32> to vector<4x16xf32>
    %575 = vector.broadcast %504 : f32 to vector<4x16xf32>
    %576 = arith.mulf %575, %574 : vector<4x16xf32>
    %577 = arith.addf %573, %576 : vector<4x16xf32>
    %578 = vector.extract_strided_slice %557 {offsets = [10, 0], sizes = [4, 16], strides = [1, 1]} : vector<16x16xf32> to vector<4x16xf32>
    %579 = vector.broadcast %529 : f32 to vector<4x16xf32>
    %580 = arith.mulf %579, %578 : vector<4x16xf32>
    %581 = arith.addf %577, %580 : vector<4x16xf32>
    %582 = vector.extract_strided_slice %557 {offsets = [3, 0], sizes = [4, 16], strides = [1, 1]} : vector<16x16xf32> to vector<4x16xf32>
    %583 = vector.broadcast %509 : f32 to vector<4x16xf32>
    %584 = arith.mulf %583, %582 : vector<4x16xf32>
    %585 = arith.addf %581, %584 : vector<4x16xf32>
    %586 = vector.extract_strided_slice %557 {offsets = [11, 0], sizes = [4, 16], strides = [1, 1]} : vector<16x16xf32> to vector<4x16xf32>
    %587 = vector.broadcast %534 : f32 to vector<4x16xf32>
    %588 = arith.mulf %587, %586 : vector<4x16xf32>
    %589 = arith.addf %585, %588 : vector<4x16xf32>
    %590 = vector.extract_strided_slice %557 {offsets = [4, 0], sizes = [4, 16], strides = [1, 1]} : vector<16x16xf32> to vector<4x16xf32>
    %591 = vector.broadcast %514 : f32 to vector<4x16xf32>
    %592 = arith.mulf %591, %590 : vector<4x16xf32>
    %593 = arith.addf %589, %592 : vector<4x16xf32>
    %594 = vector.extract_strided_slice %557 {offsets = [12, 0], sizes = [4, 16], strides = [1, 1]} : vector<16x16xf32> to vector<4x16xf32>
    %595 = vector.broadcast %539 : f32 to vector<4x16xf32>
    %596 = arith.mulf %595, %594 : vector<4x16xf32>
    %597 = arith.addf %593, %596 : vector<4x16xf32>
    %c0_339 = arith.constant 0 : index
    %c1_340 = arith.constant 1 : index
    %598 = vector.load %arg5[%c0_339, %c1_340] : memref<16x20xf32, #tpu.memory_space<vmem>>, vector<16x16xf32>
    %599 = vector.extract_strided_slice %598 {offsets = [0, 0], sizes = [4, 16], strides = [1, 1]} : vector<16x16xf32> to vector<4x16xf32>
    %600 = vector.broadcast %495 : f32 to vector<4x16xf32>
    %601 = arith.mulf %600, %599 : vector<4x16xf32>
    %602 = arith.addf %597, %601 : vector<4x16xf32>
    %603 = vector.extract_strided_slice %598 {offsets = [8, 0], sizes = [4, 16], strides = [1, 1]} : vector<16x16xf32> to vector<4x16xf32>
    %604 = vector.broadcast %520 : f32 to vector<4x16xf32>
    %605 = arith.mulf %604, %603 : vector<4x16xf32>
    %606 = arith.addf %602, %605 : vector<4x16xf32>
    %607 = vector.extract_strided_slice %598 {offsets = [1, 0], sizes = [4, 16], strides = [1, 1]} : vector<16x16xf32> to vector<4x16xf32>
    %608 = vector.broadcast %500 : f32 to vector<4x16xf32>
    %609 = arith.mulf %608, %607 : vector<4x16xf32>
    %610 = arith.addf %606, %609 : vector<4x16xf32>
    %611 = vector.extract_strided_slice %598 {offsets = [9, 0], sizes = [4, 16], strides = [1, 1]} : vector<16x16xf32> to vector<4x16xf32>
    %612 = vector.broadcast %525 : f32 to vector<4x16xf32>
    %613 = arith.mulf %612, %611 : vector<4x16xf32>
    %614 = arith.addf %610, %613 : vector<4x16xf32>
    %615 = vector.extract_strided_slice %598 {offsets = [2, 0], sizes = [4, 16], strides = [1, 1]} : vector<16x16xf32> to vector<4x16xf32>
    %616 = vector.broadcast %505 : f32 to vector<4x16xf32>
    %617 = arith.mulf %616, %615 : vector<4x16xf32>
    %618 = arith.addf %614, %617 : vector<4x16xf32>
    %619 = vector.extract_strided_slice %598 {offsets = [10, 0], sizes = [4, 16], strides = [1, 1]} : vector<16x16xf32> to vector<4x16xf32>
    %620 = vector.broadcast %530 : f32 to vector<4x16xf32>
    %621 = arith.mulf %620, %619 : vector<4x16xf32>
    %622 = arith.addf %618, %621 : vector<4x16xf32>
    %623 = vector.extract_strided_slice %598 {offsets = [3, 0], sizes = [4, 16], strides = [1, 1]} : vector<16x16xf32> to vector<4x16xf32>
    %624 = vector.broadcast %510 : f32 to vector<4x16xf32>
    %625 = arith.mulf %624, %623 : vector<4x16xf32>
    %626 = arith.addf %622, %625 : vector<4x16xf32>
    %627 = vector.extract_strided_slice %598 {offsets = [11, 0], sizes = [4, 16], strides = [1, 1]} : vector<16x16xf32> to vector<4x16xf32>
    %628 = vector.broadcast %535 : f32 to vector<4x16xf32>
    %629 = arith.mulf %628, %627 : vector<4x16xf32>
    %630 = arith.addf %626, %629 : vector<4x16xf32>
    %631 = vector.extract_strided_slice %598 {offsets = [4, 0], sizes = [4, 16], strides = [1, 1]} : vector<16x16xf32> to vector<4x16xf32>
    %632 = vector.broadcast %515 : f32 to vector<4x16xf32>
    %633 = arith.mulf %632, %631 : vector<4x16xf32>
    %634 = arith.addf %630, %633 : vector<4x16xf32>
    %635 = vector.extract_strided_slice %598 {offsets = [12, 0], sizes = [4, 16], strides = [1, 1]} : vector<16x16xf32> to vector<4x16xf32>
    %636 = vector.broadcast %540 : f32 to vector<4x16xf32>
    %637 = arith.mulf %636, %635 : vector<4x16xf32>
    %638 = arith.addf %634, %637 : vector<4x16xf32>
    %c0_341 = arith.constant 0 : index
    %c2_342 = arith.constant 2 : index
    %639 = vector.load %arg5[%c0_341, %c2_342] : memref<16x20xf32, #tpu.memory_space<vmem>>, vector<16x16xf32>
    %640 = vector.extract_strided_slice %639 {offsets = [0, 0], sizes = [4, 16], strides = [1, 1]} : vector<16x16xf32> to vector<4x16xf32>
    %641 = vector.broadcast %496 : f32 to vector<4x16xf32>
    %642 = arith.mulf %641, %640 : vector<4x16xf32>
    %643 = arith.addf %638, %642 : vector<4x16xf32>
    %644 = vector.extract_strided_slice %639 {offsets = [8, 0], sizes = [4, 16], strides = [1, 1]} : vector<16x16xf32> to vector<4x16xf32>
    %645 = vector.broadcast %521 : f32 to vector<4x16xf32>
    %646 = arith.mulf %645, %644 : vector<4x16xf32>
    %647 = arith.addf %643, %646 : vector<4x16xf32>
    %648 = vector.extract_strided_slice %639 {offsets = [1, 0], sizes = [4, 16], strides = [1, 1]} : vector<16x16xf32> to vector<4x16xf32>
    %649 = vector.broadcast %501 : f32 to vector<4x16xf32>
    %650 = arith.mulf %649, %648 : vector<4x16xf32>
    %651 = arith.addf %647, %650 : vector<4x16xf32>
    %652 = vector.extract_strided_slice %639 {offsets = [9, 0], sizes = [4, 16], strides = [1, 1]} : vector<16x16xf32> to vector<4x16xf32>
    %653 = vector.broadcast %526 : f32 to vector<4x16xf32>
    %654 = arith.mulf %653, %652 : vector<4x16xf32>
    %655 = arith.addf %651, %654 : vector<4x16xf32>
    %656 = vector.extract_strided_slice %639 {offsets = [2, 0], sizes = [4, 16], strides = [1, 1]} : vector<16x16xf32> to vector<4x16xf32>
    %657 = vector.broadcast %506 : f32 to vector<4x16xf32>
    %658 = arith.mulf %657, %656 : vector<4x16xf32>
    %659 = arith.addf %655, %658 : vector<4x16xf32>
    %660 = vector.extract_strided_slice %639 {offsets = [10, 0], sizes = [4, 16], strides = [1, 1]} : vector<16x16xf32> to vector<4x16xf32>
    %661 = vector.broadcast %531 : f32 to vector<4x16xf32>
    %662 = arith.mulf %661, %660 : vector<4x16xf32>
    %663 = arith.addf %659, %662 : vector<4x16xf32>
    %664 = vector.extract_strided_slice %639 {offsets = [3, 0], sizes = [4, 16], strides = [1, 1]} : vector<16x16xf32> to vector<4x16xf32>
    %665 = vector.broadcast %511 : f32 to vector<4x16xf32>
    %666 = arith.mulf %665, %664 : vector<4x16xf32>
    %667 = arith.addf %663, %666 : vector<4x16xf32>
    %668 = vector.extract_strided_slice %639 {offsets = [11, 0], sizes = [4, 16], strides = [1, 1]} : vector<16x16xf32> to vector<4x16xf32>
    %669 = vector.broadcast %536 : f32 to vector<4x16xf32>
    %670 = arith.mulf %669, %668 : vector<4x16xf32>
    %671 = arith.addf %667, %670 : vector<4x16xf32>
    %672 = vector.extract_strided_slice %639 {offsets = [4, 0], sizes = [4, 16], strides = [1, 1]} : vector<16x16xf32> to vector<4x16xf32>
    %673 = vector.broadcast %516 : f32 to vector<4x16xf32>
    %674 = arith.mulf %673, %672 : vector<4x16xf32>
    %675 = arith.addf %671, %674 : vector<4x16xf32>
    %676 = vector.extract_strided_slice %639 {offsets = [12, 0], sizes = [4, 16], strides = [1, 1]} : vector<16x16xf32> to vector<4x16xf32>
    %677 = vector.broadcast %541 : f32 to vector<4x16xf32>
    %678 = arith.mulf %677, %676 : vector<4x16xf32>
    %679 = arith.addf %675, %678 : vector<4x16xf32>
    %c0_343 = arith.constant 0 : index
    %c3_344 = arith.constant 3 : index
    %680 = vector.load %arg5[%c0_343, %c3_344] : memref<16x20xf32, #tpu.memory_space<vmem>>, vector<16x16xf32>
    %681 = vector.extract_strided_slice %680 {offsets = [0, 0], sizes = [4, 16], strides = [1, 1]} : vector<16x16xf32> to vector<4x16xf32>
    %682 = vector.broadcast %497 : f32 to vector<4x16xf32>
    %683 = arith.mulf %682, %681 : vector<4x16xf32>
    %684 = arith.addf %679, %683 : vector<4x16xf32>
    %685 = vector.extract_strided_slice %680 {offsets = [8, 0], sizes = [4, 16], strides = [1, 1]} : vector<16x16xf32> to vector<4x16xf32>
    %686 = vector.broadcast %522 : f32 to vector<4x16xf32>
    %687 = arith.mulf %686, %685 : vector<4x16xf32>
    %688 = arith.addf %684, %687 : vector<4x16xf32>
    %689 = vector.extract_strided_slice %680 {offsets = [1, 0], sizes = [4, 16], strides = [1, 1]} : vector<16x16xf32> to vector<4x16xf32>
    %690 = vector.broadcast %502 : f32 to vector<4x16xf32>
    %691 = arith.mulf %690, %689 : vector<4x16xf32>
    %692 = arith.addf %688, %691 : vector<4x16xf32>
    %693 = vector.extract_strided_slice %680 {offsets = [9, 0], sizes = [4, 16], strides = [1, 1]} : vector<16x16xf32> to vector<4x16xf32>
    %694 = vector.broadcast %527 : f32 to vector<4x16xf32>
    %695 = arith.mulf %694, %693 : vector<4x16xf32>
    %696 = arith.addf %692, %695 : vector<4x16xf32>
    %697 = vector.extract_strided_slice %680 {offsets = [2, 0], sizes = [4, 16], strides = [1, 1]} : vector<16x16xf32> to vector<4x16xf32>
    %698 = vector.broadcast %507 : f32 to vector<4x16xf32>
    %699 = arith.mulf %698, %697 : vector<4x16xf32>
    %700 = arith.addf %696, %699 : vector<4x16xf32>
    %701 = vector.extract_strided_slice %680 {offsets = [10, 0], sizes = [4, 16], strides = [1, 1]} : vector<16x16xf32> to vector<4x16xf32>
    %702 = vector.broadcast %532 : f32 to vector<4x16xf32>
    %703 = arith.mulf %702, %701 : vector<4x16xf32>
    %704 = arith.addf %700, %703 : vector<4x16xf32>
    %705 = vector.extract_strided_slice %680 {offsets = [3, 0], sizes = [4, 16], strides = [1, 1]} : vector<16x16xf32> to vector<4x16xf32>
    %706 = vector.broadcast %512 : f32 to vector<4x16xf32>
    %707 = arith.mulf %706, %705 : vector<4x16xf32>
    %708 = arith.addf %704, %707 : vector<4x16xf32>
    %709 = vector.extract_strided_slice %680 {offsets = [11, 0], sizes = [4, 16], strides = [1, 1]} : vector<16x16xf32> to vector<4x16xf32>
    %710 = vector.broadcast %537 : f32 to vector<4x16xf32>
    %711 = arith.mulf %710, %709 : vector<4x16xf32>
    %712 = arith.addf %708, %711 : vector<4x16xf32>
    %713 = vector.extract_strided_slice %680 {offsets = [4, 0], sizes = [4, 16], strides = [1, 1]} : vector<16x16xf32> to vector<4x16xf32>
    %714 = vector.broadcast %517 : f32 to vector<4x16xf32>
    %715 = arith.mulf %714, %713 : vector<4x16xf32>
    %716 = arith.addf %712, %715 : vector<4x16xf32>
    %717 = vector.extract_strided_slice %680 {offsets = [12, 0], sizes = [4, 16], strides = [1, 1]} : vector<16x16xf32> to vector<4x16xf32>
    %718 = vector.broadcast %542 : f32 to vector<4x16xf32>
    %719 = arith.mulf %718, %717 : vector<4x16xf32>
    %720 = arith.addf %716, %719 : vector<4x16xf32>
    %c0_345 = arith.constant 0 : index
    %c4_346 = arith.constant 4 : index
    %721 = vector.load %arg5[%c0_345, %c4_346] : memref<16x20xf32, #tpu.memory_space<vmem>>, vector<16x16xf32>
    %722 = vector.extract_strided_slice %721 {offsets = [0, 0], sizes = [4, 16], strides = [1, 1]} : vector<16x16xf32> to vector<4x16xf32>
    %723 = vector.broadcast %498 : f32 to vector<4x16xf32>
    %724 = arith.mulf %723, %722 : vector<4x16xf32>
    %725 = arith.addf %720, %724 : vector<4x16xf32>
    %726 = vector.extract_strided_slice %721 {offsets = [8, 0], sizes = [4, 16], strides = [1, 1]} : vector<16x16xf32> to vector<4x16xf32>
    %727 = vector.broadcast %523 : f32 to vector<4x16xf32>
    %728 = arith.mulf %727, %726 : vector<4x16xf32>
    %729 = arith.addf %725, %728 : vector<4x16xf32>
    %730 = vector.extract_strided_slice %721 {offsets = [1, 0], sizes = [4, 16], strides = [1, 1]} : vector<16x16xf32> to vector<4x16xf32>
    %731 = vector.broadcast %503 : f32 to vector<4x16xf32>
    %732 = arith.mulf %731, %730 : vector<4x16xf32>
    %733 = arith.addf %729, %732 : vector<4x16xf32>
    %734 = vector.extract_strided_slice %721 {offsets = [9, 0], sizes = [4, 16], strides = [1, 1]} : vector<16x16xf32> to vector<4x16xf32>
    %735 = vector.broadcast %528 : f32 to vector<4x16xf32>
    %736 = arith.mulf %735, %734 : vector<4x16xf32>
    %737 = arith.addf %733, %736 : vector<4x16xf32>
    %738 = vector.extract_strided_slice %721 {offsets = [2, 0], sizes = [4, 16], strides = [1, 1]} : vector<16x16xf32> to vector<4x16xf32>
    %739 = vector.broadcast %508 : f32 to vector<4x16xf32>
    %740 = arith.mulf %739, %738 : vector<4x16xf32>
    %741 = arith.addf %737, %740 : vector<4x16xf32>
    %742 = vector.extract_strided_slice %721 {offsets = [10, 0], sizes = [4, 16], strides = [1, 1]} : vector<16x16xf32> to vector<4x16xf32>
    %743 = vector.broadcast %533 : f32 to vector<4x16xf32>
    %744 = arith.mulf %743, %742 : vector<4x16xf32>
    %745 = arith.addf %741, %744 : vector<4x16xf32>
    %746 = vector.extract_strided_slice %721 {offsets = [3, 0], sizes = [4, 16], strides = [1, 1]} : vector<16x16xf32> to vector<4x16xf32>
    %747 = vector.broadcast %513 : f32 to vector<4x16xf32>
    %748 = arith.mulf %747, %746 : vector<4x16xf32>
    %749 = arith.addf %745, %748 : vector<4x16xf32>
    %750 = vector.extract_strided_slice %721 {offsets = [11, 0], sizes = [4, 16], strides = [1, 1]} : vector<16x16xf32> to vector<4x16xf32>
    %751 = vector.broadcast %538 : f32 to vector<4x16xf32>
    %752 = arith.mulf %751, %750 : vector<4x16xf32>
    %753 = arith.addf %749, %752 : vector<4x16xf32>
    %754 = vector.extract_strided_slice %721 {offsets = [4, 0], sizes = [4, 16], strides = [1, 1]} : vector<16x16xf32> to vector<4x16xf32>
    %755 = vector.broadcast %518 : f32 to vector<4x16xf32>
    %756 = arith.mulf %755, %754 : vector<4x16xf32>
    %757 = arith.addf %753, %756 : vector<4x16xf32>
    %758 = vector.extract_strided_slice %721 {offsets = [12, 0], sizes = [4, 16], strides = [1, 1]} : vector<16x16xf32> to vector<4x16xf32>
    %759 = vector.broadcast %543 : f32 to vector<4x16xf32>
    %760 = arith.mulf %759, %758 : vector<4x16xf32>
    %761 = arith.addf %757, %760 : vector<4x16xf32>
    %cst_347 = arith.constant 0.000000e+00 : f32
    %762 = vector.broadcast %cst_347 : f32 to vector<4x16xf32>
    %763 = arith.maximumf %761, %762 : vector<4x16xf32>
    %cst_348 = arith.constant 0.000000e+00 : f32
    %764 = vector.broadcast %cst_348 : f32 to vector<4x16xf32>
    %765 = arith.subf %764, %763 : vector<4x16xf32>
    %766 = math.exp %765 : vector<4x16xf32>
    %cst_349 = arith.constant 1.000000e+00 : f32
    %767 = vector.broadcast %cst_349 : f32 to vector<4x16xf32>
    %768 = arith.addf %767, %766 : vector<4x16xf32>
    %cst_350 = arith.constant 1.000000e+00 : f32
    %769 = vector.broadcast %cst_350 : f32 to vector<4x16xf32>
    %770 = arith.divf %769, %768 : vector<4x16xf32>
    %771 = arith.mulf %763, %770 : vector<4x16xf32>
    %c2_351 = arith.constant 2 : index
    %c0_352 = arith.constant 0 : index
    %772 = memref.load %arg1[%c2_351, %c0_352] : memref<3x50xf32, #tpu.memory_space<smem>>
    %c2_353 = arith.constant 2 : index
    %c1_354 = arith.constant 1 : index
    %773 = memref.load %arg1[%c2_353, %c1_354] : memref<3x50xf32, #tpu.memory_space<smem>>
    %c2_355 = arith.constant 2 : index
    %c2_356 = arith.constant 2 : index
    %774 = memref.load %arg1[%c2_355, %c2_356] : memref<3x50xf32, #tpu.memory_space<smem>>
    %c2_357 = arith.constant 2 : index
    %c3_358 = arith.constant 3 : index
    %775 = memref.load %arg1[%c2_357, %c3_358] : memref<3x50xf32, #tpu.memory_space<smem>>
    %c2_359 = arith.constant 2 : index
    %c4_360 = arith.constant 4 : index
    %776 = memref.load %arg1[%c2_359, %c4_360] : memref<3x50xf32, #tpu.memory_space<smem>>
    %c2_361 = arith.constant 2 : index
    %c5_362 = arith.constant 5 : index
    %777 = memref.load %arg1[%c2_361, %c5_362] : memref<3x50xf32, #tpu.memory_space<smem>>
    %c2_363 = arith.constant 2 : index
    %c6_364 = arith.constant 6 : index
    %778 = memref.load %arg1[%c2_363, %c6_364] : memref<3x50xf32, #tpu.memory_space<smem>>
    %c2_365 = arith.constant 2 : index
    %c7_366 = arith.constant 7 : index
    %779 = memref.load %arg1[%c2_365, %c7_366] : memref<3x50xf32, #tpu.memory_space<smem>>
    %c2_367 = arith.constant 2 : index
    %c8_368 = arith.constant 8 : index
    %780 = memref.load %arg1[%c2_367, %c8_368] : memref<3x50xf32, #tpu.memory_space<smem>>
    %c2_369 = arith.constant 2 : index
    %c9_370 = arith.constant 9 : index
    %781 = memref.load %arg1[%c2_369, %c9_370] : memref<3x50xf32, #tpu.memory_space<smem>>
    %c2_371 = arith.constant 2 : index
    %c10_372 = arith.constant 10 : index
    %782 = memref.load %arg1[%c2_371, %c10_372] : memref<3x50xf32, #tpu.memory_space<smem>>
    %c2_373 = arith.constant 2 : index
    %c11_374 = arith.constant 11 : index
    %783 = memref.load %arg1[%c2_373, %c11_374] : memref<3x50xf32, #tpu.memory_space<smem>>
    %c2_375 = arith.constant 2 : index
    %c12_376 = arith.constant 12 : index
    %784 = memref.load %arg1[%c2_375, %c12_376] : memref<3x50xf32, #tpu.memory_space<smem>>
    %c2_377 = arith.constant 2 : index
    %c13_378 = arith.constant 13 : index
    %785 = memref.load %arg1[%c2_377, %c13_378] : memref<3x50xf32, #tpu.memory_space<smem>>
    %c2_379 = arith.constant 2 : index
    %c14_380 = arith.constant 14 : index
    %786 = memref.load %arg1[%c2_379, %c14_380] : memref<3x50xf32, #tpu.memory_space<smem>>
    %c2_381 = arith.constant 2 : index
    %c15_382 = arith.constant 15 : index
    %787 = memref.load %arg1[%c2_381, %c15_382] : memref<3x50xf32, #tpu.memory_space<smem>>
    %c2_383 = arith.constant 2 : index
    %c16_384 = arith.constant 16 : index
    %788 = memref.load %arg1[%c2_383, %c16_384] : memref<3x50xf32, #tpu.memory_space<smem>>
    %c2_385 = arith.constant 2 : index
    %c17_386 = arith.constant 17 : index
    %789 = memref.load %arg1[%c2_385, %c17_386] : memref<3x50xf32, #tpu.memory_space<smem>>
    %c2_387 = arith.constant 2 : index
    %c18_388 = arith.constant 18 : index
    %790 = memref.load %arg1[%c2_387, %c18_388] : memref<3x50xf32, #tpu.memory_space<smem>>
    %c2_389 = arith.constant 2 : index
    %c19_390 = arith.constant 19 : index
    %791 = memref.load %arg1[%c2_389, %c19_390] : memref<3x50xf32, #tpu.memory_space<smem>>
    %c2_391 = arith.constant 2 : index
    %c20_392 = arith.constant 20 : index
    %792 = memref.load %arg1[%c2_391, %c20_392] : memref<3x50xf32, #tpu.memory_space<smem>>
    %c2_393 = arith.constant 2 : index
    %c21_394 = arith.constant 21 : index
    %793 = memref.load %arg1[%c2_393, %c21_394] : memref<3x50xf32, #tpu.memory_space<smem>>
    %c2_395 = arith.constant 2 : index
    %c22_396 = arith.constant 22 : index
    %794 = memref.load %arg1[%c2_395, %c22_396] : memref<3x50xf32, #tpu.memory_space<smem>>
    %c2_397 = arith.constant 2 : index
    %c23_398 = arith.constant 23 : index
    %795 = memref.load %arg1[%c2_397, %c23_398] : memref<3x50xf32, #tpu.memory_space<smem>>
    %c2_399 = arith.constant 2 : index
    %c24_400 = arith.constant 24 : index
    %796 = memref.load %arg1[%c2_399, %c24_400] : memref<3x50xf32, #tpu.memory_space<smem>>
    %c2_401 = arith.constant 2 : index
    %c25_402 = arith.constant 25 : index
    %797 = memref.load %arg1[%c2_401, %c25_402] : memref<3x50xf32, #tpu.memory_space<smem>>
    %c2_403 = arith.constant 2 : index
    %c26_404 = arith.constant 26 : index
    %798 = memref.load %arg1[%c2_403, %c26_404] : memref<3x50xf32, #tpu.memory_space<smem>>
    %c2_405 = arith.constant 2 : index
    %c27_406 = arith.constant 27 : index
    %799 = memref.load %arg1[%c2_405, %c27_406] : memref<3x50xf32, #tpu.memory_space<smem>>
    %c2_407 = arith.constant 2 : index
    %c28_408 = arith.constant 28 : index
    %800 = memref.load %arg1[%c2_407, %c28_408] : memref<3x50xf32, #tpu.memory_space<smem>>
    %c2_409 = arith.constant 2 : index
    %c29_410 = arith.constant 29 : index
    %801 = memref.load %arg1[%c2_409, %c29_410] : memref<3x50xf32, #tpu.memory_space<smem>>
    %c2_411 = arith.constant 2 : index
    %c30_412 = arith.constant 30 : index
    %802 = memref.load %arg1[%c2_411, %c30_412] : memref<3x50xf32, #tpu.memory_space<smem>>
    %c2_413 = arith.constant 2 : index
    %c31_414 = arith.constant 31 : index
    %803 = memref.load %arg1[%c2_413, %c31_414] : memref<3x50xf32, #tpu.memory_space<smem>>
    %c2_415 = arith.constant 2 : index
    %c32_416 = arith.constant 32 : index
    %804 = memref.load %arg1[%c2_415, %c32_416] : memref<3x50xf32, #tpu.memory_space<smem>>
    %c2_417 = arith.constant 2 : index
    %c33_418 = arith.constant 33 : index
    %805 = memref.load %arg1[%c2_417, %c33_418] : memref<3x50xf32, #tpu.memory_space<smem>>
    %c2_419 = arith.constant 2 : index
    %c34_420 = arith.constant 34 : index
    %806 = memref.load %arg1[%c2_419, %c34_420] : memref<3x50xf32, #tpu.memory_space<smem>>
    %c2_421 = arith.constant 2 : index
    %c35_422 = arith.constant 35 : index
    %807 = memref.load %arg1[%c2_421, %c35_422] : memref<3x50xf32, #tpu.memory_space<smem>>
    %c2_423 = arith.constant 2 : index
    %c36_424 = arith.constant 36 : index
    %808 = memref.load %arg1[%c2_423, %c36_424] : memref<3x50xf32, #tpu.memory_space<smem>>
    %c2_425 = arith.constant 2 : index
    %c37_426 = arith.constant 37 : index
    %809 = memref.load %arg1[%c2_425, %c37_426] : memref<3x50xf32, #tpu.memory_space<smem>>
    %c2_427 = arith.constant 2 : index
    %c38_428 = arith.constant 38 : index
    %810 = memref.load %arg1[%c2_427, %c38_428] : memref<3x50xf32, #tpu.memory_space<smem>>
    %c2_429 = arith.constant 2 : index
    %c39_430 = arith.constant 39 : index
    %811 = memref.load %arg1[%c2_429, %c39_430] : memref<3x50xf32, #tpu.memory_space<smem>>
    %c2_431 = arith.constant 2 : index
    %c40_432 = arith.constant 40 : index
    %812 = memref.load %arg1[%c2_431, %c40_432] : memref<3x50xf32, #tpu.memory_space<smem>>
    %c2_433 = arith.constant 2 : index
    %c41_434 = arith.constant 41 : index
    %813 = memref.load %arg1[%c2_433, %c41_434] : memref<3x50xf32, #tpu.memory_space<smem>>
    %c2_435 = arith.constant 2 : index
    %c42_436 = arith.constant 42 : index
    %814 = memref.load %arg1[%c2_435, %c42_436] : memref<3x50xf32, #tpu.memory_space<smem>>
    %c2_437 = arith.constant 2 : index
    %c43_438 = arith.constant 43 : index
    %815 = memref.load %arg1[%c2_437, %c43_438] : memref<3x50xf32, #tpu.memory_space<smem>>
    %c2_439 = arith.constant 2 : index
    %c44_440 = arith.constant 44 : index
    %816 = memref.load %arg1[%c2_439, %c44_440] : memref<3x50xf32, #tpu.memory_space<smem>>
    %c2_441 = arith.constant 2 : index
    %c45_442 = arith.constant 45 : index
    %817 = memref.load %arg1[%c2_441, %c45_442] : memref<3x50xf32, #tpu.memory_space<smem>>
    %c2_443 = arith.constant 2 : index
    %c46_444 = arith.constant 46 : index
    %818 = memref.load %arg1[%c2_443, %c46_444] : memref<3x50xf32, #tpu.memory_space<smem>>
    %c2_445 = arith.constant 2 : index
    %c47_446 = arith.constant 47 : index
    %819 = memref.load %arg1[%c2_445, %c47_446] : memref<3x50xf32, #tpu.memory_space<smem>>
    %c2_447 = arith.constant 2 : index
    %c48_448 = arith.constant 48 : index
    %820 = memref.load %arg1[%c2_447, %c48_448] : memref<3x50xf32, #tpu.memory_space<smem>>
    %c2_449 = arith.constant 2 : index
    %c49_450 = arith.constant 49 : index
    %821 = memref.load %arg1[%c2_449, %c49_450] : memref<3x50xf32, #tpu.memory_space<smem>>
    %cst_451 = arith.constant 0.000000e+00 : f32
    %822 = vector.broadcast %cst_451 : f32 to vector<2x20xf32>
    %c0_452 = arith.constant 0 : index
    %c0_453 = arith.constant 0 : index
    %823 = vector.load %arg6[%c0_452, %c0_453] : memref<40x20xf32, #tpu.memory_space<vmem>>, vector<2x20xf32>
    tpu.vector_store %arg6[%c0_452, %c0_453], %822 {strides = array<i32>} : memref<40x20xf32, #tpu.memory_space<vmem>>, vector<2x20xf32>,
    %cst_454 = arith.constant 0.000000e+00 : f32
    %824 = vector.broadcast %cst_454 : f32 to vector<4x20xf32>
    %c18_455 = arith.constant 18 : index
    %c0_456 = arith.constant 0 : index
    %825 = vector.load %arg6[%c18_455, %c0_456] : memref<40x20xf32, #tpu.memory_space<vmem>>, vector<4x20xf32>
    tpu.vector_store %arg6[%c18_455, %c0_456], %824 {strides = array<i32>} : memref<40x20xf32, #tpu.memory_space<vmem>>, vector<4x20xf32>,
    %cst_457 = arith.constant 0.000000e+00 : f32
    %826 = vector.broadcast %cst_457 : f32 to vector<2x20xf32>
    %c38_458 = arith.constant 38 : index
    %c0_459 = arith.constant 0 : index
    %827 = vector.load %arg6[%c38_458, %c0_459] : memref<40x20xf32, #tpu.memory_space<vmem>>, vector<2x20xf32>
    tpu.vector_store %arg6[%c38_458, %c0_459], %826 {strides = array<i32>} : memref<40x20xf32, #tpu.memory_space<vmem>>, vector<2x20xf32>,
    %cst_460 = arith.constant 0.000000e+00 : f32
    %828 = vector.broadcast %cst_460 : f32 to vector<40x2xf32>
    %c0_461 = arith.constant 0 : index
    %c0_462 = arith.constant 0 : index
    %829 = vector.load %arg6[%c0_461, %c0_462] : memref<40x20xf32, #tpu.memory_space<vmem>>, vector<40x2xf32>
    tpu.vector_store %arg6[%c0_461, %c0_462], %828 {strides = array<i32>} : memref<40x20xf32, #tpu.memory_space<vmem>>, vector<40x2xf32>,
    %cst_463 = arith.constant 0.000000e+00 : f32
    %830 = vector.broadcast %cst_463 : f32 to vector<40x2xf32>
    %c0_464 = arith.constant 0 : index
    %c18_465 = arith.constant 18 : index
    %831 = vector.load %arg6[%c0_464, %c18_465] : memref<40x20xf32, #tpu.memory_space<vmem>>, vector<40x2xf32>
    tpu.vector_store %arg6[%c0_464, %c18_465], %830 {strides = array<i32>} : memref<40x20xf32, #tpu.memory_space<vmem>>, vector<40x2xf32>,
    %c2_466 = arith.constant 2 : index
    %c2_467 = arith.constant 2 : index
    %832 = vector.load %arg6[%c2_466, %c2_467] : memref<40x20xf32, #tpu.memory_space<vmem>>, vector<16x16xf32>
    tpu.vector_store %arg6[%c2_466, %c2_467], %212 {strides = array<i32>} : memref<40x20xf32, #tpu.memory_space<vmem>>, vector<16x16xf32>,
    %c22_468 = arith.constant 22 : index
    %c2_469 = arith.constant 2 : index
    %833 = vector.load %arg6[%c22_468, %c2_469] : memref<40x20xf32, #tpu.memory_space<vmem>>, vector<16x16xf32>
    tpu.vector_store %arg6[%c22_468, %c2_469], %215 {strides = array<i32>} : memref<40x20xf32, #tpu.memory_space<vmem>>, vector<16x16xf32>,
    %cst_470 = arith.constant 0.000000e+00 : f32
    %834 = vector.broadcast %cst_470 : f32 to vector<16x16xf32>
    %c0_471 = arith.constant 0 : index
    %c0_472 = arith.constant 0 : index
    %835 = vector.load %arg6[%c0_471, %c0_472] : memref<40x20xf32, #tpu.memory_space<vmem>>, vector<40x16xf32>
    %836 = vector.extract_strided_slice %835 {offsets = [0, 0], sizes = [16, 16], strides = [1, 1]} : vector<40x16xf32> to vector<16x16xf32>
    %837 = vector.broadcast %772 : f32 to vector<16x16xf32>
    %838 = arith.mulf %837, %836 : vector<16x16xf32>
    %839 = arith.addf %834, %838 : vector<16x16xf32>
    %840 = vector.extract_strided_slice %835 {offsets = [20, 0], sizes = [16, 16], strides = [1, 1]} : vector<40x16xf32> to vector<16x16xf32>
    %841 = vector.broadcast %797 : f32 to vector<16x16xf32>
    %842 = arith.mulf %841, %840 : vector<16x16xf32>
    %843 = arith.addf %839, %842 : vector<16x16xf32>
    %844 = vector.extract_strided_slice %835 {offsets = [1, 0], sizes = [16, 16], strides = [1, 1]} : vector<40x16xf32> to vector<16x16xf32>
    %845 = vector.broadcast %777 : f32 to vector<16x16xf32>
    %846 = arith.mulf %845, %844 : vector<16x16xf32>
    %847 = arith.addf %843, %846 : vector<16x16xf32>
    %848 = vector.extract_strided_slice %835 {offsets = [21, 0], sizes = [16, 16], strides = [1, 1]} : vector<40x16xf32> to vector<16x16xf32>
    %849 = vector.broadcast %802 : f32 to vector<16x16xf32>
    %850 = arith.mulf %849, %848 : vector<16x16xf32>
    %851 = arith.addf %847, %850 : vector<16x16xf32>
    %852 = vector.extract_strided_slice %835 {offsets = [2, 0], sizes = [16, 16], strides = [1, 1]} : vector<40x16xf32> to vector<16x16xf32>
    %853 = vector.broadcast %782 : f32 to vector<16x16xf32>
    %854 = arith.mulf %853, %852 : vector<16x16xf32>
    %855 = arith.addf %851, %854 : vector<16x16xf32>
    %856 = vector.extract_strided_slice %835 {offsets = [22, 0], sizes = [16, 16], strides = [1, 1]} : vector<40x16xf32> to vector<16x16xf32>
    %857 = vector.broadcast %807 : f32 to vector<16x16xf32>
    %858 = arith.mulf %857, %856 : vector<16x16xf32>
    %859 = arith.addf %855, %858 : vector<16x16xf32>
    %860 = vector.extract_strided_slice %835 {offsets = [3, 0], sizes = [16, 16], strides = [1, 1]} : vector<40x16xf32> to vector<16x16xf32>
    %861 = vector.broadcast %787 : f32 to vector<16x16xf32>
    %862 = arith.mulf %861, %860 : vector<16x16xf32>
    %863 = arith.addf %859, %862 : vector<16x16xf32>
    %864 = vector.extract_strided_slice %835 {offsets = [23, 0], sizes = [16, 16], strides = [1, 1]} : vector<40x16xf32> to vector<16x16xf32>
    %865 = vector.broadcast %812 : f32 to vector<16x16xf32>
    %866 = arith.mulf %865, %864 : vector<16x16xf32>
    %867 = arith.addf %863, %866 : vector<16x16xf32>
    %868 = vector.extract_strided_slice %835 {offsets = [4, 0], sizes = [16, 16], strides = [1, 1]} : vector<40x16xf32> to vector<16x16xf32>
    %869 = vector.broadcast %792 : f32 to vector<16x16xf32>
    %870 = arith.mulf %869, %868 : vector<16x16xf32>
    %871 = arith.addf %867, %870 : vector<16x16xf32>
    %872 = vector.extract_strided_slice %835 {offsets = [24, 0], sizes = [16, 16], strides = [1, 1]} : vector<40x16xf32> to vector<16x16xf32>
    %873 = vector.broadcast %817 : f32 to vector<16x16xf32>
    %874 = arith.mulf %873, %872 : vector<16x16xf32>
    %875 = arith.addf %871, %874 : vector<16x16xf32>
    %c0_473 = arith.constant 0 : index
    %c1_474 = arith.constant 1 : index
    %876 = vector.load %arg6[%c0_473, %c1_474] : memref<40x20xf32, #tpu.memory_space<vmem>>, vector<40x16xf32>
    %877 = vector.extract_strided_slice %876 {offsets = [0, 0], sizes = [16, 16], strides = [1, 1]} : vector<40x16xf32> to vector<16x16xf32>
    %878 = vector.broadcast %773 : f32 to vector<16x16xf32>
    %879 = arith.mulf %878, %877 : vector<16x16xf32>
    %880 = arith.addf %875, %879 : vector<16x16xf32>
    %881 = vector.extract_strided_slice %876 {offsets = [20, 0], sizes = [16, 16], strides = [1, 1]} : vector<40x16xf32> to vector<16x16xf32>
    %882 = vector.broadcast %798 : f32 to vector<16x16xf32>
    %883 = arith.mulf %882, %881 : vector<16x16xf32>
    %884 = arith.addf %880, %883 : vector<16x16xf32>
    %885 = vector.extract_strided_slice %876 {offsets = [1, 0], sizes = [16, 16], strides = [1, 1]} : vector<40x16xf32> to vector<16x16xf32>
    %886 = vector.broadcast %778 : f32 to vector<16x16xf32>
    %887 = arith.mulf %886, %885 : vector<16x16xf32>
    %888 = arith.addf %884, %887 : vector<16x16xf32>
    %889 = vector.extract_strided_slice %876 {offsets = [21, 0], sizes = [16, 16], strides = [1, 1]} : vector<40x16xf32> to vector<16x16xf32>
    %890 = vector.broadcast %803 : f32 to vector<16x16xf32>
    %891 = arith.mulf %890, %889 : vector<16x16xf32>
    %892 = arith.addf %888, %891 : vector<16x16xf32>
    %893 = vector.extract_strided_slice %876 {offsets = [2, 0], sizes = [16, 16], strides = [1, 1]} : vector<40x16xf32> to vector<16x16xf32>
    %894 = vector.broadcast %783 : f32 to vector<16x16xf32>
    %895 = arith.mulf %894, %893 : vector<16x16xf32>
    %896 = arith.addf %892, %895 : vector<16x16xf32>
    %897 = vector.extract_strided_slice %876 {offsets = [22, 0], sizes = [16, 16], strides = [1, 1]} : vector<40x16xf32> to vector<16x16xf32>
    %898 = vector.broadcast %808 : f32 to vector<16x16xf32>
    %899 = arith.mulf %898, %897 : vector<16x16xf32>
    %900 = arith.addf %896, %899 : vector<16x16xf32>
    %901 = vector.extract_strided_slice %876 {offsets = [3, 0], sizes = [16, 16], strides = [1, 1]} : vector<40x16xf32> to vector<16x16xf32>
    %902 = vector.broadcast %788 : f32 to vector<16x16xf32>
    %903 = arith.mulf %902, %901 : vector<16x16xf32>
    %904 = arith.addf %900, %903 : vector<16x16xf32>
    %905 = vector.extract_strided_slice %876 {offsets = [23, 0], sizes = [16, 16], strides = [1, 1]} : vector<40x16xf32> to vector<16x16xf32>
    %906 = vector.broadcast %813 : f32 to vector<16x16xf32>
    %907 = arith.mulf %906, %905 : vector<16x16xf32>
    %908 = arith.addf %904, %907 : vector<16x16xf32>
    %909 = vector.extract_strided_slice %876 {offsets = [4, 0], sizes = [16, 16], strides = [1, 1]} : vector<40x16xf32> to vector<16x16xf32>
    %910 = vector.broadcast %793 : f32 to vector<16x16xf32>
    %911 = arith.mulf %910, %909 : vector<16x16xf32>
    %912 = arith.addf %908, %911 : vector<16x16xf32>
    %913 = vector.extract_strided_slice %876 {offsets = [24, 0], sizes = [16, 16], strides = [1, 1]} : vector<40x16xf32> to vector<16x16xf32>
    %914 = vector.broadcast %818 : f32 to vector<16x16xf32>
    %915 = arith.mulf %914, %913 : vector<16x16xf32>
    %916 = arith.addf %912, %915 : vector<16x16xf32>
    %c0_475 = arith.constant 0 : index
    %c2_476 = arith.constant 2 : index
    %917 = vector.load %arg6[%c0_475, %c2_476] : memref<40x20xf32, #tpu.memory_space<vmem>>, vector<40x16xf32>
    %918 = vector.extract_strided_slice %917 {offsets = [0, 0], sizes = [16, 16], strides = [1, 1]} : vector<40x16xf32> to vector<16x16xf32>
    %919 = vector.broadcast %774 : f32 to vector<16x16xf32>
    %920 = arith.mulf %919, %918 : vector<16x16xf32>
    %921 = arith.addf %916, %920 : vector<16x16xf32>
    %922 = vector.extract_strided_slice %917 {offsets = [20, 0], sizes = [16, 16], strides = [1, 1]} : vector<40x16xf32> to vector<16x16xf32>
    %923 = vector.broadcast %799 : f32 to vector<16x16xf32>
    %924 = arith.mulf %923, %922 : vector<16x16xf32>
    %925 = arith.addf %921, %924 : vector<16x16xf32>
    %926 = vector.extract_strided_slice %917 {offsets = [1, 0], sizes = [16, 16], strides = [1, 1]} : vector<40x16xf32> to vector<16x16xf32>
    %927 = vector.broadcast %779 : f32 to vector<16x16xf32>
    %928 = arith.mulf %927, %926 : vector<16x16xf32>
    %929 = arith.addf %925, %928 : vector<16x16xf32>
    %930 = vector.extract_strided_slice %917 {offsets = [21, 0], sizes = [16, 16], strides = [1, 1]} : vector<40x16xf32> to vector<16x16xf32>
    %931 = vector.broadcast %804 : f32 to vector<16x16xf32>
    %932 = arith.mulf %931, %930 : vector<16x16xf32>
    %933 = arith.addf %929, %932 : vector<16x16xf32>
    %934 = vector.extract_strided_slice %917 {offsets = [2, 0], sizes = [16, 16], strides = [1, 1]} : vector<40x16xf32> to vector<16x16xf32>
    %935 = vector.broadcast %784 : f32 to vector<16x16xf32>
    %936 = arith.mulf %935, %934 : vector<16x16xf32>
    %937 = arith.addf %933, %936 : vector<16x16xf32>
    %938 = vector.extract_strided_slice %917 {offsets = [22, 0], sizes = [16, 16], strides = [1, 1]} : vector<40x16xf32> to vector<16x16xf32>
    %939 = vector.broadcast %809 : f32 to vector<16x16xf32>
    %940 = arith.mulf %939, %938 : vector<16x16xf32>
    %941 = arith.addf %937, %940 : vector<16x16xf32>
    %942 = vector.extract_strided_slice %917 {offsets = [3, 0], sizes = [16, 16], strides = [1, 1]} : vector<40x16xf32> to vector<16x16xf32>
    %943 = vector.broadcast %789 : f32 to vector<16x16xf32>
    %944 = arith.mulf %943, %942 : vector<16x16xf32>
    %945 = arith.addf %941, %944 : vector<16x16xf32>
    %946 = vector.extract_strided_slice %917 {offsets = [23, 0], sizes = [16, 16], strides = [1, 1]} : vector<40x16xf32> to vector<16x16xf32>
    %947 = vector.broadcast %814 : f32 to vector<16x16xf32>
    %948 = arith.mulf %947, %946 : vector<16x16xf32>
    %949 = arith.addf %945, %948 : vector<16x16xf32>
    %950 = vector.extract_strided_slice %917 {offsets = [4, 0], sizes = [16, 16], strides = [1, 1]} : vector<40x16xf32> to vector<16x16xf32>
    %951 = vector.broadcast %794 : f32 to vector<16x16xf32>
    %952 = arith.mulf %951, %950 : vector<16x16xf32>
    %953 = arith.addf %949, %952 : vector<16x16xf32>
    %954 = vector.extract_strided_slice %917 {offsets = [24, 0], sizes = [16, 16], strides = [1, 1]} : vector<40x16xf32> to vector<16x16xf32>
    %955 = vector.broadcast %819 : f32 to vector<16x16xf32>
    %956 = arith.mulf %955, %954 : vector<16x16xf32>
    %957 = arith.addf %953, %956 : vector<16x16xf32>
    %c0_477 = arith.constant 0 : index
    %c3_478 = arith.constant 3 : index
    %958 = vector.load %arg6[%c0_477, %c3_478] : memref<40x20xf32, #tpu.memory_space<vmem>>, vector<40x16xf32>
    %959 = vector.extract_strided_slice %958 {offsets = [0, 0], sizes = [16, 16], strides = [1, 1]} : vector<40x16xf32> to vector<16x16xf32>
    %960 = vector.broadcast %775 : f32 to vector<16x16xf32>
    %961 = arith.mulf %960, %959 : vector<16x16xf32>
    %962 = arith.addf %957, %961 : vector<16x16xf32>
    %963 = vector.extract_strided_slice %958 {offsets = [20, 0], sizes = [16, 16], strides = [1, 1]} : vector<40x16xf32> to vector<16x16xf32>
    %964 = vector.broadcast %800 : f32 to vector<16x16xf32>
    %965 = arith.mulf %964, %963 : vector<16x16xf32>
    %966 = arith.addf %962, %965 : vector<16x16xf32>
    %967 = vector.extract_strided_slice %958 {offsets = [1, 0], sizes = [16, 16], strides = [1, 1]} : vector<40x16xf32> to vector<16x16xf32>
    %968 = vector.broadcast %780 : f32 to vector<16x16xf32>
    %969 = arith.mulf %968, %967 : vector<16x16xf32>
    %970 = arith.addf %966, %969 : vector<16x16xf32>
    %971 = vector.extract_strided_slice %958 {offsets = [21, 0], sizes = [16, 16], strides = [1, 1]} : vector<40x16xf32> to vector<16x16xf32>
    %972 = vector.broadcast %805 : f32 to vector<16x16xf32>
    %973 = arith.mulf %972, %971 : vector<16x16xf32>
    %974 = arith.addf %970, %973 : vector<16x16xf32>
    %975 = vector.extract_strided_slice %958 {offsets = [2, 0], sizes = [16, 16], strides = [1, 1]} : vector<40x16xf32> to vector<16x16xf32>
    %976 = vector.broadcast %785 : f32 to vector<16x16xf32>
    %977 = arith.mulf %976, %975 : vector<16x16xf32>
    %978 = arith.addf %974, %977 : vector<16x16xf32>
    %979 = vector.extract_strided_slice %958 {offsets = [22, 0], sizes = [16, 16], strides = [1, 1]} : vector<40x16xf32> to vector<16x16xf32>
    %980 = vector.broadcast %810 : f32 to vector<16x16xf32>
    %981 = arith.mulf %980, %979 : vector<16x16xf32>
    %982 = arith.addf %978, %981 : vector<16x16xf32>
    %983 = vector.extract_strided_slice %958 {offsets = [3, 0], sizes = [16, 16], strides = [1, 1]} : vector<40x16xf32> to vector<16x16xf32>
    %984 = vector.broadcast %790 : f32 to vector<16x16xf32>
    %985 = arith.mulf %984, %983 : vector<16x16xf32>
    %986 = arith.addf %982, %985 : vector<16x16xf32>
    %987 = vector.extract_strided_slice %958 {offsets = [23, 0], sizes = [16, 16], strides = [1, 1]} : vector<40x16xf32> to vector<16x16xf32>
    %988 = vector.broadcast %815 : f32 to vector<16x16xf32>
    %989 = arith.mulf %988, %987 : vector<16x16xf32>
    %990 = arith.addf %986, %989 : vector<16x16xf32>
    %991 = vector.extract_strided_slice %958 {offsets = [4, 0], sizes = [16, 16], strides = [1, 1]} : vector<40x16xf32> to vector<16x16xf32>
    %992 = vector.broadcast %795 : f32 to vector<16x16xf32>
    %993 = arith.mulf %992, %991 : vector<16x16xf32>
    %994 = arith.addf %990, %993 : vector<16x16xf32>
    %995 = vector.extract_strided_slice %958 {offsets = [24, 0], sizes = [16, 16], strides = [1, 1]} : vector<40x16xf32> to vector<16x16xf32>
    %996 = vector.broadcast %820 : f32 to vector<16x16xf32>
    %997 = arith.mulf %996, %995 : vector<16x16xf32>
    %998 = arith.addf %994, %997 : vector<16x16xf32>
    %c0_479 = arith.constant 0 : index
    %c4_480 = arith.constant 4 : index
    %999 = vector.load %arg6[%c0_479, %c4_480] : memref<40x20xf32, #tpu.memory_space<vmem>>, vector<40x16xf32>
    %1000 = vector.extract_strided_slice %999 {offsets = [0, 0], sizes = [16, 16], strides = [1, 1]} : vector<40x16xf32> to vector<16x16xf32>
    %1001 = vector.broadcast %776 : f32 to vector<16x16xf32>
    %1002 = arith.mulf %1001, %1000 : vector<16x16xf32>
    %1003 = arith.addf %998, %1002 : vector<16x16xf32>
    %1004 = vector.extract_strided_slice %999 {offsets = [20, 0], sizes = [16, 16], strides = [1, 1]} : vector<40x16xf32> to vector<16x16xf32>
    %1005 = vector.broadcast %801 : f32 to vector<16x16xf32>
    %1006 = arith.mulf %1005, %1004 : vector<16x16xf32>
    %1007 = arith.addf %1003, %1006 : vector<16x16xf32>
    %1008 = vector.extract_strided_slice %999 {offsets = [1, 0], sizes = [16, 16], strides = [1, 1]} : vector<40x16xf32> to vector<16x16xf32>
    %1009 = vector.broadcast %781 : f32 to vector<16x16xf32>
    %1010 = arith.mulf %1009, %1008 : vector<16x16xf32>
    %1011 = arith.addf %1007, %1010 : vector<16x16xf32>
    %1012 = vector.extract_strided_slice %999 {offsets = [21, 0], sizes = [16, 16], strides = [1, 1]} : vector<40x16xf32> to vector<16x16xf32>
    %1013 = vector.broadcast %806 : f32 to vector<16x16xf32>
    %1014 = arith.mulf %1013, %1012 : vector<16x16xf32>
    %1015 = arith.addf %1011, %1014 : vector<16x16xf32>
    %1016 = vector.extract_strided_slice %999 {offsets = [2, 0], sizes = [16, 16], strides = [1, 1]} : vector<40x16xf32> to vector<16x16xf32>
    %1017 = vector.broadcast %786 : f32 to vector<16x16xf32>
    %1018 = arith.mulf %1017, %1016 : vector<16x16xf32>
    %1019 = arith.addf %1015, %1018 : vector<16x16xf32>
    %1020 = vector.extract_strided_slice %999 {offsets = [22, 0], sizes = [16, 16], strides = [1, 1]} : vector<40x16xf32> to vector<16x16xf32>
    %1021 = vector.broadcast %811 : f32 to vector<16x16xf32>
    %1022 = arith.mulf %1021, %1020 : vector<16x16xf32>
    %1023 = arith.addf %1019, %1022 : vector<16x16xf32>
    %1024 = vector.extract_strided_slice %999 {offsets = [3, 0], sizes = [16, 16], strides = [1, 1]} : vector<40x16xf32> to vector<16x16xf32>
    %1025 = vector.broadcast %791 : f32 to vector<16x16xf32>
    %1026 = arith.mulf %1025, %1024 : vector<16x16xf32>
    %1027 = arith.addf %1023, %1026 : vector<16x16xf32>
    %1028 = vector.extract_strided_slice %999 {offsets = [23, 0], sizes = [16, 16], strides = [1, 1]} : vector<40x16xf32> to vector<16x16xf32>
    %1029 = vector.broadcast %816 : f32 to vector<16x16xf32>
    %1030 = arith.mulf %1029, %1028 : vector<16x16xf32>
    %1031 = arith.addf %1027, %1030 : vector<16x16xf32>
    %1032 = vector.extract_strided_slice %999 {offsets = [4, 0], sizes = [16, 16], strides = [1, 1]} : vector<40x16xf32> to vector<16x16xf32>
    %1033 = vector.broadcast %796 : f32 to vector<16x16xf32>
    %1034 = arith.mulf %1033, %1032 : vector<16x16xf32>
    %1035 = arith.addf %1031, %1034 : vector<16x16xf32>
    %1036 = vector.extract_strided_slice %999 {offsets = [24, 0], sizes = [16, 16], strides = [1, 1]} : vector<40x16xf32> to vector<16x16xf32>
    %1037 = vector.broadcast %821 : f32 to vector<16x16xf32>
    %1038 = arith.mulf %1037, %1036 : vector<16x16xf32>
    %1039 = arith.addf %1035, %1038 : vector<16x16xf32>
    %cst_481 = arith.constant 0.000000e+00 : f32
    %1040 = vector.broadcast %cst_481 : f32 to vector<16x16xf32>
    %1041 = arith.maximumf %1039, %1040 : vector<16x16xf32>
    %cst_482 = arith.constant 0.000000e+00 : f32
    %1042 = vector.broadcast %cst_482 : f32 to vector<16x16xf32>
    %1043 = arith.subf %1042, %1041 : vector<16x16xf32>
    %1044 = math.exp %1043 : vector<16x16xf32>
    %cst_483 = arith.constant 1.000000e+00 : f32
    %1045 = vector.broadcast %cst_483 : f32 to vector<16x16xf32>
    %1046 = arith.addf %1045, %1044 : vector<16x16xf32>
    %cst_484 = arith.constant 1.000000e+00 : f32
    %1047 = vector.broadcast %cst_484 : f32 to vector<16x16xf32>
    %1048 = arith.divf %1047, %1046 : vector<16x16xf32>
    %1049 = arith.mulf %1041, %1048 : vector<16x16xf32>
    %1050 = vector.extract_strided_slice %771 {offsets = [0, 0], sizes = [4, 1], strides = [1, 1]} : vector<4x16xf32> to vector<4x1xf32>
    %1051 = vector.broadcast %1050 : vector<4x1xf32> to vector<4x16xf32>
    %1052 = arith.addf %493, %1051 : vector<4x16xf32>
    %1053 = vector.extract_strided_slice %1049 {offsets = [0, 0], sizes = [1, 16], strides = [1, 1]} : vector<16x16xf32> to vector<1x16xf32>
    %1054 = vector.broadcast %1053 : vector<1x16xf32> to vector<4x16xf32>
    %1055 = arith.addf %1052, %1054 : vector<4x16xf32>
    %1056 = vector.extract_strided_slice %771 {offsets = [0, 1], sizes = [4, 1], strides = [1, 1]} : vector<4x16xf32> to vector<4x1xf32>
    %1057 = vector.broadcast %1056 : vector<4x1xf32> to vector<4x16xf32>
    %1058 = arith.addf %493, %1057 : vector<4x16xf32>
    %1059 = vector.extract_strided_slice %1049 {offsets = [1, 0], sizes = [1, 16], strides = [1, 1]} : vector<16x16xf32> to vector<1x16xf32>
    %1060 = vector.broadcast %1059 : vector<1x16xf32> to vector<4x16xf32>
    %1061 = arith.addf %1058, %1060 : vector<4x16xf32>
    %1062 = vector.extract_strided_slice %771 {offsets = [0, 2], sizes = [4, 1], strides = [1, 1]} : vector<4x16xf32> to vector<4x1xf32>
    %1063 = vector.broadcast %1062 : vector<4x1xf32> to vector<4x16xf32>
    %1064 = arith.addf %493, %1063 : vector<4x16xf32>
    %1065 = vector.extract_strided_slice %1049 {offsets = [2, 0], sizes = [1, 16], strides = [1, 1]} : vector<16x16xf32> to vector<1x16xf32>
    %1066 = vector.broadcast %1065 : vector<1x16xf32> to vector<4x16xf32>
    %1067 = arith.addf %1064, %1066 : vector<4x16xf32>
    %1068 = vector.extract_strided_slice %771 {offsets = [0, 3], sizes = [4, 1], strides = [1, 1]} : vector<4x16xf32> to vector<4x1xf32>
    %1069 = vector.broadcast %1068 : vector<4x1xf32> to vector<4x16xf32>
    %1070 = arith.addf %493, %1069 : vector<4x16xf32>
    %1071 = vector.extract_strided_slice %1049 {offsets = [3, 0], sizes = [1, 16], strides = [1, 1]} : vector<16x16xf32> to vector<1x16xf32>
    %1072 = vector.broadcast %1071 : vector<1x16xf32> to vector<4x16xf32>
    %1073 = arith.addf %1070, %1072 : vector<4x16xf32>
    %1074 = vector.extract_strided_slice %771 {offsets = [0, 4], sizes = [4, 1], strides = [1, 1]} : vector<4x16xf32> to vector<4x1xf32>
    %1075 = vector.broadcast %1074 : vector<4x1xf32> to vector<4x16xf32>
    %1076 = arith.addf %493, %1075 : vector<4x16xf32>
    %1077 = vector.extract_strided_slice %1049 {offsets = [4, 0], sizes = [1, 16], strides = [1, 1]} : vector<16x16xf32> to vector<1x16xf32>
    %1078 = vector.broadcast %1077 : vector<1x16xf32> to vector<4x16xf32>
    %1079 = arith.addf %1076, %1078 : vector<4x16xf32>
    %1080 = vector.extract_strided_slice %771 {offsets = [0, 5], sizes = [4, 1], strides = [1, 1]} : vector<4x16xf32> to vector<4x1xf32>
    %1081 = vector.broadcast %1080 : vector<4x1xf32> to vector<4x16xf32>
    %1082 = arith.addf %493, %1081 : vector<4x16xf32>
    %1083 = vector.extract_strided_slice %1049 {offsets = [5, 0], sizes = [1, 16], strides = [1, 1]} : vector<16x16xf32> to vector<1x16xf32>
    %1084 = vector.broadcast %1083 : vector<1x16xf32> to vector<4x16xf32>
    %1085 = arith.addf %1082, %1084 : vector<4x16xf32>
    %1086 = vector.extract_strided_slice %771 {offsets = [0, 6], sizes = [4, 1], strides = [1, 1]} : vector<4x16xf32> to vector<4x1xf32>
    %1087 = vector.broadcast %1086 : vector<4x1xf32> to vector<4x16xf32>
    %1088 = arith.addf %493, %1087 : vector<4x16xf32>
    %1089 = vector.extract_strided_slice %1049 {offsets = [6, 0], sizes = [1, 16], strides = [1, 1]} : vector<16x16xf32> to vector<1x16xf32>
    %1090 = vector.broadcast %1089 : vector<1x16xf32> to vector<4x16xf32>
    %1091 = arith.addf %1088, %1090 : vector<4x16xf32>
    %1092 = vector.extract_strided_slice %771 {offsets = [0, 7], sizes = [4, 1], strides = [1, 1]} : vector<4x16xf32> to vector<4x1xf32>
    %1093 = vector.broadcast %1092 : vector<4x1xf32> to vector<4x16xf32>
    %1094 = arith.addf %493, %1093 : vector<4x16xf32>
    %1095 = vector.extract_strided_slice %1049 {offsets = [7, 0], sizes = [1, 16], strides = [1, 1]} : vector<16x16xf32> to vector<1x16xf32>
    %1096 = vector.broadcast %1095 : vector<1x16xf32> to vector<4x16xf32>
    %1097 = arith.addf %1094, %1096 : vector<4x16xf32>
    %1098 = vector.extract_strided_slice %771 {offsets = [0, 8], sizes = [4, 1], strides = [1, 1]} : vector<4x16xf32> to vector<4x1xf32>
    %1099 = vector.broadcast %1098 : vector<4x1xf32> to vector<4x16xf32>
    %1100 = arith.addf %493, %1099 : vector<4x16xf32>
    %1101 = vector.extract_strided_slice %1049 {offsets = [8, 0], sizes = [1, 16], strides = [1, 1]} : vector<16x16xf32> to vector<1x16xf32>
    %1102 = vector.broadcast %1101 : vector<1x16xf32> to vector<4x16xf32>
    %1103 = arith.addf %1100, %1102 : vector<4x16xf32>
    %1104 = vector.extract_strided_slice %771 {offsets = [0, 9], sizes = [4, 1], strides = [1, 1]} : vector<4x16xf32> to vector<4x1xf32>
    %1105 = vector.broadcast %1104 : vector<4x1xf32> to vector<4x16xf32>
    %1106 = arith.addf %493, %1105 : vector<4x16xf32>
    %1107 = vector.extract_strided_slice %1049 {offsets = [9, 0], sizes = [1, 16], strides = [1, 1]} : vector<16x16xf32> to vector<1x16xf32>
    %1108 = vector.broadcast %1107 : vector<1x16xf32> to vector<4x16xf32>
    %1109 = arith.addf %1106, %1108 : vector<4x16xf32>
    %1110 = vector.extract_strided_slice %771 {offsets = [0, 10], sizes = [4, 1], strides = [1, 1]} : vector<4x16xf32> to vector<4x1xf32>
    %1111 = vector.broadcast %1110 : vector<4x1xf32> to vector<4x16xf32>
    %1112 = arith.addf %493, %1111 : vector<4x16xf32>
    %1113 = vector.extract_strided_slice %1049 {offsets = [10, 0], sizes = [1, 16], strides = [1, 1]} : vector<16x16xf32> to vector<1x16xf32>
    %1114 = vector.broadcast %1113 : vector<1x16xf32> to vector<4x16xf32>
    %1115 = arith.addf %1112, %1114 : vector<4x16xf32>
    %1116 = vector.extract_strided_slice %771 {offsets = [0, 11], sizes = [4, 1], strides = [1, 1]} : vector<4x16xf32> to vector<4x1xf32>
    %1117 = vector.broadcast %1116 : vector<4x1xf32> to vector<4x16xf32>
    %1118 = arith.addf %493, %1117 : vector<4x16xf32>
    %1119 = vector.extract_strided_slice %1049 {offsets = [11, 0], sizes = [1, 16], strides = [1, 1]} : vector<16x16xf32> to vector<1x16xf32>
    %1120 = vector.broadcast %1119 : vector<1x16xf32> to vector<4x16xf32>
    %1121 = arith.addf %1118, %1120 : vector<4x16xf32>
    %1122 = vector.extract_strided_slice %771 {offsets = [0, 12], sizes = [4, 1], strides = [1, 1]} : vector<4x16xf32> to vector<4x1xf32>
    %1123 = vector.broadcast %1122 : vector<4x1xf32> to vector<4x16xf32>
    %1124 = arith.addf %493, %1123 : vector<4x16xf32>
    %1125 = vector.extract_strided_slice %1049 {offsets = [12, 0], sizes = [1, 16], strides = [1, 1]} : vector<16x16xf32> to vector<1x16xf32>
    %1126 = vector.broadcast %1125 : vector<1x16xf32> to vector<4x16xf32>
    %1127 = arith.addf %1124, %1126 : vector<4x16xf32>
    %1128 = vector.extract_strided_slice %771 {offsets = [0, 13], sizes = [4, 1], strides = [1, 1]} : vector<4x16xf32> to vector<4x1xf32>
    %1129 = vector.broadcast %1128 : vector<4x1xf32> to vector<4x16xf32>
    %1130 = arith.addf %493, %1129 : vector<4x16xf32>
    %1131 = vector.extract_strided_slice %1049 {offsets = [13, 0], sizes = [1, 16], strides = [1, 1]} : vector<16x16xf32> to vector<1x16xf32>
    %1132 = vector.broadcast %1131 : vector<1x16xf32> to vector<4x16xf32>
    %1133 = arith.addf %1130, %1132 : vector<4x16xf32>
    %1134 = vector.extract_strided_slice %771 {offsets = [0, 14], sizes = [4, 1], strides = [1, 1]} : vector<4x16xf32> to vector<4x1xf32>
    %1135 = vector.broadcast %1134 : vector<4x1xf32> to vector<4x16xf32>
    %1136 = arith.addf %493, %1135 : vector<4x16xf32>
    %1137 = vector.extract_strided_slice %1049 {offsets = [14, 0], sizes = [1, 16], strides = [1, 1]} : vector<16x16xf32> to vector<1x16xf32>
    %1138 = vector.broadcast %1137 : vector<1x16xf32> to vector<4x16xf32>
    %1139 = arith.addf %1136, %1138 : vector<4x16xf32>
    %1140 = vector.extract_strided_slice %771 {offsets = [0, 15], sizes = [4, 1], strides = [1, 1]} : vector<4x16xf32> to vector<4x1xf32>
    %1141 = vector.broadcast %1140 : vector<4x1xf32> to vector<4x16xf32>
    %1142 = arith.addf %493, %1141 : vector<4x16xf32>
    %1143 = vector.extract_strided_slice %1049 {offsets = [15, 0], sizes = [1, 16], strides = [1, 1]} : vector<16x16xf32> to vector<1x16xf32>
    %1144 = vector.broadcast %1143 : vector<1x16xf32> to vector<4x16xf32>
    %1145 = arith.addf %1142, %1144 : vector<4x16xf32>
    %1146 = tpu.concatenate %1055, %1061, %1067, %1073, %1079, %1085, %1091, %1097, %1103, %1109, %1115, %1121, %1127, %1133, %1139, %1145 in 1 : vector<4x16xf32>, vector<4x16xf32>, vector<4x16xf32>, vector<4x16xf32>, vector<4x16xf32>, vector<4x16xf32>, vector<4x16xf32>, vector<4x16xf32>, vector<4x16xf32>, vector<4x16xf32>, vector<4x16xf32>, vector<4x16xf32>, vector<4x16xf32>, vector<4x16xf32>, vector<4x16xf32>, vector<4x16xf32> -> vector<4x256xf32>
    %cst_485 = arith.constant 0.333333343 : f32
    %1147 = vector.broadcast %cst_485 : f32 to vector<4x256xf32>
    %1148 = arith.mulf %1146, %1147 : vector<4x256xf32>
    %c0_i32_486 = arith.constant 0 : i32
    %c0_i32_487 = arith.constant 0 : i32
    %c0_i32_488 = arith.constant 0 : i32
    %1149 = tpu.memref_slice %arg3[%c0_i32_486, %c0_i32_487, %c0_i32_488] : memref<1x4x256xf32, #tpu.memory_space<vmem>> -> memref<1x4x256xf32, #tpu.memory_space<vmem>>
    %1150 = tpu.memref_squeeze %1149 : memref<1x4x256xf32, #tpu.memory_space<vmem>> -> memref<4x256xf32, #tpu.memory_space<vmem>>
    %c0_489 = arith.constant 0 : index
    %c0_490 = arith.constant 0 : index
    %1151 = vector.load %1150[%c0_489, %c0_490] : memref<4x256xf32, #tpu.memory_space<vmem>>, vector<4x256xf32>
    tpu.vector_store %1150[%c0_489, %c0_490], %1148 {strides = array<i32>} : memref<4x256xf32, #tpu.memory_space<vmem>>, vector<4x256xf32>,
    return
  }
  func.func @transform_0(%arg0: i32, %arg1: memref<3x50xf32, #tpu.memory_space<smem>>) -> (i32, i32, i32) {
    %c0_i32 = arith.constant 0 : i32
    %c0_i32_0 = arith.constant 0 : i32
    %c0_i32_1 = arith.constant 0 : i32
    return %arg0, %c0_i32, %c0_i32_0 : i32, i32, i32
  }
  func.func @transform_1(%arg0: i32, %arg1: memref<3x50xf32, #tpu.memory_space<smem>>) -> (i32, i32, i32) {
    %c0_i32 = arith.constant 0 : i32
    %c0_i32_0 = arith.constant 0 : i32
    %c0_i32_1 = arith.constant 0 : i32
    return %arg0, %c0_i32, %c0_i32_0 : i32, i32, i32
  }
}

</mosaic_0001>

<llo_original>
// kernel: tpu_custom_call.1
$region0: #{tpu_custom_call.1}
  #allocation0 [shape = 'u32[]', space=smem, size = 0x4, offset = 0x4, fixed_abs, tag = 'smem constant byte address 0x4 - core index']
  #allocation1 [shape = 'u32[144,128]{1,0:T(1,128)}', space=vmem, size = 0x12000, scoped, tag = 'internal scratch']
  #allocation2 [shape = 'f32[16,20]{1,0:T(8,128)}', space=vmem, size = 0x2000, scoped, tag = 'scratch operand']
  #allocation3 [shape = 'f32[16,20]{1,0:T(8,128)}', space=vmem, size = 0x2000, scoped, tag = 'scratch operand']
  #allocation4 [shape = 'f32[40,20]{1,0:T(8,128)}', space=vmem, size = 0x5000, scoped, tag = 'scratch operand']
  #allocation5 [shape = 's32[1]{0}', space=sflag, size = 0x4, scoped, tag = 'scoped memory for tpu_custom_call.1']
  #allocation6 [shape = 'u8[2048]{0}', space=smem, size = 0x800, scoped, tag = 'prefetched SMEM operand 0']
  %s0 = inlined_call_operand.hbm [shape: f32[3,50], index: 0, kind: input, shape index: {}]
  %s1 = inlined_call_operand.hbm [shape: f32[2,4,256], index: 1, kind: input, shape index: {}]
  %s2 = inlined_call_operand.hbm [shape: f32[2,4,256], index: 2, kind: output, shape index: {}]
  %s3 = sld [smem:[#allocation0]]
  $region41: #{tpu_custom_call.1} parent=0
    _
  %s5 = ssub.s32 1, %s3
  %s6 = scalar_select 0, %s5, %s3
  %8 = dma.hbm_to_smem %s0, 64, [#allocation6], [#allocation5]
  %9 = dma.done [#allocation5], 64
  %10 = sfence
  $region1: #{tpu_custom_call.1} parent=0
    #allocation7 [shape = 'u8[8192]{0}', space=vmem, size = 0x2000, scoped, tag = 'input window, operand 1']
    #allocation8 [shape = 's32[2]{0}', space=sflag, size = 0x8, scoped, tag = 'scoped memory for tpu_custom_call.1']
    #allocation9 [shape = 's32[2]{0}', space=sflag, size = 0x8, scoped, tag = 'scoped memory for tpu_custom_call.1']
    #allocation10 [shape = 'u8[8192]{0}', space=vmem, size = 0x2000, scoped, tag = 'output window, operand 0']
    %11 = vsyncpa [#allocation8], 0
    %s12 = scalar_lea.sflag [#allocation8], 1
    %13 = vsyncpa %s12, 0
    %14 = vsyncpa [#allocation9], 0
    %s15 = scalar_lea.sflag [#allocation9], 1
    %16 = vsyncpa %s15, 0
    loop: start=0, step=1, limit=4
    $region2: #{tpu_custom_call.1} parent=1 // loop_pre_header
      _
    $region3: #{tpu_custom_call.1} parent=1 // loop_header
      %s18 = sphi 0, %s22
      %p19 = scmp.ge.s32.totalorder %s18, 4
      %s28 = sphi 0, %s30
      %s31 = sphi 0, %s28
      %s32 = sphi 0, %s31
      %s48 = sphi 0, %s32
      %s54 = sphi 0, %s56
      %s57 = sphi 0, %s54
      %s58 = sphi 0, %s57
      %s74 = sphi 0, %s58
    $region4: #{tpu_custom_call.1} parent=1 // loop_header_branch
      %21 = sbr.rel (%p19) target = $region8
    $region5: #{tpu_custom_call.1} parent=1 // loop_body
      %s23 = ssub.s32 %s18, 1
      %s24 = ssub.s32 %s18, 2
      %s25 = sadd.s32 %s18, 1
      %s26 = ssub.s32 %s18, %s25
      %p27 = scmp.eq.s32.totalorder %s26, 0
      %s29 = sadd.s32 %s28, 1
      %s30 = scalar_select %p27, %s28, %s29
      %p33 = pneg %p27
      %p34 = scmp.eq.s32.totalorder %s18, 1
      %p35 = por %p33, %p34
      %p36 = scmp.ne.s32.totalorder %s28, %s31
      %p37 = scmp.eq.s32.totalorder %s18, 0
      %p38 = por %p36, %p37
      %p39 = scmp.ne.s32.totalorder %s28, %s31
      %p40 = scmp.eq.s32.totalorder %s23, 1
      %p41 = por %p39, %p40
      %p42 = scmp.ne.s32.totalorder %s31, %s32
      %p43 = scmp.eq.s32.totalorder %s23, 0
      %p44 = por %p42, %p43
      %p45 = scmp.ne.s32.totalorder %s31, %s32
      %p46 = scmp.eq.s32.totalorder %s24, 1
      %p47 = por %p45, %p46
      %p49 = scmp.ne.s32.totalorder %s32, %s48
      %p50 = scmp.eq.s32.totalorder %s24, 0
      %p51 = por %p49, %p50
      %s52 = ssub.s32 %s18, %s25
      %p53 = scmp.eq.s32.totalorder %s52, 0
      %s55 = sadd.s32 %s54, 1
      %s56 = scalar_select %p53, %s54, %s55
      %p59 = pneg %p53
      %p60 = scmp.eq.s32.totalorder %s18, 1
      %p61 = por %p59, %p60
      %p62 = scmp.ne.s32.totalorder %s54, %s57
      %p63 = scmp.eq.s32.totalorder %s18, 0
      %p64 = por %p62, %p63
      %p65 = scmp.ne.s32.totalorder %s54, %s57
      %p66 = scmp.eq.s32.totalorder %s23, 1
      %p67 = por %p65, %p66
      %p68 = scmp.ne.s32.totalorder %s57, %s58
      %p69 = scmp.eq.s32.totalorder %s23, 0
      %p70 = por %p68, %p69
      %p71 = scmp.ne.s32.totalorder %s57, %s58
      %p72 = scmp.eq.s32.totalorder %s24, 1
      %p73 = por %p71, %p72
      %p75 = scmp.ne.s32.totalorder %s58, %s74
      %p76 = scmp.eq.s32.totalorder %s24, 0
      %p77 = por %p75, %p76
      %p78 = scmp.le.s32.totalorder 1, %s18
      %p79 = scmp.lt.s32.totalorder %s18, 3
      %p80 = pnand %p78, %p79
      %p81 = pneg %p80
      // Predicated region
      $region9: #{tpu_custom_call.1} parent=5 // pred_check
        _
      $region10: #{tpu_custom_call.1} parent=5 // pred_check_branch
        %83 = sbr.rel (%p80) target = $region12
      $region11: #{tpu_custom_call.1} parent=5 // pred_region
        %s84 = ssub.s32 %s18, 1
      $region12: #{tpu_custom_call.1} parent=5 // pred_fallthru
        _
      %p85 = scmp.lt.s32.totalorder %s18, 2
      // Predicated region
      $region13: #{tpu_custom_call.1} parent=5 // pred_check
        %p86 = pneg %p85
      $region14: #{tpu_custom_call.1} parent=5 // pred_check_branch
        %88 = sbr.rel (%p86) target = $region16
      $region15: #{tpu_custom_call.1} parent=5 // pred_region
        // Predicated region
        $region17: #{tpu_custom_call.1} parent=15 // pred_check
          %p89 = pneg %p38
        $region18: #{tpu_custom_call.1} parent=15 // pred_check_branch
          %91 = sbr.rel (%p89) target = $region20
        $region19: #{tpu_custom_call.1} parent=15 // pred_region
          %s92 = sand.u32 %s28, 1
          %s93 = scalar_lea.sflag [#allocation8], %s92
          %s94 = sand.u32 %s28, 1
          %s95 = smul.addr %s94, 8
          %s96 = scalar_lea.vmem [#allocation7], %s95
          %s98 = ssub.s32 128, 128
          %99 = vsyncadd %s93, %s98
          %s100 = smul.addr %s18, 2
          %s101 = smul.addr %s100, 64
          %s102 = scalar_lea.hbm %s1, %s101
          %s104 = sshll.u32 %s96, 4
          %s105 = int_to_ptr.vmem [resolvable:$true] %s104
          %107 = dma.hbm_to_vmem [thread:$0]  %s102, 128, %s105, %s93
        $region20: #{tpu_custom_call.1} parent=15 // pred_fallthru
          _
      $region16: #{tpu_custom_call.1} parent=5 // pred_fallthru
        _
      %p108 = scmp.le.s32.totalorder 1, %s18
      %p109 = scmp.lt.s32.totalorder %s18, 3
      %p110 = pnand %p108, %p109
      %p111 = pneg %p110
      // Predicated region
      $region21: #{tpu_custom_call.1} parent=5 // pred_check
        _
      $region22: #{tpu_custom_call.1} parent=5 // pred_check_branch
        %113 = sbr.rel (%p110) target = $region24
      $region23: #{tpu_custom_call.1} parent=5 // pred_region
        %s114 = ssub.s32 %s18, 1
        %s115 = sand.u32 %s31, 1
        %s116 = scalar_lea.sflag [#allocation8], %s115
        %s117 = sand.u32 %s31, 1
        %s118 = smul.addr %s117, 8
        %s119 = scalar_lea.vmem [#allocation7], %s118
        // Predicated region
        $region25: #{tpu_custom_call.1} parent=23 // pred_check
          %p120 = pneg %p44
        $region26: #{tpu_custom_call.1} parent=23 // pred_check_branch
          %122 = sbr.rel (%p120) target = $region28
        $region27: #{tpu_custom_call.1} parent=23 // pred_region
          %123 = dma.done %s116, 128
        $region28: #{tpu_custom_call.1} parent=23 // pred_fallthru
          _
        %s124 = sand.u32 %s31, 1
        %s125 = scalar_lea.sflag [#allocation8], %s124
        %s126 = sand.u32 %s31, 1
        %s127 = smul.addr %s126, 8
        %s128 = scalar_lea.vmem [#allocation7], %s127
        %p129 = pneg %p44
        %p130 = pneg %p41
        %p131 = pneg %p70
        %p132 = pneg %p67
        %s133 = sand.u32 %s57, 1
        %s134 = scalar_lea.sflag [#allocation9], %s133
        %s135 = sand.u32 %s57, 1
        %s136 = smul.addr %s135, 8
        %s137 = scalar_lea.vmem [#allocation10], %s136
        %v138 = vld [vmem:[%s119] sm:$0xf]
        %vm139 = vcmask 125952
        %v140 = vsel %vm139, %v138, -inf
        %141 = vmax.xlane.f32.xlu0 %v140
        %v142 = vpop.xlane.xlu0 %141
        %v143 = vsel %vm139, %v138, 0.0
        %144 = vadd.xlane.f32.xlu0 %v143
        %v145 = vpop.xlane.xlu0 %144
        %v146 = vrot.slane %v140, 4
        %v147 = vmax.f32 %v140, %v146
        %v148 = vrot.slane %v147, 2
        %v149 = vmax.f32 %v147, %v148
        %v150 = vrot.slane %v149, 1
        %v151 = vmax.f32 %v149, %v150
        %v152 = vrot.slane %v143, 4
        %v153 = vadd.f32 %v143, %v152
        %v154 = vrot.slane %v153, 2
        %v155 = vadd.f32 %v153, %v154
        %v156 = vrot.slane %v155, 1
        %v157 = vadd.f32 %v155, %v156
        %159 = vrot.lane.b32.xlu0 %v138, 112
        %v160 = vpop.permute.xlu0 %159
        %v162 = vmax.f32 %v138, %v160
        %v163 = vadd.f32 %v138, %v160
        %vm164 = vcmask 257152
        %v165 = vsel %vm164, %v138, -inf
        %166 = vmax.xlane.f32.xlu0 %v165
        %v167 = vpop.xlane.xlu0 %166
        %v168 = vsel %vm139, %v160, 0.0
        %169 = vadd.xlane.f32.xlu0 %v168
        %v170 = vpop.xlane.xlu0 %169
        %v171 = vrot.slane %v165, 4
        %v172 = vmax.f32 %v165, %v171
        %v173 = vrot.slane %v172, 2
        %v174 = vmax.f32 %v172, %v173
        %v175 = vrot.slane %v174, 1
        %v176 = vmax.f32 %v174, %v175
        %v177 = vsel %vm164, %v138, 0.0
        %v178 = vrot.slane %v177, 4
        %v179 = vadd.f32 %v177, %v178
        %v180 = vrot.slane %v179, 2
        %v181 = vadd.f32 %v179, %v180
        %v182 = vrot.slane %v181, 1
        %v183 = vadd.f32 %v181, %v182
        %184 = vrot.lane.b32.xlu0 %v138, 96
        %v185 = vpop.permute.xlu0 %184
        %v187 = vmax.f32 %v162, %v185
        %v188 = vadd.f32 %v163, %v185
        %vm189 = vcmask 388352
        %v190 = vsel %vm189, %v138, -inf
        %191 = vmax.xlane.f32.xlu0 %v190
        %v192 = vpop.xlane.xlu0 %191
        %v193 = vsel %vm139, %v185, 0.0
        %194 = vadd.xlane.f32.xlu0 %v193
        %v195 = vpop.xlane.xlu0 %194
        %v196 = vrot.slane %v190, 4
        %v197 = vmax.f32 %v190, %v196
        %v198 = vrot.slane %v197, 2
        %v199 = vmax.f32 %v197, %v198
        %v200 = vrot.slane %v199, 1
        %v201 = vmax.f32 %v199, %v200
        %v202 = vsel %vm189, %v138, 0.0
        %v203 = vrot.slane %v202, 4
        %v204 = vadd.f32 %v202, %v203
        %v205 = vrot.slane %v204, 2
        %v206 = vadd.f32 %v204, %v205
        %v207 = vrot.slane %v206, 1
        %v208 = vadd.f32 %v206, %v207
        %209 = vrot.lane.b32.xlu0 %v138, 80
        %v210 = vpop.permute.xlu0 %209
        %v212 = vmax.f32 %v187, %v210
        %v213 = vadd.f32 %v188, %v210
        %vm214 = vcmask 519552
        %v215 = vsel %vm214, %v138, -inf
        %216 = vmax.xlane.f32.xlu0 %v215
        %v217 = vpop.xlane.xlu0 %216
        %v218 = vsel %vm139, %v210, 0.0
        %219 = vadd.xlane.f32.xlu0 %v218
        %v220 = vpop.xlane.xlu0 %219
        %v221 = vrot.slane %v215, 4
        %v222 = vmax.f32 %v215, %v221
        %v223 = vrot.slane %v222, 2
        %v224 = vmax.f32 %v222, %v223
        %v225 = vrot.slane %v224, 1
        %v226 = vmax.f32 %v224, %v225
        %v227 = vsel %vm214, %v138, 0.0
        %v228 = vrot.slane %v227, 4
        %v229 = vadd.f32 %v227, %v228
        %v230 = vrot.slane %v229, 2
        %v231 = vadd.f32 %v229, %v230
        %v232 = vrot.slane %v231, 1
        %v233 = vadd.f32 %v231, %v232
        %234 = vrot.lane.b32.xlu0 %v138, 64
        %v235 = vpop.permute.xlu0 %234
        %v237 = vmax.f32 %v212, %v235
        %v238 = vadd.f32 %v213, %v235
        %vm239 = vcmask 650752
        %v240 = vsel %vm239, %v138, -inf
        %241 = vmax.xlane.f32.xlu0 %v240
        %v242 = vpop.xlane.xlu0 %241
        %v243 = vsel %vm139, %v235, 0.0
        %244 = vadd.xlane.f32.xlu0 %v243
        %v245 = vpop.xlane.xlu0 %244
        %v246 = vrot.slane %v240, 4
        %v247 = vmax.f32 %v240, %v246
        %v248 = vrot.slane %v247, 2
        %v249 = vmax.f32 %v247, %v248
        %v250 = vrot.slane %v249, 1
        %v251 = vmax.f32 %v249, %v250
        %v252 = vsel %vm239, %v138, 0.0
        %v253 = vrot.slane %v252, 4
        %v254 = vadd.f32 %v252, %v253
        %v255 = vrot.slane %v254, 2
        %v256 = vadd.f32 %v254, %v255
        %v257 = vrot.slane %v256, 1
        %v258 = vadd.f32 %v256, %v257
        %259 = vrot.lane.b32.xlu0 %v138, 48
        %v260 = vpop.permute.xlu0 %259
        %v262 = vmax.f32 %v237, %v260
        %v263 = vadd.f32 %v238, %v260
        %vm264 = vcmask 781952
        %v265 = vsel %vm264, %v138, -inf
        %266 = vmax.xlane.f32.xlu0 %v265
        %v267 = vpop.xlane.xlu0 %266
        %v268 = vsel %vm139, %v260, 0.0
        %269 = vadd.xlane.f32.xlu0 %v268
        %v270 = vpop.xlane.xlu0 %269
        %v271 = vrot.slane %v265, 4
        %v272 = vmax.f32 %v265, %v271
        %v273 = vrot.slane %v272, 2
        %v274 = vmax.f32 %v272, %v273
        %v275 = vrot.slane %v274, 1
        %v276 = vmax.f32 %v274, %v275
        %v277 = vsel %vm264, %v138, 0.0
        %v278 = vrot.slane %v277, 4
        %v279 = vadd.f32 %v277, %v278
        %v280 = vrot.slane %v279, 2
        %v281 = vadd.f32 %v279, %v280
        %v282 = vrot.slane %v281, 1
        %v283 = vadd.f32 %v281, %v282
        %284 = vrot.lane.b32.xlu0 %v138, 32
        %v285 = vpop.permute.xlu0 %284
        %v287 = vmax.f32 %v262, %v285
        %v288 = vadd.f32 %v263, %v285
        %vm289 = vcmask 913152
        %v290 = vsel %vm289, %v138, -inf
        %291 = vmax.xlane.f32.xlu0 %v290
        %v292 = vpop.xlane.xlu0 %291
        %v293 = vsel %vm139, %v285, 0.0
        %294 = vadd.xlane.f32.xlu0 %v293
        %v295 = vpop.xlane.xlu0 %294
        %v296 = vrot.slane %v290, 4
        %v297 = vmax.f32 %v290, %v296
        %v298 = vrot.slane %v297, 2
        %v299 = vmax.f32 %v297, %v298
        %v300 = vrot.slane %v299, 1
        %v301 = vmax.f32 %v299, %v300
        %v302 = vsel %vm289, %v138, 0.0
        %v303 = vrot.slane %v302, 4
        %v304 = vadd.f32 %v302, %v303
        %v305 = vrot.slane %v304, 2
        %v306 = vadd.f32 %v304, %v305
        %v307 = vrot.slane %v306, 1
        %v308 = vadd.f32 %v306, %v307
        %309 = vrot.lane.b32.xlu0 %v138, 16
        %v310 = vpop.permute.xlu0 %309
        %v312 = vmax.f32 %v287, %v310
        %v313 = vadd.f32 %v288, %v310
        %vm314 = vcmask 1044352
        %v315 = vsel %vm314, %v138, -inf
        %316 = vmax.xlane.f32.xlu0 %v315
        %v317 = vpop.xlane.xlu0 %316
        %v318 = vsel %vm139, %v310, 0.0
        %319 = vadd.xlane.f32.xlu0 %v318
        %v320 = vpop.xlane.xlu0 %319
        %v321 = vrot.slane %v315, 4
        %v322 = vmax.f32 %v315, %v321
        %v323 = vrot.slane %v322, 2
        %v324 = vmax.f32 %v322, %v323
        %v325 = vrot.slane %v324, 1
        %v326 = vmax.f32 %v324, %v325
        %v327 = vsel %vm314, %v138, 0.0
        %v328 = vrot.slane %v327, 4
        %v329 = vadd.f32 %v327, %v328
        %v330 = vrot.slane %v329, 2
        %v331 = vadd.f32 %v329, %v330
        %v332 = vrot.slane %v331, 1
        %v333 = vadd.f32 %v331, %v332
        %v334 = vld [vmem:[%s119 + $0x4] sm:$0xf]
        %v335 = vmax.f32 %v312, %v334
        %v336 = vadd.f32 %v313, %v334
        %v337 = vsel %vm139, %v334, -inf
        %338 = vmax.xlane.f32.xlu0 %v337
        %v339 = vpop.xlane.xlu0 %338
        %v340 = vsel %vm139, %v334, 0.0
        %341 = vadd.xlane.f32.xlu0 %v340
        %v342 = vpop.xlane.xlu0 %341
        %v343 = vrot.slane %v337, 4
        %v344 = vmax.f32 %v337, %v343
        %v345 = vrot.slane %v344, 2
        %v346 = vmax.f32 %v344, %v345
        %v347 = vrot.slane %v346, 1
        %v348 = vmax.f32 %v346, %v347
        %v349 = vrot.slane %v340, 4
        %v350 = vadd.f32 %v340, %v349
        %v351 = vrot.slane %v350, 2
        %v352 = vadd.f32 %v350, %v351
        %v353 = vrot.slane %v352, 1
        %v354 = vadd.f32 %v352, %v353
        %356 = vrot.lane.b32.xlu0 %v334, 112
        %v357 = vpop.permute.xlu0 %356
        %v359 = vmax.f32 %v335, %v357
        %v360 = vadd.f32 %v336, %v357
        %v361 = vsel %vm164, %v334, -inf
        %362 = vmax.xlane.f32.xlu0 %v361
        %v363 = vpop.xlane.xlu0 %362
        %v364 = vsel %vm139, %v357, 0.0
        %365 = vadd.xlane.f32.xlu0 %v364
        %v366 = vpop.xlane.xlu0 %365
        %v367 = vrot.slane %v361, 4
        %v368 = vmax.f32 %v361, %v367
        %v369 = vrot.slane %v368, 2
        %v370 = vmax.f32 %v368, %v369
        %v371 = vrot.slane %v370, 1
        %v372 = vmax.f32 %v370, %v371
        %v373 = vsel %vm164, %v334, 0.0
        %v374 = vrot.slane %v373, 4
        %v375 = vadd.f32 %v373, %v374
        %v376 = vrot.slane %v375, 2
        %v377 = vadd.f32 %v375, %v376
        %v378 = vrot.slane %v377, 1
        %v379 = vadd.f32 %v377, %v378
        %380 = vrot.lane.b32.xlu0 %v334, 96
        %v381 = vpop.permute.xlu0 %380
        %v383 = vmax.f32 %v359, %v381
        %v384 = vadd.f32 %v360, %v381
        %v385 = vsel %vm189, %v334, -inf
        %386 = vmax.xlane.f32.xlu0 %v385
        %v387 = vpop.xlane.xlu0 %386
        %v388 = vsel %vm139, %v381, 0.0
        %389 = vadd.xlane.f32.xlu0 %v388
        %v390 = vpop.xlane.xlu0 %389
        %v391 = vrot.slane %v385, 4
        %v392 = vmax.f32 %v385, %v391
        %v393 = vrot.slane %v392, 2
        %v394 = vmax.f32 %v392, %v393
        %v395 = vrot.slane %v394, 1
        %v396 = vmax.f32 %v394, %v395
        %v397 = vsel %vm189, %v334, 0.0
        %v398 = vrot.slane %v397, 4
        %v399 = vadd.f32 %v397, %v398
        %v400 = vrot.slane %v399, 2
        %v401 = vadd.f32 %v399, %v400
        %v402 = vrot.slane %v401, 1
        %v403 = vadd.f32 %v401, %v402
        %404 = vrot.lane.b32.xlu0 %v334, 80
        %v405 = vpop.permute.xlu0 %404
        %v407 = vmax.f32 %v383, %v405
        %v408 = vadd.f32 %v384, %v405
        %v409 = vsel %vm214, %v334, -inf
        %410 = vmax.xlane.f32.xlu0 %v409
        %v411 = vpop.xlane.xlu0 %410
        %v412 = vsel %vm139, %v405, 0.0
        %413 = vadd.xlane.f32.xlu0 %v412
        %v414 = vpop.xlane.xlu0 %413
        %v415 = vrot.slane %v409, 4
        %v416 = vmax.f32 %v409, %v415
        %v417 = vrot.slane %v416, 2
        %v418 = vmax.f32 %v416, %v417
        %v419 = vrot.slane %v418, 1
        %v420 = vmax.f32 %v418, %v419
        %v421 = vsel %vm214, %v334, 0.0
        %v422 = vrot.slane %v421, 4
        %v423 = vadd.f32 %v421, %v422
        %v424 = vrot.slane %v423, 2
        %v425 = vadd.f32 %v423, %v424
        %v426 = vrot.slane %v425, 1
        %v427 = vadd.f32 %v425, %v426
        %428 = vrot.lane.b32.xlu0 %v334, 64
        %v429 = vpop.permute.xlu0 %428
        %v431 = vmax.f32 %v407, %v429
        %v432 = vadd.f32 %v408, %v429
        %v433 = vsel %vm239, %v334, -inf
        %434 = vmax.xlane.f32.xlu0 %v433
        %v435 = vpop.xlane.xlu0 %434
        %v436 = vsel %vm139, %v429, 0.0
        %437 = vadd.xlane.f32.xlu0 %v436
        %v438 = vpop.xlane.xlu0 %437
        %v439 = vrot.slane %v433, 4
        %v440 = vmax.f32 %v433, %v439
        %v441 = vrot.slane %v440, 2
        %v442 = vmax.f32 %v440, %v441
        %v443 = vrot.slane %v442, 1
        %v444 = vmax.f32 %v442, %v443
        %v445 = vsel %vm239, %v334, 0.0
        %v446 = vrot.slane %v445, 4
        %v447 = vadd.f32 %v445, %v446
        %v448 = vrot.slane %v447, 2
        %v449 = vadd.f32 %v447, %v448
        %v450 = vrot.slane %v449, 1
        %v451 = vadd.f32 %v449, %v450
        %452 = vrot.lane.b32.xlu0 %v334, 48
        %v453 = vpop.permute.xlu0 %452
        %v455 = vmax.f32 %v431, %v453
        %v456 = vadd.f32 %v432, %v453
        %v457 = vsel %vm264, %v334, -inf
        %458 = vmax.xlane.f32.xlu0 %v457
        %v459 = vpop.xlane.xlu0 %458
        %v460 = vsel %vm139, %v453, 0.0
        %461 = vadd.xlane.f32.xlu0 %v460
        %v462 = vpop.xlane.xlu0 %461
        %v463 = vrot.slane %v457, 4
        %v464 = vmax.f32 %v457, %v463
        %v465 = vrot.slane %v464, 2
        %v466 = vmax.f32 %v464, %v465
        %v467 = vrot.slane %v466, 1
        %v468 = vmax.f32 %v466, %v467
        %v469 = vsel %vm264, %v334, 0.0
        %v470 = vrot.slane %v469, 4
        %v471 = vadd.f32 %v469, %v470
        %v472 = vrot.slane %v471, 2
        %v473 = vadd.f32 %v471, %v472
        %v474 = vrot.slane %v473, 1
        %v475 = vadd.f32 %v473, %v474
        %476 = vrot.lane.b32.xlu0 %v334, 32
        %v477 = vpop.permute.xlu0 %476
        %v479 = vmax.f32 %v455, %v477
        %v480 = vadd.f32 %v456, %v477
        %v481 = vsel %vm289, %v334, -inf
        %482 = vmax.xlane.f32.xlu0 %v481
        %v483 = vpop.xlane.xlu0 %482
        %v484 = vsel %vm139, %v477, 0.0
        %485 = vadd.xlane.f32.xlu0 %v484
        %v486 = vpop.xlane.xlu0 %485
        %v487 = vrot.slane %v481, 4
        %v488 = vmax.f32 %v481, %v487
        %v489 = vrot.slane %v488, 2
        %v490 = vmax.f32 %v488, %v489
        %v491 = vrot.slane %v490, 1
        %v492 = vmax.f32 %v490, %v491
        %v493 = vsel %vm289, %v334, 0.0
        %v494 = vrot.slane %v493, 4
        %v495 = vadd.f32 %v493, %v494
        %v496 = vrot.slane %v495, 2
        %v497 = vadd.f32 %v495, %v496
        %v498 = vrot.slane %v497, 1
        %v499 = vadd.f32 %v497, %v498
        %500 = vrot.lane.b32.xlu0 %v334, 16
        %v501 = vpop.permute.xlu0 %500
        %v503 = vmax.f32 %v479, %v501
        %v504 = vadd.f32 %v480, %v501
        %v505 = vsel %vm314, %v334, -inf
        %506 = vmax.xlane.f32.xlu0 %v505
        %v507 = vpop.xlane.xlu0 %506
        %v508 = vsel %vm139, %v501, 0.0
        %509 = vadd.xlane.f32.xlu0 %v508
        %v510 = vpop.xlane.xlu0 %509
        %v511 = vrot.slane %v505, 4
        %v512 = vmax.f32 %v505, %v511
        %v513 = vrot.slane %v512, 2
        %v514 = vmax.f32 %v512, %v513
        %v515 = vrot.slane %v514, 1
        %v516 = vmax.f32 %v514, %v515
        %v517 = vsel %vm314, %v334, 0.0
        %v518 = vrot.slane %v517, 4
        %v519 = vadd.f32 %v517, %v518
        %v520 = vrot.slane %v519, 2
        %v521 = vadd.f32 %v519, %v520
        %v522 = vrot.slane %v521, 1
        %v523 = vadd.f32 %v521, %v522
        %v524 = vmul.f32 %v504, 0.0625
        %vm525 = vcmask 7168
        %v526 = vsel %vm525, %v142, %v167
        %vm527 = vcmask 15360
        %v528 = vsel %vm527, %v526, %v192
        %vm529 = vcmask 23552
        %v530 = vsel %vm529, %v528, %v217
        %vm531 = vcmask 31744
        %v532 = vsel %vm531, %v530, %v242
        %vm533 = vcmask 39936
        %v534 = vsel %vm533, %v532, %v267
        %vm535 = vcmask 48128
        %v536 = vsel %vm535, %v534, %v292
        %vm537 = vcmask 56320
        %v538 = vsel %vm537, %v536, %v317
        %vm539 = vcmask 64512
        %v540 = vsel %vm539, %v538, %v339
        %vm541 = vcmask 72704
        %v542 = vsel %vm541, %v540, %v363
        %vm543 = vcmask 80896
        %v544 = vsel %vm543, %v542, %v387
        %vm545 = vcmask 89088
        %v546 = vsel %vm545, %v544, %v411
        %vm547 = vcmask 97280
        %v548 = vsel %vm547, %v546, %v435
        %vm549 = vcmask 105472
        %v550 = vsel %vm549, %v548, %v459
        %vm551 = vcmask 113664
        %v552 = vsel %vm551, %v550, %v483
        %vm553 = vcmask 121856
        %v554 = vsel %vm553, %v552, %v507
        %v555 = vsel %vm525, %v145, %v170
        %v556 = vsel %vm527, %v555, %v195
        %v557 = vsel %vm529, %v556, %v220
        %v558 = vsel %vm531, %v557, %v245
        %v559 = vsel %vm533, %v558, %v270
        %v560 = vsel %vm535, %v559, %v295
        %v561 = vsel %vm537, %v560, %v320
        %v562 = vsel %vm539, %v561, %v342
        %v563 = vsel %vm541, %v562, %v366
        %v564 = vsel %vm543, %v563, %v390
        %v565 = vsel %vm545, %v564, %v414
        %v566 = vsel %vm547, %v565, %v438
        %v567 = vsel %vm549, %v566, %v462
        %v568 = vsel %vm551, %v567, %v486
        %v569 = vsel %vm553, %v568, %v510
        %v570 = vmul.f32 %v569, 0.0625
        %572 = vrot.lane.b32.xlu0 %v176, 112
        %v573 = vpop.permute.xlu0 %572
        %576 = vrot.lane.b32.xlu0 %v201, 96
        %v577 = vpop.permute.xlu0 %576
        %580 = vrot.lane.b32.xlu0 %v226, 80
        %v581 = vpop.permute.xlu0 %580
        %584 = vrot.lane.b32.xlu0 %v251, 64
        %v585 = vpop.permute.xlu0 %584
        %588 = vrot.lane.b32.xlu0 %v276, 48
        %v589 = vpop.permute.xlu0 %588
        %592 = vrot.lane.b32.xlu0 %v301, 32
        %v593 = vpop.permute.xlu0 %592
        %596 = vrot.lane.b32.xlu0 %v326, 16
        %v597 = vpop.permute.xlu0 %596
        %600 = vrot.lane.b32.xlu0 %v372, 112
        %v601 = vpop.permute.xlu0 %600
        %604 = vrot.lane.b32.xlu0 %v396, 96
        %v605 = vpop.permute.xlu0 %604
        %608 = vrot.lane.b32.xlu0 %v420, 80
        %v609 = vpop.permute.xlu0 %608
        %612 = vrot.lane.b32.xlu0 %v444, 64
        %v613 = vpop.permute.xlu0 %612
        %616 = vrot.lane.b32.xlu0 %v468, 48
        %v617 = vpop.permute.xlu0 %616
        %620 = vrot.lane.b32.xlu0 %v492, 32
        %v621 = vpop.permute.xlu0 %620
        %624 = vrot.lane.b32.xlu0 %v516, 16
        %v625 = vpop.permute.xlu0 %624
        %vm627 = vcmask 1040384
        %v628 = vsel %vm627, %v151, %v573
        %vm629 = vcmask 1041408
        %v630 = vsel %vm629, %v628, %v577
        %vm631 = vcmask 1042432
        %v632 = vsel %vm631, %v630, %v581
        %vm633 = vcmask 1043456
        %v634 = vsel %vm633, %v632, %v585
        %vm635 = vcmask 1044480
        %v636 = vsel %vm635, %v634, %v589
        %vm637 = vcmask 1045504
        %v638 = vsel %vm637, %v636, %v593
        %vm639 = vcmask 1046528
        %v640 = vsel %vm639, %v638, %v597
        %v641 = vsel %vm627, %v348, %v601
        %v642 = vsel %vm629, %v641, %v605
        %v643 = vsel %vm631, %v642, %v609
        %v644 = vsel %vm633, %v643, %v613
        %v645 = vsel %vm635, %v644, %v617
        %v646 = vsel %vm637, %v645, %v621
        %v647 = vsel %vm639, %v646, %v625
        %649 = vrot.lane.b32.xlu0 %v183, 112
        %v650 = vpop.permute.xlu0 %649
        %653 = vrot.lane.b32.xlu0 %v208, 96
        %v654 = vpop.permute.xlu0 %653
        %657 = vrot.lane.b32.xlu0 %v233, 80
        %v658 = vpop.permute.xlu0 %657
        %661 = vrot.lane.b32.xlu0 %v258, 64
        %v662 = vpop.permute.xlu0 %661
        %665 = vrot.lane.b32.xlu0 %v283, 48
        %v666 = vpop.permute.xlu0 %665
        %669 = vrot.lane.b32.xlu0 %v308, 32
        %v670 = vpop.permute.xlu0 %669
        %673 = vrot.lane.b32.xlu0 %v333, 16
        %v674 = vpop.permute.xlu0 %673
        %677 = vrot.lane.b32.xlu0 %v379, 112
        %v678 = vpop.permute.xlu0 %677
        %681 = vrot.lane.b32.xlu0 %v403, 96
        %v682 = vpop.permute.xlu0 %681
        %685 = vrot.lane.b32.xlu0 %v427, 80
        %v686 = vpop.permute.xlu0 %685
        %689 = vrot.lane.b32.xlu0 %v451, 64
        %v690 = vpop.permute.xlu0 %689
        %693 = vrot.lane.b32.xlu0 %v475, 48
        %v694 = vpop.permute.xlu0 %693
        %697 = vrot.lane.b32.xlu0 %v499, 32
        %v698 = vpop.permute.xlu0 %697
        %701 = vrot.lane.b32.xlu0 %v523, 16
        %v702 = vpop.permute.xlu0 %701
        %v704 = vsel %vm627, %v157, %v650
        %v705 = vsel %vm629, %v704, %v654
        %v706 = vsel %vm631, %v705, %v658
        %v707 = vsel %vm633, %v706, %v662
        %v708 = vsel %vm635, %v707, %v666
        %v709 = vsel %vm637, %v708, %v670
        %v710 = vsel %vm639, %v709, %v674
        %v711 = vsel %vm627, %v354, %v678
        %v712 = vsel %vm629, %v711, %v682
        %v713 = vsel %vm631, %v712, %v686
        %v714 = vsel %vm633, %v713, %v690
        %v715 = vsel %vm635, %v714, %v694
        %v716 = vsel %vm637, %v715, %v698
        %v717 = vsel %vm639, %v716, %v702
        %v718 = vmul.f32 %v710, 0.25
        %v719 = vmul.f32 %v717, 0.25
        %s720 = sld [smem:[#allocation6]]
        %s721 = sld [smem:[#allocation6 + $0x1]]
        %s722 = sld [smem:[#allocation6 + $0x2]]
        %s723 = sld [smem:[#allocation6 + $0x3]]
        %s724 = sld [smem:[#allocation6 + $0x4]]
        %s725 = sld [smem:[#allocation6 + $0x5]]
        %s726 = sld [smem:[#allocation6 + $0x6]]
        %s727 = sld [smem:[#allocation6 + $0x7]]
        %s728 = sld [smem:[#allocation6 + $0x8]]
        %s729 = sld [smem:[#allocation6 + $0x9]]
        %s730 = sld [smem:[#allocation6 + $0xa]]
        %s731 = sld [smem:[#allocation6 + $0xb]]
        %s732 = sld [smem:[#allocation6 + $0xc]]
        %s733 = sld [smem:[#allocation6 + $0xd]]
        %s734 = sld [smem:[#allocation6 + $0xe]]
        %s735 = sld [smem:[#allocation6 + $0xf]]
        %s736 = sld [smem:[#allocation6 + $0x10]]
        %s737 = sld [smem:[#allocation6 + $0x11]]
        %s738 = sld [smem:[#allocation6 + $0x12]]
        %s739 = sld [smem:[#allocation6 + $0x13]]
        %s740 = sld [smem:[#allocation6 + $0x14]]
        %s741 = sld [smem:[#allocation6 + $0x15]]
        %s742 = sld [smem:[#allocation6 + $0x16]]
        %s743 = sld [smem:[#allocation6 + $0x17]]
        %s744 = sld [smem:[#allocation6 + $0x18]]
        %s745 = sld [smem:[#allocation6 + $0x19]]
        %s746 = sld [smem:[#allocation6 + $0x1a]]
        %s747 = sld [smem:[#allocation6 + $0x1b]]
        %s748 = sld [smem:[#allocation6 + $0x1c]]
        %s749 = sld [smem:[#allocation6 + $0x1d]]
        %s750 = sld [smem:[#allocation6 + $0x1e]]
        %s751 = sld [smem:[#allocation6 + $0x1f]]
        %s752 = sld [smem:[#allocation6 + $0x20]]
        %s753 = sld [smem:[#allocation6 + $0x21]]
        %s754 = sld [smem:[#allocation6 + $0x22]]
        %s755 = sld [smem:[#allocation6 + $0x23]]
        %s756 = sld [smem:[#allocation6 + $0x24]]
        %s757 = sld [smem:[#allocation6 + $0x25]]
        %s758 = sld [smem:[#allocation6 + $0x26]]
        %s759 = sld [smem:[#allocation6 + $0x27]]
        %s760 = sld [smem:[#allocation6 + $0x28]]
        %s761 = sld [smem:[#allocation6 + $0x29]]
        %s762 = sld [smem:[#allocation6 + $0x2a]]
        %s763 = sld [smem:[#allocation6 + $0x2b]]
        %s764 = sld [smem:[#allocation6 + $0x2c]]
        %s765 = sld [smem:[#allocation6 + $0x2d]]
        %s766 = sld [smem:[#allocation6 + $0x2e]]
        %s767 = sld [smem:[#allocation6 + $0x2f]]
        %s768 = sld [smem:[#allocation6 + $0x30]]
        %s769 = sld [smem:[#allocation6 + $0x31]]
        %vm770 = vcmask 156672
        %771 = vst.msk [vmem:[#allocation2] sm:$0x3] %vm770, 0.0
        %vm772 = vcmask 158720
        %773 = vst.msk [vmem:[#allocation2 + $0x6] sm:$0xf] %vm772, 0.0
        %774 = vst.msk [vmem:[#allocation2 + $0xe] sm:$0x3] %vm770, 0.0
        %775 = vst.msk [vmem:[#allocation2] sm:$0xff] %vm527, 0.0
        %776 = vst.msk [vmem:[#allocation2 + $0x8] sm:$0xff] %vm527, 0.0
        %vm777 = vcmask 162960
        %778 = vst.msk [vmem:[#allocation2] sm:$0xff] %vm777, 0.0
        %779 = vst.msk [vmem:[#allocation2 + $0x8] sm:$0xff] %vm777, 0.0
        %781 = vrot.lane.b32.xlu0 %v503, 2
        %v782 = vpop.permute.xlu0 %781
        %vm784 = vcmask 142352
        %785 = vst.msk [vmem:[#allocation2 + $0x2] sm:$0xf] %vm784, %v782
        %787 = vrot.lane.b32.xlu0 %v524, 2
        %v788 = vpop.permute.xlu0 %787
        %790 = vst.msk [vmem:[#allocation2 + $0xa] sm:$0xf] %vm784, %v788
        %v791 = vld [vmem:[#allocation2] sm:$0xff]
        %v792 = vld [vmem:[#allocation2 + $0x8] sm:$0xff]
        %v793 = vstv %s720
        %v794 = vmul.f32 %v793, %v791
        %v795 = vadd.f32 %v794, 0.0
        %v796 = vstv %s745
        %v797 = vmul.f32 %v796, %v792
        %v798 = vadd.f32 %v795, %v797
        %v799 = vstv %s725
        %v800 = vmul.f32 %v799, %v791
        %v802 = vrot.slane %v800, 1
        %v804 = vadd.f32 %v798, %v802
        %v805 = vstv %s750
        %v806 = vmul.f32 %v805, %v792
        %v808 = vrot.slane %v806, 1
        %v810 = vadd.f32 %v804, %v808
        %v811 = vstv %s730
        %v812 = vmul.f32 %v811, %v791
        %v814 = vrot.slane %v812, 2
        %v816 = vadd.f32 %v810, %v814
        %v817 = vstv %s755
        %v818 = vmul.f32 %v817, %v792
        %v820 = vrot.slane %v818, 2
        %v822 = vadd.f32 %v816, %v820
        %v823 = vstv %s735
        %v824 = vmul.f32 %v823, %v791
        %v826 = vrot.slane %v824, 3
        %v828 = vadd.f32 %v822, %v826
        %v829 = vstv %s760
        %v830 = vmul.f32 %v829, %v792
        %v832 = vrot.slane %v830, 3
        %v834 = vadd.f32 %v828, %v832
        %v835 = vstv %s740
        %v836 = vmul.f32 %v835, %v791
        %v838 = vrot.slane %v836, 4
        %v840 = vadd.f32 %v834, %v838
        %v841 = vstv %s765
        %v842 = vmul.f32 %v841, %v792
        %v844 = vrot.slane %v842, 4
        %v846 = vadd.f32 %v840, %v844
        %v847 = vstv %s721
        %v848 = vmul.f32 %v847, %v791
        %850 = vrot.lane.b32.xlu0 %v848, 127
        %v851 = vpop.permute.xlu0 %850
        %v853 = vadd.f32 %v846, %v851
        %v854 = vstv %s746
        %v855 = vmul.f32 %v854, %v792
        %857 = vrot.lane.b32.xlu0 %v855, 127
        %v858 = vpop.permute.xlu0 %857
        %v860 = vadd.f32 %v853, %v858
        %v861 = vstv %s726
        %v862 = vmul.f32 %v861, %v791
        %v864 = vrot.slane %v862, 1
        %865 = vrot.lane.b32.xlu0 %v864, 127
        %v866 = vpop.permute.xlu0 %865
        %v868 = vadd.f32 %v860, %v866
        %v869 = vstv %s751
        %v870 = vmul.f32 %v869, %v792
        %v872 = vrot.slane %v870, 1
        %873 = vrot.lane.b32.xlu0 %v872, 127
        %v874 = vpop.permute.xlu0 %873
        %v876 = vadd.f32 %v868, %v874
        %v877 = vstv %s731
        %v878 = vmul.f32 %v877, %v791
        %v880 = vrot.slane %v878, 2
        %881 = vrot.lane.b32.xlu0 %v880, 127
        %v882 = vpop.permute.xlu0 %881
        %v884 = vadd.f32 %v876, %v882
        %v885 = vstv %s756
        %v886 = vmul.f32 %v885, %v792
        %v888 = vrot.slane %v886, 2
        %889 = vrot.lane.b32.xlu0 %v888, 127
        %v890 = vpop.permute.xlu0 %889
        %v892 = vadd.f32 %v884, %v890
        %v893 = vstv %s736
        %v894 = vmul.f32 %v893, %v791
        %v896 = vrot.slane %v894, 3
        %897 = vrot.lane.b32.xlu0 %v896, 127
        %v898 = vpop.permute.xlu0 %897
        %v900 = vadd.f32 %v892, %v898
        %v901 = vstv %s761
        %v902 = vmul.f32 %v901, %v792
        %v904 = vrot.slane %v902, 3
        %905 = vrot.lane.b32.xlu0 %v904, 127
        %v906 = vpop.permute.xlu0 %905
        %v908 = vadd.f32 %v900, %v906
        %v909 = vstv %s741
        %v910 = vmul.f32 %v909, %v791
        %v912 = vrot.slane %v910, 4
        %913 = vrot.lane.b32.xlu0 %v912, 127
        %v914 = vpop.permute.xlu0 %913
        %v916 = vadd.f32 %v908, %v914
        %v917 = vstv %s766
        %v918 = vmul.f32 %v917, %v792
        %v920 = vrot.slane %v918, 4
        %921 = vrot.lane.b32.xlu0 %v920, 127
        %v922 = vpop.permute.xlu0 %921
        %v924 = vadd.f32 %v916, %v922
        %v925 = vstv %s722
        %v926 = vmul.f32 %v925, %v791
        %928 = vrot.lane.b32.xlu0 %v926, 126
        %v929 = vpop.permute.xlu0 %928
        %v931 = vadd.f32 %v924, %v929
        %v932 = vstv %s747
        %v933 = vmul.f32 %v932, %v792
        %935 = vrot.lane.b32.xlu0 %v933, 126
        %v936 = vpop.permute.xlu0 %935
        %v938 = vadd.f32 %v931, %v936
        %v939 = vstv %s727
        %v940 = vmul.f32 %v939, %v791
        %v942 = vrot.slane %v940, 1
        %943 = vrot.lane.b32.xlu0 %v942, 126
        %v944 = vpop.permute.xlu0 %943
        %v946 = vadd.f32 %v938, %v944
        %v947 = vstv %s752
        %v948 = vmul.f32 %v947, %v792
        %v950 = vrot.slane %v948, 1
        %951 = vrot.lane.b32.xlu0 %v950, 126
        %v952 = vpop.permute.xlu0 %951
        %v954 = vadd.f32 %v946, %v952
        %v955 = vstv %s732
        %v956 = vmul.f32 %v955, %v791
        %v958 = vrot.slane %v956, 2
        %959 = vrot.lane.b32.xlu0 %v958, 126
        %v960 = vpop.permute.xlu0 %959
        %v962 = vadd.f32 %v954, %v960
        %v963 = vstv %s757
        %v964 = vmul.f32 %v963, %v792
        %v966 = vrot.slane %v964, 2
        %967 = vrot.lane.b32.xlu0 %v966, 126
        %v968 = vpop.permute.xlu0 %967
        %v970 = vadd.f32 %v962, %v968
        %v971 = vstv %s737
        %v972 = vmul.f32 %v971, %v791
        %v974 = vrot.slane %v972, 3
        %975 = vrot.lane.b32.xlu0 %v974, 126
        %v976 = vpop.permute.xlu0 %975
        %v978 = vadd.f32 %v970, %v976
        %v979 = vstv %s762
        %v980 = vmul.f32 %v979, %v792
        %v982 = vrot.slane %v980, 3
        %983 = vrot.lane.b32.xlu0 %v982, 126
        %v984 = vpop.permute.xlu0 %983
        %v986 = vadd.f32 %v978, %v984
        %v987 = vstv %s742
        %v988 = vmul.f32 %v987, %v791
        %v990 = vrot.slane %v988, 4
        %991 = vrot.lane.b32.xlu0 %v990, 126
        %v992 = vpop.permute.xlu0 %991
        %v994 = vadd.f32 %v986, %v992
        %v995 = vstv %s767
        %v996 = vmul.f32 %v995, %v792
        %v998 = vrot.slane %v996, 4
        %999 = vrot.lane.b32.xlu0 %v998, 126
        %v1000 = vpop.permute.xlu0 %999
        %v1002 = vadd.f32 %v994, %v1000
        %v1003 = vstv %s723
        %v1004 = vmul.f32 %v1003, %v791
        %1006 = vrot.lane.b32.xlu0 %v1004, 125
        %v1007 = vpop.permute.xlu0 %1006
        %v1009 = vadd.f32 %v1002, %v1007
        %v1010 = vstv %s748
        %v1011 = vmul.f32 %v1010, %v792
        %1013 = vrot.lane.b32.xlu0 %v1011, 125
        %v1014 = vpop.permute.xlu0 %1013
        %v1016 = vadd.f32 %v1009, %v1014
        %v1017 = vstv %s728
        %v1018 = vmul.f32 %v1017, %v791
        %v1020 = vrot.slane %v1018, 1
        %1021 = vrot.lane.b32.xlu0 %v1020, 125
        %v1022 = vpop.permute.xlu0 %1021
        %v1024 = vadd.f32 %v1016, %v1022
        %v1025 = vstv %s753
        %v1026 = vmul.f32 %v1025, %v792
        %v1028 = vrot.slane %v1026, 1
        %1029 = vrot.lane.b32.xlu0 %v1028, 125
        %v1030 = vpop.permute.xlu0 %1029
        %v1032 = vadd.f32 %v1024, %v1030
        %v1033 = vstv %s733
        %v1034 = vmul.f32 %v1033, %v791
        %v1036 = vrot.slane %v1034, 2
        %1037 = vrot.lane.b32.xlu0 %v1036, 125
        %v1038 = vpop.permute.xlu0 %1037
        %v1040 = vadd.f32 %v1032, %v1038
        %v1041 = vstv %s758
        %v1042 = vmul.f32 %v1041, %v792
        %v1044 = vrot.slane %v1042, 2
        %1045 = vrot.lane.b32.xlu0 %v1044, 125
        %v1046 = vpop.permute.xlu0 %1045
        %v1048 = vadd.f32 %v1040, %v1046
        %v1049 = vstv %s738
        %v1050 = vmul.f32 %v1049, %v791
        %v1052 = vrot.slane %v1050, 3
        %1053 = vrot.lane.b32.xlu0 %v1052, 125
        %v1054 = vpop.permute.xlu0 %1053
        %v1056 = vadd.f32 %v1048, %v1054
        %v1057 = vstv %s763
        %v1058 = vmul.f32 %v1057, %v792
        %v1060 = vrot.slane %v1058, 3
        %1061 = vrot.lane.b32.xlu0 %v1060, 125
        %v1062 = vpop.permute.xlu0 %1061
        %v1064 = vadd.f32 %v1056, %v1062
        %v1065 = vstv %s743
        %v1066 = vmul.f32 %v1065, %v791
        %v1068 = vrot.slane %v1066, 4
        %1069 = vrot.lane.b32.xlu0 %v1068, 125
        %v1070 = vpop.permute.xlu0 %1069
        %v1072 = vadd.f32 %v1064, %v1070
        %v1073 = vstv %s768
        %v1074 = vmul.f32 %v1073, %v792
        %v1076 = vrot.slane %v1074, 4
        %1077 = vrot.lane.b32.xlu0 %v1076, 125
        %v1078 = vpop.permute.xlu0 %1077
        %v1080 = vadd.f32 %v1072, %v1078
        %v1081 = vstv %s724
        %v1082 = vmul.f32 %v1081, %v791
        %1084 = vrot.lane.b32.xlu0 %v1082, 124
        %v1085 = vpop.permute.xlu0 %1084
        %v1087 = vadd.f32 %v1080, %v1085
        %v1088 = vstv %s749
        %v1089 = vmul.f32 %v1088, %v792
        %1091 = vrot.lane.b32.xlu0 %v1089, 124
        %v1092 = vpop.permute.xlu0 %1091
        %v1094 = vadd.f32 %v1087, %v1092
        %v1095 = vstv %s729
        %v1096 = vmul.f32 %v1095, %v791
        %v1098 = vrot.slane %v1096, 1
        %1099 = vrot.lane.b32.xlu0 %v1098, 124
        %v1100 = vpop.permute.xlu0 %1099
        %v1102 = vadd.f32 %v1094, %v1100
        %v1103 = vstv %s754
        %v1104 = vmul.f32 %v1103, %v792
        %v1106 = vrot.slane %v1104, 1
        %1107 = vrot.lane.b32.xlu0 %v1106, 124
        %v1108 = vpop.permute.xlu0 %1107
        %v1110 = vadd.f32 %v1102, %v1108
        %v1111 = vstv %s734
        %v1112 = vmul.f32 %v1111, %v791
        %v1114 = vrot.slane %v1112, 2
        %1115 = vrot.lane.b32.xlu0 %v1114, 124
        %v1116 = vpop.permute.xlu0 %1115
        %v1118 = vadd.f32 %v1110, %v1116
        %v1119 = vstv %s759
        %v1120 = vmul.f32 %v1119, %v792
        %v1122 = vrot.slane %v1120, 2
        %1123 = vrot.lane.b32.xlu0 %v1122, 124
        %v1124 = vpop.permute.xlu0 %1123
        %v1126 = vadd.f32 %v1118, %v1124
        %v1127 = vstv %s739
        %v1128 = vmul.f32 %v1127, %v791
        %v1130 = vrot.slane %v1128, 3
        %1131 = vrot.lane.b32.xlu0 %v1130, 124
        %v1132 = vpop.permute.xlu0 %1131
        %v1134 = vadd.f32 %v1126, %v1132
        %v1135 = vstv %s764
        %v1136 = vmul.f32 %v1135, %v792
        %v1138 = vrot.slane %v1136, 3
        %1139 = vrot.lane.b32.xlu0 %v1138, 124
        %v1140 = vpop.permute.xlu0 %1139
        %v1142 = vadd.f32 %v1134, %v1140
        %v1143 = vstv %s744
        %v1144 = vmul.f32 %v1143, %v791
        %v1146 = vrot.slane %v1144, 4
        %1147 = vrot.lane.b32.xlu0 %v1146, 124
        %v1148 = vpop.permute.xlu0 %1147
        %v1150 = vadd.f32 %v1142, %v1148
        %v1151 = vstv %s769
        %v1152 = vmul.f32 %v1151, %v792
        %v1154 = vrot.slane %v1152, 4
        %1155 = vrot.lane.b32.xlu0 %v1154, 124
        %v1156 = vpop.permute.xlu0 %1155
        %v1158 = vadd.f32 %v1150, %v1156
        %v1159 = vmax.f32 %v1158, 0.0
        %v1160 = vsub.f32 0.0, %v1159
        %v1161 = vmul.f32 %v1160, 1.442695
        %v1162 = vpow.pop %v1161
        %v1163 = vadd.f32 %v1162, 1.0
        %v1164 = vrcp.pop %v1163
        %v1165 = vmul.f32 1.0, %v1164
        %v1166 = vmul.f32 %v1159, %v1165
        %s1167 = sld [smem:[#allocation6 + $0x80]]
        %s1168 = sld [smem:[#allocation6 + $0x81]]
        %s1169 = sld [smem:[#allocation6 + $0x82]]
        %s1170 = sld [smem:[#allocation6 + $0x83]]
        %s1171 = sld [smem:[#allocation6 + $0x84]]
        %s1172 = sld [smem:[#allocation6 + $0x85]]
        %s1173 = sld [smem:[#allocation6 + $0x86]]
        %s1174 = sld [smem:[#allocation6 + $0x87]]
        %s1175 = sld [smem:[#allocation6 + $0x88]]
        %s1176 = sld [smem:[#allocation6 + $0x89]]
        %s1177 = sld [smem:[#allocation6 + $0x8a]]
        %s1178 = sld [smem:[#allocation6 + $0x8b]]
        %s1179 = sld [smem:[#allocation6 + $0x8c]]
        %s1180 = sld [smem:[#allocation6 + $0x8d]]
        %s1181 = sld [smem:[#allocation6 + $0x8e]]
        %s1182 = sld [smem:[#allocation6 + $0x8f]]
        %s1183 = sld [smem:[#allocation6 + $0x90]]
        %s1184 = sld [smem:[#allocation6 + $0x91]]
        %s1185 = sld [smem:[#allocation6 + $0x92]]
        %s1186 = sld [smem:[#allocation6 + $0x93]]
        %s1187 = sld [smem:[#allocation6 + $0x94]]
        %s1188 = sld [smem:[#allocation6 + $0x95]]
        %s1189 = sld [smem:[#allocation6 + $0x96]]
        %s1190 = sld [smem:[#allocation6 + $0x97]]
        %s1191 = sld [smem:[#allocation6 + $0x98]]
        %s1192 = sld [smem:[#allocation6 + $0x99]]
        %s1193 = sld [smem:[#allocation6 + $0x9a]]
        %s1194 = sld [smem:[#allocation6 + $0x9b]]
        %s1195 = sld [smem:[#allocation6 + $0x9c]]
        %s1196 = sld [smem:[#allocation6 + $0x9d]]
        %s1197 = sld [smem:[#allocation6 + $0x9e]]
        %s1198 = sld [smem:[#allocation6 + $0x9f]]
        %s1199 = sld [smem:[#allocation6 + $0xa0]]
        %s1200 = sld [smem:[#allocation6 + $0xa1]]
        %s1201 = sld [smem:[#allocation6 + $0xa2]]
        %s1202 = sld [smem:[#allocation6 + $0xa3]]
        %s1203 = sld [smem:[#allocation6 + $0xa4]]
        %s1204 = sld [smem:[#allocation6 + $0xa5]]
        %s1205 = sld [smem:[#allocation6 + $0xa6]]
        %s1206 = sld [smem:[#allocation6 + $0xa7]]
        %s1207 = sld [smem:[#allocation6 + $0xa8]]
        %s1208 = sld [smem:[#allocation6 + $0xa9]]
        %s1209 = sld [smem:[#allocation6 + $0xaa]]
        %s1210 = sld [smem:[#allocation6 + $0xab]]
        %s1211 = sld [smem:[#allocation6 + $0xac]]
        %s1212 = sld [smem:[#allocation6 + $0xad]]
        %s1213 = sld [smem:[#allocation6 + $0xae]]
        %s1214 = sld [smem:[#allocation6 + $0xaf]]
        %s1215 = sld [smem:[#allocation6 + $0xb0]]
        %s1216 = sld [smem:[#allocation6 + $0xb1]]
        %1217 = vst.msk [vmem:[#allocation3] sm:$0x3] %vm770, 0.0
        %1218 = vst.msk [vmem:[#allocation3 + $0x6] sm:$0xf] %vm772, 0.0
        %1219 = vst.msk [vmem:[#allocation3 + $0xe] sm:$0x3] %vm770, 0.0
        %1220 = vst.msk [vmem:[#allocation3] sm:$0xff] %vm527, 0.0
        %1221 = vst.msk [vmem:[#allocation3 + $0x8] sm:$0xff] %vm527, 0.0
        %1222 = vst.msk [vmem:[#allocation3] sm:$0xff] %vm777, 0.0
        %1223 = vst.msk [vmem:[#allocation3 + $0x8] sm:$0xff] %vm777, 0.0
        %1225 = vrot.lane.b32.xlu0 %v554, 2
        %v1226 = vpop.permute.xlu0 %1225
        %1228 = vst.msk [vmem:[#allocation3 + $0x2] sm:$0xf] %vm784, %v1226
        %1230 = vrot.lane.b32.xlu0 %v570, 2
        %v1231 = vpop.permute.xlu0 %1230
        %1233 = vst.msk [vmem:[#allocation3 + $0xa] sm:$0xf] %vm784, %v1231
        %v1234 = vld [vmem:[#allocation3] sm:$0xff]
        %v1235 = vld [vmem:[#allocation3 + $0x8] sm:$0xff]
        %v1236 = vstv %s1167
        %v1237 = vmul.f32 %v1236, %v1234
        %v1238 = vadd.f32 %v1237, 0.0
        %v1239 = vstv %s1192
        %v1240 = vmul.f32 %v1239, %v1235
        %v1241 = vadd.f32 %v1238, %v1240
        %v1242 = vstv %s1172
        %v1243 = vmul.f32 %v1242, %v1234
        %v1245 = vrot.slane %v1243, 1
        %v1247 = vadd.f32 %v1241, %v1245
        %v1248 = vstv %s1197
        %v1249 = vmul.f32 %v1248, %v1235
        %v1251 = vrot.slane %v1249, 1
        %v1253 = vadd.f32 %v1247, %v1251
        %v1254 = vstv %s1177
        %v1255 = vmul.f32 %v1254, %v1234
        %v1257 = vrot.slane %v1255, 2
        %v1259 = vadd.f32 %v1253, %v1257
        %v1260 = vstv %s1202
        %v1261 = vmul.f32 %v1260, %v1235
        %v1263 = vrot.slane %v1261, 2
        %v1265 = vadd.f32 %v1259, %v1263
        %v1266 = vstv %s1182
        %v1267 = vmul.f32 %v1266, %v1234
        %v1269 = vrot.slane %v1267, 3
        %v1271 = vadd.f32 %v1265, %v1269
        %v1272 = vstv %s1207
        %v1273 = vmul.f32 %v1272, %v1235
        %v1275 = vrot.slane %v1273, 3
        %v1277 = vadd.f32 %v1271, %v1275
        %v1278 = vstv %s1187
        %v1279 = vmul.f32 %v1278, %v1234
        %v1281 = vrot.slane %v1279, 4
        %v1283 = vadd.f32 %v1277, %v1281
        %v1284 = vstv %s1212
        %v1285 = vmul.f32 %v1284, %v1235
        %v1287 = vrot.slane %v1285, 4
        %v1289 = vadd.f32 %v1283, %v1287
        %v1290 = vstv %s1168
        %v1291 = vmul.f32 %v1290, %v1234
        %1293 = vrot.lane.b32.xlu0 %v1291, 127
        %v1294 = vpop.permute.xlu0 %1293
        %v1296 = vadd.f32 %v1289, %v1294
        %v1297 = vstv %s1193
        %v1298 = vmul.f32 %v1297, %v1235
        %1300 = vrot.lane.b32.xlu0 %v1298, 127
        %v1301 = vpop.permute.xlu0 %1300
        %v1303 = vadd.f32 %v1296, %v1301
        %v1304 = vstv %s1173
        %v1305 = vmul.f32 %v1304, %v1234
        %v1307 = vrot.slane %v1305, 1
        %1308 = vrot.lane.b32.xlu0 %v1307, 127
        %v1309 = vpop.permute.xlu0 %1308
        %v1311 = vadd.f32 %v1303, %v1309
        %v1312 = vstv %s1198
        %v1313 = vmul.f32 %v1312, %v1235
        %v1315 = vrot.slane %v1313, 1
        %1316 = vrot.lane.b32.xlu0 %v1315, 127
        %v1317 = vpop.permute.xlu0 %1316
        %v1319 = vadd.f32 %v1311, %v1317
        %v1320 = vstv %s1178
        %v1321 = vmul.f32 %v1320, %v1234
        %v1323 = vrot.slane %v1321, 2
        %1324 = vrot.lane.b32.xlu0 %v1323, 127
        %v1325 = vpop.permute.xlu0 %1324
        %v1327 = vadd.f32 %v1319, %v1325
        %v1328 = vstv %s1203
        %v1329 = vmul.f32 %v1328, %v1235
        %v1331 = vrot.slane %v1329, 2
        %1332 = vrot.lane.b32.xlu0 %v1331, 127
        %v1333 = vpop.permute.xlu0 %1332
        %v1335 = vadd.f32 %v1327, %v1333
        %v1336 = vstv %s1183
        %v1337 = vmul.f32 %v1336, %v1234
        %v1339 = vrot.slane %v1337, 3
        %1340 = vrot.lane.b32.xlu0 %v1339, 127
        %v1341 = vpop.permute.xlu0 %1340
        %v1343 = vadd.f32 %v1335, %v1341
        %v1344 = vstv %s1208
        %v1345 = vmul.f32 %v1344, %v1235
        %v1347 = vrot.slane %v1345, 3
        %1348 = vrot.lane.b32.xlu0 %v1347, 127
        %v1349 = vpop.permute.xlu0 %1348
        %v1351 = vadd.f32 %v1343, %v1349
        %v1352 = vstv %s1188
        %v1353 = vmul.f32 %v1352, %v1234
        %v1355 = vrot.slane %v1353, 4
        %1356 = vrot.lane.b32.xlu0 %v1355, 127
        %v1357 = vpop.permute.xlu0 %1356
        %v1359 = vadd.f32 %v1351, %v1357
        %v1360 = vstv %s1213
        %v1361 = vmul.f32 %v1360, %v1235
        %v1363 = vrot.slane %v1361, 4
        %1364 = vrot.lane.b32.xlu0 %v1363, 127
        %v1365 = vpop.permute.xlu0 %1364
        %v1367 = vadd.f32 %v1359, %v1365
        %v1368 = vstv %s1169
        %v1369 = vmul.f32 %v1368, %v1234
        %1371 = vrot.lane.b32.xlu0 %v1369, 126
        %v1372 = vpop.permute.xlu0 %1371
        %v1374 = vadd.f32 %v1367, %v1372
        %v1375 = vstv %s1194
        %v1376 = vmul.f32 %v1375, %v1235
        %1378 = vrot.lane.b32.xlu0 %v1376, 126
        %v1379 = vpop.permute.xlu0 %1378
        %v1381 = vadd.f32 %v1374, %v1379
        %v1382 = vstv %s1174
        %v1383 = vmul.f32 %v1382, %v1234
        %v1385 = vrot.slane %v1383, 1
        %1386 = vrot.lane.b32.xlu0 %v1385, 126
        %v1387 = vpop.permute.xlu0 %1386
        %v1389 = vadd.f32 %v1381, %v1387
        %v1390 = vstv %s1199
        %v1391 = vmul.f32 %v1390, %v1235
        %v1393 = vrot.slane %v1391, 1
        %1394 = vrot.lane.b32.xlu0 %v1393, 126
        %v1395 = vpop.permute.xlu0 %1394
        %v1397 = vadd.f32 %v1389, %v1395
        %v1398 = vstv %s1179
        %v1399 = vmul.f32 %v1398, %v1234
        %v1401 = vrot.slane %v1399, 2
        %1402 = vrot.lane.b32.xlu0 %v1401, 126
        %v1403 = vpop.permute.xlu0 %1402
        %v1405 = vadd.f32 %v1397, %v1403
        %v1406 = vstv %s1204
        %v1407 = vmul.f32 %v1406, %v1235
        %v1409 = vrot.slane %v1407, 2
        %1410 = vrot.lane.b32.xlu0 %v1409, 126
        %v1411 = vpop.permute.xlu0 %1410
        %v1413 = vadd.f32 %v1405, %v1411
        %v1414 = vstv %s1184
        %v1415 = vmul.f32 %v1414, %v1234
        %v1417 = vrot.slane %v1415, 3
        %1418 = vrot.lane.b32.xlu0 %v1417, 126
        %v1419 = vpop.permute.xlu0 %1418
        %v1421 = vadd.f32 %v1413, %v1419
        %v1422 = vstv %s1209
        %v1423 = vmul.f32 %v1422, %v1235
        %v1425 = vrot.slane %v1423, 3
        %1426 = vrot.lane.b32.xlu0 %v1425, 126
        %v1427 = vpop.permute.xlu0 %1426
        %v1429 = vadd.f32 %v1421, %v1427
        %v1430 = vstv %s1189
        %v1431 = vmul.f32 %v1430, %v1234
        %v1433 = vrot.slane %v1431, 4
        %1434 = vrot.lane.b32.xlu0 %v1433, 126
        %v1435 = vpop.permute.xlu0 %1434
        %v1437 = vadd.f32 %v1429, %v1435
        %v1438 = vstv %s1214
        %v1439 = vmul.f32 %v1438, %v1235
        %v1441 = vrot.slane %v1439, 4
        %1442 = vrot.lane.b32.xlu0 %v1441, 126
        %v1443 = vpop.permute.xlu0 %1442
        %v1445 = vadd.f32 %v1437, %v1443
        %v1446 = vstv %s1170
        %v1447 = vmul.f32 %v1446, %v1234
        %1449 = vrot.lane.b32.xlu0 %v1447, 125
        %v1450 = vpop.permute.xlu0 %1449
        %v1452 = vadd.f32 %v1445, %v1450
        %v1453 = vstv %s1195
        %v1454 = vmul.f32 %v1453, %v1235
        %1456 = vrot.lane.b32.xlu0 %v1454, 125
        %v1457 = vpop.permute.xlu0 %1456
        %v1459 = vadd.f32 %v1452, %v1457
        %v1460 = vstv %s1175
        %v1461 = vmul.f32 %v1460, %v1234
        %v1463 = vrot.slane %v1461, 1
        %1464 = vrot.lane.b32.xlu0 %v1463, 125
        %v1465 = vpop.permute.xlu0 %1464
        %v1467 = vadd.f32 %v1459, %v1465
        %v1468 = vstv %s1200
        %v1469 = vmul.f32 %v1468, %v1235
        %v1471 = vrot.slane %v1469, 1
        %1472 = vrot.lane.b32.xlu0 %v1471, 125
        %v1473 = vpop.permute.xlu0 %1472
        %v1475 = vadd.f32 %v1467, %v1473
        %v1476 = vstv %s1180
        %v1477 = vmul.f32 %v1476, %v1234
        %v1479 = vrot.slane %v1477, 2
        %1480 = vrot.lane.b32.xlu0 %v1479, 125
        %v1481 = vpop.permute.xlu0 %1480
        %v1483 = vadd.f32 %v1475, %v1481
        %v1484 = vstv %s1205
        %v1485 = vmul.f32 %v1484, %v1235
        %v1487 = vrot.slane %v1485, 2
        %1488 = vrot.lane.b32.xlu0 %v1487, 125
        %v1489 = vpop.permute.xlu0 %1488
        %v1491 = vadd.f32 %v1483, %v1489
        %v1492 = vstv %s1185
        %v1493 = vmul.f32 %v1492, %v1234
        %v1495 = vrot.slane %v1493, 3
        %1496 = vrot.lane.b32.xlu0 %v1495, 125
        %v1497 = vpop.permute.xlu0 %1496
        %v1499 = vadd.f32 %v1491, %v1497
        %v1500 = vstv %s1210
        %v1501 = vmul.f32 %v1500, %v1235
        %v1503 = vrot.slane %v1501, 3
        %1504 = vrot.lane.b32.xlu0 %v1503, 125
        %v1505 = vpop.permute.xlu0 %1504
        %v1507 = vadd.f32 %v1499, %v1505
        %v1508 = vstv %s1190
        %v1509 = vmul.f32 %v1508, %v1234
        %v1511 = vrot.slane %v1509, 4
        %1512 = vrot.lane.b32.xlu0 %v1511, 125
        %v1513 = vpop.permute.xlu0 %1512
        %v1515 = vadd.f32 %v1507, %v1513
        %v1516 = vstv %s1215
        %v1517 = vmul.f32 %v1516, %v1235
        %v1519 = vrot.slane %v1517, 4
        %1520 = vrot.lane.b32.xlu0 %v1519, 125
        %v1521 = vpop.permute.xlu0 %1520
        %v1523 = vadd.f32 %v1515, %v1521
        %v1524 = vstv %s1171
        %v1525 = vmul.f32 %v1524, %v1234
        %1527 = vrot.lane.b32.xlu0 %v1525, 124
        %v1528 = vpop.permute.xlu0 %1527
        %v1530 = vadd.f32 %v1523, %v1528
        %v1531 = vstv %s1196
        %v1532 = vmul.f32 %v1531, %v1235
        %1534 = vrot.lane.b32.xlu0 %v1532, 124
        %v1535 = vpop.permute.xlu0 %1534
        %v1537 = vadd.f32 %v1530, %v1535
        %v1538 = vstv %s1176
        %v1539 = vmul.f32 %v1538, %v1234
        %v1541 = vrot.slane %v1539, 1
        %1542 = vrot.lane.b32.xlu0 %v1541, 124
        %v1543 = vpop.permute.xlu0 %1542
        %v1545 = vadd.f32 %v1537, %v1543
        %v1546 = vstv %s1201
        %v1547 = vmul.f32 %v1546, %v1235
        %v1549 = vrot.slane %v1547, 1
        %1550 = vrot.lane.b32.xlu0 %v1549, 124
        %v1551 = vpop.permute.xlu0 %1550
        %v1553 = vadd.f32 %v1545, %v1551
        %v1554 = vstv %s1181
        %v1555 = vmul.f32 %v1554, %v1234
        %v1557 = vrot.slane %v1555, 2
        %1558 = vrot.lane.b32.xlu0 %v1557, 124
        %v1559 = vpop.permute.xlu0 %1558
        %v1561 = vadd.f32 %v1553, %v1559
        %v1562 = vstv %s1206
        %v1563 = vmul.f32 %v1562, %v1235
        %v1565 = vrot.slane %v1563, 2
        %1566 = vrot.lane.b32.xlu0 %v1565, 124
        %v1567 = vpop.permute.xlu0 %1566
        %v1569 = vadd.f32 %v1561, %v1567
        %v1570 = vstv %s1186
        %v1571 = vmul.f32 %v1570, %v1234
        %v1573 = vrot.slane %v1571, 3
        %1574 = vrot.lane.b32.xlu0 %v1573, 124
        %v1575 = vpop.permute.xlu0 %1574
        %v1577 = vadd.f32 %v1569, %v1575
        %v1578 = vstv %s1211
        %v1579 = vmul.f32 %v1578, %v1235
        %v1581 = vrot.slane %v1579, 3
        %1582 = vrot.lane.b32.xlu0 %v1581, 124
        %v1583 = vpop.permute.xlu0 %1582
        %v1585 = vadd.f32 %v1577, %v1583
        %v1586 = vstv %s1191
        %v1587 = vmul.f32 %v1586, %v1234
        %v1589 = vrot.slane %v1587, 4
        %1590 = vrot.lane.b32.xlu0 %v1589, 124
        %v1591 = vpop.permute.xlu0 %1590
        %v1593 = vadd.f32 %v1585, %v1591
        %v1594 = vstv %s1216
        %v1595 = vmul.f32 %v1594, %v1235
        %v1597 = vrot.slane %v1595, 4
        %1598 = vrot.lane.b32.xlu0 %v1597, 124
        %v1599 = vpop.permute.xlu0 %1598
        %v1601 = vadd.f32 %v1593, %v1599
        %v1602 = vmax.f32 %v1601, 0.0
        %v1603 = vsub.f32 0.0, %v1602
        %v1604 = vmul.f32 %v1603, 1.442695
        %v1605 = vpow.pop %v1604
        %v1606 = vadd.f32 %v1605, 1.0
        %v1607 = vrcp.pop %v1606
        %v1608 = vmul.f32 1.0, %v1607
        %v1609 = vmul.f32 %v1602, %v1608
        %s1610 = sld [smem:[#allocation6 + $0x100]]
        %s1611 = sld [smem:[#allocation6 + $0x101]]
        %s1612 = sld [smem:[#allocation6 + $0x102]]
        %s1613 = sld [smem:[#allocation6 + $0x103]]
        %s1614 = sld [smem:[#allocation6 + $0x104]]
        %s1615 = sld [smem:[#allocation6 + $0x105]]
        %s1616 = sld [smem:[#allocation6 + $0x106]]
        %s1617 = sld [smem:[#allocation6 + $0x107]]
        %s1618 = sld [smem:[#allocation6 + $0x108]]
        %s1619 = sld [smem:[#allocation6 + $0x109]]
        %s1620 = sld [smem:[#allocation6 + $0x10a]]
        %s1621 = sld [smem:[#allocation6 + $0x10b]]
        %s1622 = sld [smem:[#allocation6 + $0x10c]]
        %s1623 = sld [smem:[#allocation6 + $0x10d]]
        %s1624 = sld [smem:[#allocation6 + $0x10e]]
        %s1625 = sld [smem:[#allocation6 + $0x10f]]
        %s1626 = sld [smem:[#allocation6 + $0x110]]
        %s1627 = sld [smem:[#allocation6 + $0x111]]
        %s1628 = sld [smem:[#allocation6 + $0x112]]
        %s1629 = sld [smem:[#allocation6 + $0x113]]
        %s1630 = sld [smem:[#allocation6 + $0x114]]
        %s1631 = sld [smem:[#allocation6 + $0x115]]
        %s1632 = sld [smem:[#allocation6 + $0x116]]
        %s1633 = sld [smem:[#allocation6 + $0x117]]
        %s1634 = sld [smem:[#allocation6 + $0x118]]
        %s1635 = sld [smem:[#allocation6 + $0x119]]
        %s1636 = sld [smem:[#allocation6 + $0x11a]]
        %s1637 = sld [smem:[#allocation6 + $0x11b]]
        %s1638 = sld [smem:[#allocation6 + $0x11c]]
        %s1639 = sld [smem:[#allocation6 + $0x11d]]
        %s1640 = sld [smem:[#allocation6 + $0x11e]]
        %s1641 = sld [smem:[#allocation6 + $0x11f]]
        %s1642 = sld [smem:[#allocation6 + $0x120]]
        %s1643 = sld [smem:[#allocation6 + $0x121]]
        %s1644 = sld [smem:[#allocation6 + $0x122]]
        %s1645 = sld [smem:[#allocation6 + $0x123]]
        %s1646 = sld [smem:[#allocation6 + $0x124]]
        %s1647 = sld [smem:[#allocation6 + $0x125]]
        %s1648 = sld [smem:[#allocation6 + $0x126]]
        %s1649 = sld [smem:[#allocation6 + $0x127]]
        %s1650 = sld [smem:[#allocation6 + $0x128]]
        %s1651 = sld [smem:[#allocation6 + $0x129]]
        %s1652 = sld [smem:[#allocation6 + $0x12a]]
        %s1653 = sld [smem:[#allocation6 + $0x12b]]
        %s1654 = sld [smem:[#allocation6 + $0x12c]]
        %s1655 = sld [smem:[#allocation6 + $0x12d]]
        %s1656 = sld [smem:[#allocation6 + $0x12e]]
        %s1657 = sld [smem:[#allocation6 + $0x12f]]
        %s1658 = sld [smem:[#allocation6 + $0x130]]
        %s1659 = sld [smem:[#allocation6 + $0x131]]
        %1660 = vst.msk [vmem:[#allocation4] sm:$0x3] %vm770, 0.0
        %1661 = vst.msk [vmem:[#allocation4 + $0x12] sm:$0xf] %vm772, 0.0
        %1662 = vst.msk [vmem:[#allocation4 + $0x26] sm:$0x3] %vm770, 0.0
        %1663 = vst.msk [vmem:[#allocation4] sm:$0xff] %vm527, 0.0
        %1664 = vst.msk [vmem:[#allocation4 + $0x8] sm:$0xff] %vm527, 0.0
        %1665 = vst.msk [vmem:[#allocation4 + $0x10] sm:$0xff] %vm527, 0.0
        %1666 = vst.msk [vmem:[#allocation4 + $0x18] sm:$0xff] %vm527, 0.0
        %1667 = vst.msk [vmem:[#allocation4 + $0x20] sm:$0xff] %vm527, 0.0
        %1668 = vst.msk [vmem:[#allocation4] sm:$0xff] %vm777, 0.0
        %1669 = vst.msk [vmem:[#allocation4 + $0x8] sm:$0xff] %vm777, 0.0
        %1670 = vst.msk [vmem:[#allocation4 + $0x10] sm:$0xff] %vm777, 0.0
        %1671 = vst.msk [vmem:[#allocation4 + $0x18] sm:$0xff] %vm777, 0.0
        %1672 = vst.msk [vmem:[#allocation4 + $0x20] sm:$0xff] %vm777, 0.0
        %1675 = vrot.lane.b32.xlu0 %v640, 2
        %v1676 = vpop.permute.xlu0 %1675
        %1677 = vrot.lane.b32.xlu0 %v647, 2
        %v1678 = vpop.permute.xlu0 %1677
        %vm1681 = vcmask 146448
        %1682 = vst.msk [vmem:[#allocation4 + $0x2] sm:$0xff] %vm1681, %v1676
        %1683 = vst.msk [vmem:[#allocation4 + $0xa] sm:$0xff] %vm1681, %v1678
        %1686 = vrot.lane.b32.xlu0 %v718, 2
        %v1687 = vpop.permute.xlu0 %1686
        %1688 = vrot.lane.b32.xlu0 %v719, 2
        %v1689 = vpop.permute.xlu0 %1688
        %1692 = vst.msk [vmem:[#allocation4 + $0x16] sm:$0xff] %vm1681, %v1687
        %1693 = vst.msk [vmem:[#allocation4 + $0x1e] sm:$0xff] %vm1681, %v1689
        %v1694 = vld [vmem:[#allocation4] sm:$0xff]
        %v1695 = vld [vmem:[#allocation4 + $0x8] sm:$0xff]
        %v1696 = vld [vmem:[#allocation4 + $0x10] sm:$0xff]
        %v1697 = vld [vmem:[#allocation4 + $0x18] sm:$0xff]
        %v1698 = vld [vmem:[#allocation4 + $0x20] sm:$0xff]
        %v1699 = vstv %s1610
        %v1700 = vmul.f32 %v1699, %v1694
        %v1701 = vmul.f32 %v1699, %v1695
        %v1702 = vadd.f32 %v1700, 0.0
        %v1703 = vadd.f32 %v1701, 0.0
        %v1704 = vstv %s1635
        %v1705 = vmul.f32 %v1704, %v1696
        %v1706 = vmul.f32 %v1704, %v1697
        %v1707 = vmul.f32 %v1704, %v1698
        %v1711 = vrot.slane %v1705, 4
        %v1712 = vrot.slane %v1706, 4
        %v1713 = vsel %vm633, %v1711, %v1712
        %v1714 = vrot.slane %v1707, 4
        %v1715 = vsel %vm633, %v1712, %v1714
        %v1718 = vadd.f32 %v1702, %v1713
        %v1719 = vadd.f32 %v1703, %v1715
        %v1720 = vstv %s1615
        %v1721 = vmul.f32 %v1720, %v1694
        %v1722 = vmul.f32 %v1720, %v1695
        %v1723 = vmul.f32 %v1720, %v1696
        %v1727 = vrot.slane %v1721, 1
        %v1728 = vrot.slane %v1722, 1
        %v1729 = vsel %vm639, %v1727, %v1728
        %v1730 = vrot.slane %v1723, 1
        %v1731 = vsel %vm639, %v1728, %v1730
        %v1734 = vadd.f32 %v1718, %v1729
        %v1735 = vadd.f32 %v1719, %v1731
        %v1736 = vstv %s1640
        %v1737 = vmul.f32 %v1736, %v1696
        %v1738 = vmul.f32 %v1736, %v1697
        %v1739 = vmul.f32 %v1736, %v1698
        %v1743 = vrot.slane %v1737, 5
        %v1744 = vrot.slane %v1738, 5
        %v1745 = vsel %vm631, %v1743, %v1744
        %v1746 = vrot.slane %v1739, 5
        %v1747 = vsel %vm631, %v1744, %v1746
        %v1750 = vadd.f32 %v1734, %v1745
        %v1751 = vadd.f32 %v1735, %v1747
        %v1752 = vstv %s1620
        %v1753 = vmul.f32 %v1752, %v1694
        %v1754 = vmul.f32 %v1752, %v1695
        %v1755 = vmul.f32 %v1752, %v1696
        %v1759 = vrot.slane %v1753, 2
        %v1760 = vrot.slane %v1754, 2
        %v1761 = vsel %vm637, %v1759, %v1760
        %v1762 = vrot.slane %v1755, 2
        %v1763 = vsel %vm637, %v1760, %v1762
        %v1766 = vadd.f32 %v1750, %v1761
        %v1767 = vadd.f32 %v1751, %v1763
        %v1768 = vstv %s1645
        %v1769 = vmul.f32 %v1768, %v1696
        %v1770 = vmul.f32 %v1768, %v1697
        %v1771 = vmul.f32 %v1768, %v1698
        %v1775 = vrot.slane %v1769, 6
        %v1776 = vrot.slane %v1770, 6
        %v1777 = vsel %vm629, %v1775, %v1776
        %v1778 = vrot.slane %v1771, 6
        %v1779 = vsel %vm629, %v1776, %v1778
        %v1782 = vadd.f32 %v1766, %v1777
        %v1783 = vadd.f32 %v1767, %v1779
        %v1784 = vstv %s1625
        %v1785 = vmul.f32 %v1784, %v1694
        %v1786 = vmul.f32 %v1784, %v1695
        %v1787 = vmul.f32 %v1784, %v1696
        %v1791 = vrot.slane %v1785, 3
        %v1792 = vrot.slane %v1786, 3
        %v1793 = vsel %vm635, %v1791, %v1792
        %v1794 = vrot.slane %v1787, 3
        %v1795 = vsel %vm635, %v1792, %v1794
        %v1798 = vadd.f32 %v1782, %v1793
        %v1799 = vadd.f32 %v1783, %v1795
        %v1800 = vstv %s1650
        %v1801 = vmul.f32 %v1800, %v1696
        %v1802 = vmul.f32 %v1800, %v1697
        %v1803 = vmul.f32 %v1800, %v1698
        %v1807 = vrot.slane %v1801, 7
        %v1808 = vrot.slane %v1802, 7
        %v1809 = vsel %vm627, %v1807, %v1808
        %v1810 = vrot.slane %v1803, 7
        %v1811 = vsel %vm627, %v1808, %v1810
        %v1814 = vadd.f32 %v1798, %v1809
        %v1815 = vadd.f32 %v1799, %v1811
        %v1816 = vstv %s1630
        %v1817 = vmul.f32 %v1816, %v1694
        %v1818 = vmul.f32 %v1816, %v1695
        %v1819 = vmul.f32 %v1816, %v1696
        %v1823 = vrot.slane %v1817, 4
        %v1824 = vrot.slane %v1818, 4
        %v1825 = vsel %vm633, %v1823, %v1824
        %v1826 = vrot.slane %v1819, 4
        %v1827 = vsel %vm633, %v1824, %v1826
        %v1830 = vadd.f32 %v1814, %v1825
        %v1831 = vadd.f32 %v1815, %v1827
        %v1832 = vstv %s1655
        %v1833 = vmul.f32 %v1832, %v1697
        %v1834 = vmul.f32 %v1832, %v1698
        %v1835 = vadd.f32 %v1830, %v1833
        %v1836 = vadd.f32 %v1831, %v1834
        %v1837 = vstv %s1611
        %v1838 = vmul.f32 %v1837, %v1694
        %v1839 = vmul.f32 %v1837, %v1695
        %1842 = vrot.lane.b32.xlu0 %v1838, 127
        %v1843 = vpop.permute.xlu0 %1842
        %1844 = vrot.lane.b32.xlu0 %v1839, 127
        %v1845 = vpop.permute.xlu0 %1844
        %v1848 = vadd.f32 %v1835, %v1843
        %v1849 = vadd.f32 %v1836, %v1845
        %v1850 = vstv %s1636
        %v1851 = vmul.f32 %v1850, %v1696
        %v1852 = vmul.f32 %v1850, %v1697
        %v1853 = vmul.f32 %v1850, %v1698
        %v1857 = vrot.slane %v1851, 4
        %v1858 = vrot.slane %v1852, 4
        %v1859 = vsel %vm633, %v1857, %v1858
        %v1860 = vrot.slane %v1853, 4
        %v1861 = vsel %vm633, %v1858, %v1860
        %1862 = vrot.lane.b32.xlu0 %v1859, 127
        %v1863 = vpop.permute.xlu0 %1862
        %1864 = vrot.lane.b32.xlu0 %v1861, 127
        %v1865 = vpop.permute.xlu0 %1864
        %v1868 = vadd.f32 %v1848, %v1863
        %v1869 = vadd.f32 %v1849, %v1865
        %v1870 = vstv %s1616
        %v1871 = vmul.f32 %v1870, %v1694
        %v1872 = vmul.f32 %v1870, %v1695
        %v1873 = vmul.f32 %v1870, %v1696
        %v1877 = vrot.slane %v1871, 1
        %v1878 = vrot.slane %v1872, 1
        %v1879 = vsel %vm639, %v1877, %v1878
        %v1880 = vrot.slane %v1873, 1
        %v1881 = vsel %vm639, %v1878, %v1880
        %1882 = vrot.lane.b32.xlu0 %v1879, 127
        %v1883 = vpop.permute.xlu0 %1882
        %1884 = vrot.lane.b32.xlu0 %v1881, 127
        %v1885 = vpop.permute.xlu0 %1884
        %v1888 = vadd.f32 %v1868, %v1883
        %v1889 = vadd.f32 %v1869, %v1885
        %v1890 = vstv %s1641
        %v1891 = vmul.f32 %v1890, %v1696
        %v1892 = vmul.f32 %v1890, %v1697
        %v1893 = vmul.f32 %v1890, %v1698
        %v1897 = vrot.slane %v1891, 5
        %v1898 = vrot.slane %v1892, 5
        %v1899 = vsel %vm631, %v1897, %v1898
        %v1900 = vrot.slane %v1893, 5
        %v1901 = vsel %vm631, %v1898, %v1900
        %1902 = vrot.lane.b32.xlu0 %v1899, 127
        %v1903 = vpop.permute.xlu0 %1902
        %1904 = vrot.lane.b32.xlu0 %v1901, 127
        %v1905 = vpop.permute.xlu0 %1904
        %v1908 = vadd.f32 %v1888, %v1903
        %v1909 = vadd.f32 %v1889, %v1905
        %v1910 = vstv %s1621
        %v1911 = vmul.f32 %v1910, %v1694
        %v1912 = vmul.f32 %v1910, %v1695
        %v1913 = vmul.f32 %v1910, %v1696
        %v1917 = vrot.slane %v1911, 2
        %v1918 = vrot.slane %v1912, 2
        %v1919 = vsel %vm637, %v1917, %v1918
        %v1920 = vrot.slane %v1913, 2
        %v1921 = vsel %vm637, %v1918, %v1920
        %1922 = vrot.lane.b32.xlu0 %v1919, 127
        %v1923 = vpop.permute.xlu0 %1922
        %1924 = vrot.lane.b32.xlu0 %v1921, 127
        %v1925 = vpop.permute.xlu0 %1924
        %v1928 = vadd.f32 %v1908, %v1923
        %v1929 = vadd.f32 %v1909, %v1925
        %v1930 = vstv %s1646
        %v1931 = vmul.f32 %v1930, %v1696
        %v1932 = vmul.f32 %v1930, %v1697
        %v1933 = vmul.f32 %v1930, %v1698
        %v1937 = vrot.slane %v1931, 6
        %v1938 = vrot.slane %v1932, 6
        %v1939 = vsel %vm629, %v1937, %v1938
        %v1940 = vrot.slane %v1933, 6
        %v1941 = vsel %vm629, %v1938, %v1940
        %1942 = vrot.lane.b32.xlu0 %v1939, 127
        %v1943 = vpop.permute.xlu0 %1942
        %1944 = vrot.lane.b32.xlu0 %v1941, 127
        %v1945 = vpop.permute.xlu0 %1944
        %v1948 = vadd.f32 %v1928, %v1943
        %v1949 = vadd.f32 %v1929, %v1945
        %v1950 = vstv %s1626
        %v1951 = vmul.f32 %v1950, %v1694
        %v1952 = vmul.f32 %v1950, %v1695
        %v1953 = vmul.f32 %v1950, %v1696
        %v1957 = vrot.slane %v1951, 3
        %v1958 = vrot.slane %v1952, 3
        %v1959 = vsel %vm635, %v1957, %v1958
        %v1960 = vrot.slane %v1953, 3
        %v1961 = vsel %vm635, %v1958, %v1960
        %1962 = vrot.lane.b32.xlu0 %v1959, 127
        %v1963 = vpop.permute.xlu0 %1962
        %1964 = vrot.lane.b32.xlu0 %v1961, 127
        %v1965 = vpop.permute.xlu0 %1964
        %v1968 = vadd.f32 %v1948, %v1963
        %v1969 = vadd.f32 %v1949, %v1965
        %v1970 = vstv %s1651
        %v1971 = vmul.f32 %v1970, %v1696
        %v1972 = vmul.f32 %v1970, %v1697
        %v1973 = vmul.f32 %v1970, %v1698
        %v1977 = vrot.slane %v1971, 7
        %v1978 = vrot.slane %v1972, 7
        %v1979 = vsel %vm627, %v1977, %v1978
        %v1980 = vrot.slane %v1973, 7
        %v1981 = vsel %vm627, %v1978, %v1980
        %1982 = vrot.lane.b32.xlu0 %v1979, 127
        %v1983 = vpop.permute.xlu0 %1982
        %1984 = vrot.lane.b32.xlu0 %v1981, 127
        %v1985 = vpop.permute.xlu0 %1984
        %v1988 = vadd.f32 %v1968, %v1983
        %v1989 = vadd.f32 %v1969, %v1985
        %v1990 = vstv %s1631
        %v1991 = vmul.f32 %v1990, %v1694
        %v1992 = vmul.f32 %v1990, %v1695
        %v1993 = vmul.f32 %v1990, %v1696
        %v1997 = vrot.slane %v1991, 4
        %v1998 = vrot.slane %v1992, 4
        %v1999 = vsel %vm633, %v1997, %v1998
        %v2000 = vrot.slane %v1993, 4
        %v2001 = vsel %vm633, %v1998, %v2000
        %2002 = vrot.lane.b32.xlu0 %v1999, 127
        %v2003 = vpop.permute.xlu0 %2002
        %2004 = vrot.lane.b32.xlu0 %v2001, 127
        %v2005 = vpop.permute.xlu0 %2004
        %v2008 = vadd.f32 %v1988, %v2003
        %v2009 = vadd.f32 %v1989, %v2005
        %v2010 = vstv %s1656
        %v2011 = vmul.f32 %v2010, %v1697
        %v2012 = vmul.f32 %v2010, %v1698
        %2015 = vrot.lane.b32.xlu0 %v2011, 127
        %v2016 = vpop.permute.xlu0 %2015
        %2017 = vrot.lane.b32.xlu0 %v2012, 127
        %v2018 = vpop.permute.xlu0 %2017
        %v2021 = vadd.f32 %v2008, %v2016
        %v2022 = vadd.f32 %v2009, %v2018
        %v2023 = vstv %s1612
        %v2024 = vmul.f32 %v2023, %v1694
        %v2025 = vmul.f32 %v2023, %v1695
        %2028 = vrot.lane.b32.xlu0 %v2024, 126
        %v2029 = vpop.permute.xlu0 %2028
        %2030 = vrot.lane.b32.xlu0 %v2025, 126
        %v2031 = vpop.permute.xlu0 %2030
        %v2034 = vadd.f32 %v2021, %v2029
        %v2035 = vadd.f32 %v2022, %v2031
        %v2036 = vstv %s1637
        %v2037 = vmul.f32 %v2036, %v1696
        %v2038 = vmul.f32 %v2036, %v1697
        %v2039 = vmul.f32 %v2036, %v1698
        %v2043 = vrot.slane %v2037, 4
        %v2044 = vrot.slane %v2038, 4
        %v2045 = vsel %vm633, %v2043, %v2044
        %v2046 = vrot.slane %v2039, 4
        %v2047 = vsel %vm633, %v2044, %v2046
        %2048 = vrot.lane.b32.xlu0 %v2045, 126
        %v2049 = vpop.permute.xlu0 %2048
        %2050 = vrot.lane.b32.xlu0 %v2047, 126
        %v2051 = vpop.permute.xlu0 %2050
        %v2054 = vadd.f32 %v2034, %v2049
        %v2055 = vadd.f32 %v2035, %v2051
        %v2056 = vstv %s1617
        %v2057 = vmul.f32 %v2056, %v1694
        %v2058 = vmul.f32 %v2056, %v1695
        %v2059 = vmul.f32 %v2056, %v1696
        %v2063 = vrot.slane %v2057, 1
        %v2064 = vrot.slane %v2058, 1
        %v2065 = vsel %vm639, %v2063, %v2064
        %v2066 = vrot.slane %v2059, 1
        %v2067 = vsel %vm639, %v2064, %v2066
        %2068 = vrot.lane.b32.xlu0 %v2065, 126
        %v2069 = vpop.permute.xlu0 %2068
        %2070 = vrot.lane.b32.xlu0 %v2067, 126
        %v2071 = vpop.permute.xlu0 %2070
        %v2074 = vadd.f32 %v2054, %v2069
        %v2075 = vadd.f32 %v2055, %v2071
        %v2076 = vstv %s1642
        %v2077 = vmul.f32 %v2076, %v1696
        %v2078 = vmul.f32 %v2076, %v1697
        %v2079 = vmul.f32 %v2076, %v1698
        %v2083 = vrot.slane %v2077, 5
        %v2084 = vrot.slane %v2078, 5
        %v2085 = vsel %vm631, %v2083, %v2084
        %v2086 = vrot.slane %v2079, 5
        %v2087 = vsel %vm631, %v2084, %v2086
        %2088 = vrot.lane.b32.xlu0 %v2085, 126
        %v2089 = vpop.permute.xlu0 %2088
        %2090 = vrot.lane.b32.xlu0 %v2087, 126
        %v2091 = vpop.permute.xlu0 %2090
        %v2094 = vadd.f32 %v2074, %v2089
        %v2095 = vadd.f32 %v2075, %v2091
        %v2096 = vstv %s1622
        %v2097 = vmul.f32 %v2096, %v1694
        %v2098 = vmul.f32 %v2096, %v1695
        %v2099 = vmul.f32 %v2096, %v1696
        %v2103 = vrot.slane %v2097, 2
        %v2104 = vrot.slane %v2098, 2
        %v2105 = vsel %vm637, %v2103, %v2104
        %v2106 = vrot.slane %v2099, 2
        %v2107 = vsel %vm637, %v2104, %v2106
        %2108 = vrot.lane.b32.xlu0 %v2105, 126
        %v2109 = vpop.permute.xlu0 %2108
        %2110 = vrot.lane.b32.xlu0 %v2107, 126
        %v2111 = vpop.permute.xlu0 %2110
        %v2114 = vadd.f32 %v2094, %v2109
        %v2115 = vadd.f32 %v2095, %v2111
        %v2116 = vstv %s1647
        %v2117 = vmul.f32 %v2116, %v1696
        %v2118 = vmul.f32 %v2116, %v1697
        %v2119 = vmul.f32 %v2116, %v1698
        %v2123 = vrot.slane %v2117, 6
        %v2124 = vrot.slane %v2118, 6
        %v2125 = vsel %vm629, %v2123, %v2124
        %v2126 = vrot.slane %v2119, 6
        %v2127 = vsel %vm629, %v2124, %v2126
        %2128 = vrot.lane.b32.xlu0 %v2125, 126
        %v2129 = vpop.permute.xlu0 %2128
        %2130 = vrot.lane.b32.xlu0 %v2127, 126
        %v2131 = vpop.permute.xlu0 %2130
        %v2134 = vadd.f32 %v2114, %v2129
        %v2135 = vadd.f32 %v2115, %v2131
        %v2136 = vstv %s1627
        %v2137 = vmul.f32 %v2136, %v1694
        %v2138 = vmul.f32 %v2136, %v1695
        %v2139 = vmul.f32 %v2136, %v1696
        %v2143 = vrot.slane %v2137, 3
        %v2144 = vrot.slane %v2138, 3
        %v2145 = vsel %vm635, %v2143, %v2144
        %v2146 = vrot.slane %v2139, 3
        %v2147 = vsel %vm635, %v2144, %v2146
        %2148 = vrot.lane.b32.xlu0 %v2145, 126
        %v2149 = vpop.permute.xlu0 %2148
        %2150 = vrot.lane.b32.xlu0 %v2147, 126
        %v2151 = vpop.permute.xlu0 %2150
        %v2154 = vadd.f32 %v2134, %v2149
        %v2155 = vadd.f32 %v2135, %v2151
        %v2156 = vstv %s1652
        %v2157 = vmul.f32 %v2156, %v1696
        %v2158 = vmul.f32 %v2156, %v1697
        %v2159 = vmul.f32 %v2156, %v1698
        %v2163 = vrot.slane %v2157, 7
        %v2164 = vrot.slane %v2158, 7
        %v2165 = vsel %vm627, %v2163, %v2164
        %v2166 = vrot.slane %v2159, 7
        %v2167 = vsel %vm627, %v2164, %v2166
        %2168 = vrot.lane.b32.xlu0 %v2165, 126
        %v2169 = vpop.permute.xlu0 %2168
        %2170 = vrot.lane.b32.xlu0 %v2167, 126
        %v2171 = vpop.permute.xlu0 %2170
        %v2174 = vadd.f32 %v2154, %v2169
        %v2175 = vadd.f32 %v2155, %v2171
        %v2176 = vstv %s1632
        %v2177 = vmul.f32 %v2176, %v1694
        %v2178 = vmul.f32 %v2176, %v1695
        %v2179 = vmul.f32 %v2176, %v1696
        %v2183 = vrot.slane %v2177, 4
        %v2184 = vrot.slane %v2178, 4
        %v2185 = vsel %vm633, %v2183, %v2184
        %v2186 = vrot.slane %v2179, 4
        %v2187 = vsel %vm633, %v2184, %v2186
        %2188 = vrot.lane.b32.xlu0 %v2185, 126
        %v2189 = vpop.permute.xlu0 %2188
        %2190 = vrot.lane.b32.xlu0 %v2187, 126
        %v2191 = vpop.permute.xlu0 %2190
        %v2194 = vadd.f32 %v2174, %v2189
        %v2195 = vadd.f32 %v2175, %v2191
        %v2196 = vstv %s1657
        %v2197 = vmul.f32 %v2196, %v1697
        %v2198 = vmul.f32 %v2196, %v1698
        %2201 = vrot.lane.b32.xlu0 %v2197, 126
        %v2202 = vpop.permute.xlu0 %2201
        %2203 = vrot.lane.b32.xlu0 %v2198, 126
        %v2204 = vpop.permute.xlu0 %2203
        %v2207 = vadd.f32 %v2194, %v2202
        %v2208 = vadd.f32 %v2195, %v2204
        %v2209 = vstv %s1613
        %v2210 = vmul.f32 %v2209, %v1694
        %v2211 = vmul.f32 %v2209, %v1695
        %2214 = vrot.lane.b32.xlu0 %v2210, 125
        %v2215 = vpop.permute.xlu0 %2214
        %2216 = vrot.lane.b32.xlu0 %v2211, 125
        %v2217 = vpop.permute.xlu0 %2216
        %v2220 = vadd.f32 %v2207, %v2215
        %v2221 = vadd.f32 %v2208, %v2217
        %v2222 = vstv %s1638
        %v2223 = vmul.f32 %v2222, %v1696
        %v2224 = vmul.f32 %v2222, %v1697
        %v2225 = vmul.f32 %v2222, %v1698
        %v2229 = vrot.slane %v2223, 4
        %v2230 = vrot.slane %v2224, 4
        %v2231 = vsel %vm633, %v2229, %v2230
        %v2232 = vrot.slane %v2225, 4
        %v2233 = vsel %vm633, %v2230, %v2232
        %2234 = vrot.lane.b32.xlu0 %v2231, 125
        %v2235 = vpop.permute.xlu0 %2234
        %2236 = vrot.lane.b32.xlu0 %v2233, 125
        %v2237 = vpop.permute.xlu0 %2236
        %v2240 = vadd.f32 %v2220, %v2235
        %v2241 = vadd.f32 %v2221, %v2237
        %v2242 = vstv %s1618
        %v2243 = vmul.f32 %v2242, %v1694
        %v2244 = vmul.f32 %v2242, %v1695
        %v2245 = vmul.f32 %v2242, %v1696
        %v2249 = vrot.slane %v2243, 1
        %v2250 = vrot.slane %v2244, 1
        %v2251 = vsel %vm639, %v2249, %v2250
        %v2252 = vrot.slane %v2245, 1
        %v2253 = vsel %vm639, %v2250, %v2252
        %2254 = vrot.lane.b32.xlu0 %v2251, 125
        %v2255 = vpop.permute.xlu0 %2254
        %2256 = vrot.lane.b32.xlu0 %v2253, 125
        %v2257 = vpop.permute.xlu0 %2256
        %v2260 = vadd.f32 %v2240, %v2255
        %v2261 = vadd.f32 %v2241, %v2257
        %v2262 = vstv %s1643
        %v2263 = vmul.f32 %v2262, %v1696
        %v2264 = vmul.f32 %v2262, %v1697
        %v2265 = vmul.f32 %v2262, %v1698
        %v2269 = vrot.slane %v2263, 5
        %v2270 = vrot.slane %v2264, 5
        %v2271 = vsel %vm631, %v2269, %v2270
        %v2272 = vrot.slane %v2265, 5
        %v2273 = vsel %vm631, %v2270, %v2272
        %2274 = vrot.lane.b32.xlu0 %v2271, 125
        %v2275 = vpop.permute.xlu0 %2274
        %2276 = vrot.lane.b32.xlu0 %v2273, 125
        %v2277 = vpop.permute.xlu0 %2276
        %v2280 = vadd.f32 %v2260, %v2275
        %v2281 = vadd.f32 %v2261, %v2277
        %v2282 = vstv %s1623
        %v2283 = vmul.f32 %v2282, %v1694
        %v2284 = vmul.f32 %v2282, %v1695
        %v2285 = vmul.f32 %v2282, %v1696
        %v2289 = vrot.slane %v2283, 2
        %v2290 = vrot.slane %v2284, 2
        %v2291 = vsel %vm637, %v2289, %v2290
        %v2292 = vrot.slane %v2285, 2
        %v2293 = vsel %vm637, %v2290, %v2292
        %2294 = vrot.lane.b32.xlu0 %v2291, 125
        %v2295 = vpop.permute.xlu0 %2294
        %2296 = vrot.lane.b32.xlu0 %v2293, 125
        %v2297 = vpop.permute.xlu0 %2296
        %v2300 = vadd.f32 %v2280, %v2295
        %v2301 = vadd.f32 %v2281, %v2297
        %v2302 = vstv %s1648
        %v2303 = vmul.f32 %v2302, %v1696
        %v2304 = vmul.f32 %v2302, %v1697
        %v2305 = vmul.f32 %v2302, %v1698
        %v2309 = vrot.slane %v2303, 6
        %v2310 = vrot.slane %v2304, 6
        %v2311 = vsel %vm629, %v2309, %v2310
        %v2312 = vrot.slane %v2305, 6
        %v2313 = vsel %vm629, %v2310, %v2312
        %2314 = vrot.lane.b32.xlu0 %v2311, 125
        %v2315 = vpop.permute.xlu0 %2314
        %2316 = vrot.lane.b32.xlu0 %v2313, 125
        %v2317 = vpop.permute.xlu0 %2316
        %v2320 = vadd.f32 %v2300, %v2315
        %v2321 = vadd.f32 %v2301, %v2317
        %v2322 = vstv %s1628
        %v2323 = vmul.f32 %v2322, %v1694
        %v2324 = vmul.f32 %v2322, %v1695
        %v2325 = vmul.f32 %v2322, %v1696
        %v2329 = vrot.slane %v2323, 3
        %v2330 = vrot.slane %v2324, 3
        %v2331 = vsel %vm635, %v2329, %v2330
        %v2332 = vrot.slane %v2325, 3
        %v2333 = vsel %vm635, %v2330, %v2332
        %2334 = vrot.lane.b32.xlu0 %v2331, 125
        %v2335 = vpop.permute.xlu0 %2334
        %2336 = vrot.lane.b32.xlu0 %v2333, 125
        %v2337 = vpop.permute.xlu0 %2336
        %v2340 = vadd.f32 %v2320, %v2335
        %v2341 = vadd.f32 %v2321, %v2337
        %v2342 = vstv %s1653
        %v2343 = vmul.f32 %v2342, %v1696
        %v2344 = vmul.f32 %v2342, %v1697
        %v2345 = vmul.f32 %v2342, %v1698
        %v2349 = vrot.slane %v2343, 7
        %v2350 = vrot.slane %v2344, 7
        %v2351 = vsel %vm627, %v2349, %v2350
        %v2352 = vrot.slane %v2345, 7
        %v2353 = vsel %vm627, %v2350, %v2352
        %2354 = vrot.lane.b32.xlu0 %v2351, 125
        %v2355 = vpop.permute.xlu0 %2354
        %2356 = vrot.lane.b32.xlu0 %v2353, 125
        %v2357 = vpop.permute.xlu0 %2356
        %v2360 = vadd.f32 %v2340, %v2355
        %v2361 = vadd.f32 %v2341, %v2357
        %v2362 = vstv %s1633
        %v2363 = vmul.f32 %v2362, %v1694
        %v2364 = vmul.f32 %v2362, %v1695
        %v2365 = vmul.f32 %v2362, %v1696
        %v2369 = vrot.slane %v2363, 4
        %v2370 = vrot.slane %v2364, 4
        %v2371 = vsel %vm633, %v2369, %v2370
        %v2372 = vrot.slane %v2365, 4
        %v2373 = vsel %vm633, %v2370, %v2372
        %2374 = vrot.lane.b32.xlu0 %v2371, 125
        %v2375 = vpop.permute.xlu0 %2374
        %2376 = vrot.lane.b32.xlu0 %v2373, 125
        %v2377 = vpop.permute.xlu0 %2376
        %v2380 = vadd.f32 %v2360, %v2375
        %v2381 = vadd.f32 %v2361, %v2377
        %v2382 = vstv %s1658
        %v2383 = vmul.f32 %v2382, %v1697
        %v2384 = vmul.f32 %v2382, %v1698
        %2387 = vrot.lane.b32.xlu0 %v2383, 125
        %v2388 = vpop.permute.xlu0 %2387
        %2389 = vrot.lane.b32.xlu0 %v2384, 125
        %v2390 = vpop.permute.xlu0 %2389
        %v2393 = vadd.f32 %v2380, %v2388
        %v2394 = vadd.f32 %v2381, %v2390
        %v2395 = vstv %s1614
        %v2396 = vmul.f32 %v2395, %v1694
        %v2397 = vmul.f32 %v2395, %v1695
        %2400 = vrot.lane.b32.xlu0 %v2396, 124
        %v2401 = vpop.permute.xlu0 %2400
        %2402 = vrot.lane.b32.xlu0 %v2397, 124
        %v2403 = vpop.permute.xlu0 %2402
        %v2406 = vadd.f32 %v2393, %v2401
        %v2407 = vadd.f32 %v2394, %v2403
        %v2408 = vstv %s1639
        %v2409 = vmul.f32 %v2408, %v1696
        %v2410 = vmul.f32 %v2408, %v1697
        %v2411 = vmul.f32 %v2408, %v1698
        %v2415 = vrot.slane %v2409, 4
        %v2416 = vrot.slane %v2410, 4
        %v2417 = vsel %vm633, %v2415, %v2416
        %v2418 = vrot.slane %v2411, 4
        %v2419 = vsel %vm633, %v2416, %v2418
        %2420 = vrot.lane.b32.xlu0 %v2417, 124
        %v2421 = vpop.permute.xlu0 %2420
        %2422 = vrot.lane.b32.xlu0 %v2419, 124
        %v2423 = vpop.permute.xlu0 %2422
        %v2426 = vadd.f32 %v2406, %v2421
        %v2427 = vadd.f32 %v2407, %v2423
        %v2428 = vstv %s1619
        %v2429 = vmul.f32 %v2428, %v1694
        %v2430 = vmul.f32 %v2428, %v1695
        %v2431 = vmul.f32 %v2428, %v1696
        %v2435 = vrot.slane %v2429, 1
        %v2436 = vrot.slane %v2430, 1
        %v2437 = vsel %vm639, %v2435, %v2436
        %v2438 = vrot.slane %v2431, 1
        %v2439 = vsel %vm639, %v2436, %v2438
        %2440 = vrot.lane.b32.xlu0 %v2437, 124
        %v2441 = vpop.permute.xlu0 %2440
        %2442 = vrot.lane.b32.xlu0 %v2439, 124
        %v2443 = vpop.permute.xlu0 %2442
        %v2446 = vadd.f32 %v2426, %v2441
        %v2447 = vadd.f32 %v2427, %v2443
        %v2448 = vstv %s1644
        %v2449 = vmul.f32 %v2448, %v1696
        %v2450 = vmul.f32 %v2448, %v1697
        %v2451 = vmul.f32 %v2448, %v1698
        %v2455 = vrot.slane %v2449, 5
        %v2456 = vrot.slane %v2450, 5
        %v2457 = vsel %vm631, %v2455, %v2456
        %v2458 = vrot.slane %v2451, 5
        %v2459 = vsel %vm631, %v2456, %v2458
        %2460 = vrot.lane.b32.xlu0 %v2457, 124
        %v2461 = vpop.permute.xlu0 %2460
        %2462 = vrot.lane.b32.xlu0 %v2459, 124
        %v2463 = vpop.permute.xlu0 %2462
        %v2466 = vadd.f32 %v2446, %v2461
        %v2467 = vadd.f32 %v2447, %v2463
        %v2468 = vstv %s1624
        %v2469 = vmul.f32 %v2468, %v1694
        %v2470 = vmul.f32 %v2468, %v1695
        %v2471 = vmul.f32 %v2468, %v1696
        %v2475 = vrot.slane %v2469, 2
        %v2476 = vrot.slane %v2470, 2
        %v2477 = vsel %vm637, %v2475, %v2476
        %v2478 = vrot.slane %v2471, 2
        %v2479 = vsel %vm637, %v2476, %v2478
        %2480 = vrot.lane.b32.xlu0 %v2477, 124
        %v2481 = vpop.permute.xlu0 %2480
        %2482 = vrot.lane.b32.xlu0 %v2479, 124
        %v2483 = vpop.permute.xlu0 %2482
        %v2486 = vadd.f32 %v2466, %v2481
        %v2487 = vadd.f32 %v2467, %v2483
        %v2488 = vstv %s1649
        %v2489 = vmul.f32 %v2488, %v1696
        %v2490 = vmul.f32 %v2488, %v1697
        %v2491 = vmul.f32 %v2488, %v1698
        %v2495 = vrot.slane %v2489, 6
        %v2496 = vrot.slane %v2490, 6
        %v2497 = vsel %vm629, %v2495, %v2496
        %v2498 = vrot.slane %v2491, 6
        %v2499 = vsel %vm629, %v2496, %v2498
        %2500 = vrot.lane.b32.xlu0 %v2497, 124
        %v2501 = vpop.permute.xlu0 %2500
        %2502 = vrot.lane.b32.xlu0 %v2499, 124
        %v2503 = vpop.permute.xlu0 %2502
        %v2506 = vadd.f32 %v2486, %v2501
        %v2507 = vadd.f32 %v2487, %v2503
        %v2508 = vstv %s1629
        %v2509 = vmul.f32 %v2508, %v1694
        %v2510 = vmul.f32 %v2508, %v1695
        %v2511 = vmul.f32 %v2508, %v1696
        %v2515 = vrot.slane %v2509, 3
        %v2516 = vrot.slane %v2510, 3
        %v2517 = vsel %vm635, %v2515, %v2516
        %v2518 = vrot.slane %v2511, 3
        %v2519 = vsel %vm635, %v2516, %v2518
        %2520 = vrot.lane.b32.xlu0 %v2517, 124
        %v2521 = vpop.permute.xlu0 %2520
        %2522 = vrot.lane.b32.xlu0 %v2519, 124
        %v2523 = vpop.permute.xlu0 %2522
        %v2526 = vadd.f32 %v2506, %v2521
        %v2527 = vadd.f32 %v2507, %v2523
        %v2528 = vstv %s1654
        %v2529 = vmul.f32 %v2528, %v1696
        %v2530 = vmul.f32 %v2528, %v1697
        %v2531 = vmul.f32 %v2528, %v1698
        %v2535 = vrot.slane %v2529, 7
        %v2536 = vrot.slane %v2530, 7
        %v2537 = vsel %vm627, %v2535, %v2536
        %v2538 = vrot.slane %v2531, 7
        %v2539 = vsel %vm627, %v2536, %v2538
        %2540 = vrot.lane.b32.xlu0 %v2537, 124
        %v2541 = vpop.permute.xlu0 %2540
        %2542 = vrot.lane.b32.xlu0 %v2539, 124
        %v2543 = vpop.permute.xlu0 %2542
        %v2546 = vadd.f32 %v2526, %v2541
        %v2547 = vadd.f32 %v2527, %v2543
        %v2548 = vstv %s1634
        %v2549 = vmul.f32 %v2548, %v1694
        %v2550 = vmul.f32 %v2548, %v1695
        %v2551 = vmul.f32 %v2548, %v1696
        %v2555 = vrot.slane %v2549, 4
        %v2556 = vrot.slane %v2550, 4
        %v2557 = vsel %vm633, %v2555, %v2556
        %v2558 = vrot.slane %v2551, 4
        %v2559 = vsel %vm633, %v2556, %v2558
        %2560 = vrot.lane.b32.xlu0 %v2557, 124
        %v2561 = vpop.permute.xlu0 %2560
        %2562 = vrot.lane.b32.xlu0 %v2559, 124
        %v2563 = vpop.permute.xlu0 %2562
        %v2566 = vadd.f32 %v2546, %v2561
        %v2567 = vadd.f32 %v2547, %v2563
        %v2568 = vstv %s1659
        %v2569 = vmul.f32 %v2568, %v1697
        %v2570 = vmul.f32 %v2568, %v1698
        %2573 = vrot.lane.b32.xlu0 %v2569, 124
        %v2574 = vpop.permute.xlu0 %2573
        %2575 = vrot.lane.b32.xlu0 %v2570, 124
        %v2576 = vpop.permute.xlu0 %2575
        %v2579 = vadd.f32 %v2566, %v2574
        %v2580 = vadd.f32 %v2567, %v2576
        %v2581 = vmax.f32 %v2579, 0.0
        %v2582 = vmax.f32 %v2580, 0.0
        %v2583 = vsub.f32 0.0, %v2581
        %v2584 = vsub.f32 0.0, %v2582
        %v2585 = vmul.f32 %v2583, 1.442695
        %v2586 = vpow.pop %v2585
        %v2587 = vmul.f32 %v2584, 1.442695
        %v2588 = vpow.pop %v2587
        %v2589 = vadd.f32 %v2586, 1.0
        %v2590 = vadd.f32 %v2588, 1.0
        %v2591 = vrcp.pop %v2589
        %v2592 = vmul.f32 1.0, %v2591
        %v2593 = vrcp.pop %v2590
        %v2594 = vmul.f32 1.0, %v2593
        %v2595 = vmul.f32 %v2581, %v2592
        %v2596 = vmul.f32 %v2582, %v2594
        %2598 = vset.pattern.permute.xlu0 0
        %2599 = vperm.xlu0 %2598, %v1609
        %v2600 = vpop.permute.xlu0 %2599
        %v2602 = vadd.f32 %v1166, %v2600
        %v2603 = vlaneseq
        %v2604 = vshrl.u32 %v2603, 7
        %v2605 = vsub.s32 0, %v2604
        %v2606 = vrot.slane %v2595, %v2605
        %v2607 = vadd.f32 %v2602, %v2606
        %2608 = vset.pattern.permute.xlu0 1
        %2609 = vperm.xlu0 %2608, %v1609
        %v2610 = vpop.permute.xlu0 %2609
        %v2612 = vadd.f32 %v1166, %v2610
        %v2613 = vlaneseq
        %v2614 = vshrl.u32 %v2613, 7
        %v2615 = vsub.s32 1, %v2614
        %v2616 = vrot.slane %v2595, %v2615
        %v2617 = vadd.f32 %v2612, %v2616
        %2618 = vset.pattern.permute.xlu0 2
        %2619 = vperm.xlu0 %2618, %v1609
        %v2620 = vpop.permute.xlu0 %2619
        %v2622 = vadd.f32 %v1166, %v2620
        %v2623 = vlaneseq
        %v2624 = vshrl.u32 %v2623, 7
        %v2625 = vsub.s32 2, %v2624
        %v2626 = vrot.slane %v2595, %v2625
        %v2627 = vadd.f32 %v2622, %v2626
        %2628 = vset.pattern.permute.xlu0 3
        %2629 = vperm.xlu0 %2628, %v1609
        %v2630 = vpop.permute.xlu0 %2629
        %v2632 = vadd.f32 %v1166, %v2630
        %v2633 = vlaneseq
        %v2634 = vshrl.u32 %v2633, 7
        %v2635 = vsub.s32 3, %v2634
        %v2636 = vrot.slane %v2595, %v2635
        %v2637 = vadd.f32 %v2632, %v2636
        %2638 = vset.pattern.permute.xlu0 4
        %2639 = vperm.xlu0 %2638, %v1609
        %v2640 = vpop.permute.xlu0 %2639
        %v2642 = vadd.f32 %v1166, %v2640
        %v2643 = vlaneseq
        %v2644 = vshrl.u32 %v2643, 7
        %v2645 = vsub.s32 4, %v2644
        %v2646 = vrot.slane %v2595, %v2645
        %v2647 = vadd.f32 %v2642, %v2646
        %2648 = vset.pattern.permute.xlu0 5
        %2649 = vperm.xlu0 %2648, %v1609
        %v2650 = vpop.permute.xlu0 %2649
        %v2652 = vadd.f32 %v1166, %v2650
        %v2653 = vlaneseq
        %v2654 = vshrl.u32 %v2653, 7
        %v2655 = vsub.s32 5, %v2654
        %v2656 = vrot.slane %v2595, %v2655
        %v2657 = vadd.f32 %v2652, %v2656
        %2658 = vset.pattern.permute.xlu0 6
        %2659 = vperm.xlu0 %2658, %v1609
        %v2660 = vpop.permute.xlu0 %2659
        %v2662 = vadd.f32 %v1166, %v2660
        %v2663 = vlaneseq
        %v2664 = vshrl.u32 %v2663, 7
        %v2665 = vsub.s32 6, %v2664
        %v2666 = vrot.slane %v2595, %v2665
        %v2667 = vadd.f32 %v2662, %v2666
        %2668 = vset.pattern.permute.xlu0 7
        %2669 = vperm.xlu0 %2668, %v1609
        %v2670 = vpop.permute.xlu0 %2669
        %v2672 = vadd.f32 %v1166, %v2670
        %v2673 = vlaneseq
        %v2674 = vshrl.u32 %v2673, 7
        %v2675 = vsub.s32 7, %v2674
        %v2676 = vrot.slane %v2595, %v2675
        %v2677 = vadd.f32 %v2672, %v2676
        %2678 = vset.pattern.permute.xlu0 8
        %2679 = vperm.xlu0 %2678, %v1609
        %v2680 = vpop.permute.xlu0 %2679
        %v2682 = vadd.f32 %v1166, %v2680
        %v2683 = vlaneseq
        %v2684 = vshrl.u32 %v2683, 7
        %v2685 = vsub.s32 0, %v2684
        %v2686 = vrot.slane %v2596, %v2685
        %v2687 = vadd.f32 %v2682, %v2686
        %2688 = vset.pattern.permute.xlu0 9
        %2689 = vperm.xlu0 %2688, %v1609
        %v2690 = vpop.permute.xlu0 %2689
        %v2692 = vadd.f32 %v1166, %v2690
        %v2693 = vlaneseq
        %v2694 = vshrl.u32 %v2693, 7
        %v2695 = vsub.s32 1, %v2694
        %v2696 = vrot.slane %v2596, %v2695
        %v2697 = vadd.f32 %v2692, %v2696
        %2698 = vset.pattern.permute.xlu0 10
        %2699 = vperm.xlu0 %2698, %v1609
        %v2700 = vpop.permute.xlu0 %2699
        %v2702 = vadd.f32 %v1166, %v2700
        %v2703 = vlaneseq
        %v2704 = vshrl.u32 %v2703, 7
        %v2705 = vsub.s32 2, %v2704
        %v2706 = vrot.slane %v2596, %v2705
        %v2707 = vadd.f32 %v2702, %v2706
        %2708 = vset.pattern.permute.xlu0 11
        %2709 = vperm.xlu0 %2708, %v1609
        %v2710 = vpop.permute.xlu0 %2709
        %v2712 = vadd.f32 %v1166, %v2710
        %v2713 = vlaneseq
        %v2714 = vshrl.u32 %v2713, 7
        %v2715 = vsub.s32 3, %v2714
        %v2716 = vrot.slane %v2596, %v2715
        %v2717 = vadd.f32 %v2712, %v2716
        %2718 = vset.pattern.permute.xlu0 12
        %2719 = vperm.xlu0 %2718, %v1609
        %v2720 = vpop.permute.xlu0 %2719
        %v2722 = vadd.f32 %v1166, %v2720
        %v2723 = vlaneseq
        %v2724 = vshrl.u32 %v2723, 7
        %v2725 = vsub.s32 4, %v2724
        %v2726 = vrot.slane %v2596, %v2725
        %v2727 = vadd.f32 %v2722, %v2726
        %2728 = vset.pattern.permute.xlu0 13
        %2729 = vperm.xlu0 %2728, %v1609
        %v2730 = vpop.permute.xlu0 %2729
        %v2732 = vadd.f32 %v1166, %v2730
        %v2733 = vlaneseq
        %v2734 = vshrl.u32 %v2733, 7
        %v2735 = vsub.s32 5, %v2734
        %v2736 = vrot.slane %v2596, %v2735
        %v2737 = vadd.f32 %v2732, %v2736
        %2738 = vset.pattern.permute.xlu0 14
        %2739 = vperm.xlu0 %2738, %v1609
        %v2740 = vpop.permute.xlu0 %2739
        %v2742 = vadd.f32 %v1166, %v2740
        %v2743 = vlaneseq
        %v2744 = vshrl.u32 %v2743, 7
        %v2745 = vsub.s32 6, %v2744
        %v2746 = vrot.slane %v2596, %v2745
        %v2747 = vadd.f32 %v2742, %v2746
        %2748 = vset.pattern.permute.xlu0 15
        %2749 = vperm.xlu0 %2748, %v1609
        %v2750 = vpop.permute.xlu0 %2749
        %v2752 = vadd.f32 %v1166, %v2750
        %v2753 = vlaneseq
        %v2754 = vshrl.u32 %v2753, 7
        %v2755 = vsub.s32 7, %v2754
        %v2756 = vrot.slane %v2596, %v2755
        %v2757 = vadd.f32 %v2752, %v2756
        %2759 = vrot.lane.b32.xlu0 %v2617, 16
        %v2760 = vpop.permute.xlu0 %2759
        %2763 = vrot.lane.b32.xlu0 %v2627, 32
        %v2764 = vpop.permute.xlu0 %2763
        %2767 = vrot.lane.b32.xlu0 %v2637, 48
        %v2768 = vpop.permute.xlu0 %2767
        %2771 = vrot.lane.b32.xlu0 %v2647, 64
        %v2772 = vpop.permute.xlu0 %2771
        %2775 = vrot.lane.b32.xlu0 %v2657, 80
        %v2776 = vpop.permute.xlu0 %2775
        %2779 = vrot.lane.b32.xlu0 %v2667, 96
        %v2780 = vpop.permute.xlu0 %2779
        %2783 = vrot.lane.b32.xlu0 %v2677, 112
        %v2784 = vpop.permute.xlu0 %2783
        %2787 = vrot.lane.b32.xlu0 %v2697, 16
        %v2788 = vpop.permute.xlu0 %2787
        %2791 = vrot.lane.b32.xlu0 %v2707, 32
        %v2792 = vpop.permute.xlu0 %2791
        %2795 = vrot.lane.b32.xlu0 %v2717, 48
        %v2796 = vpop.permute.xlu0 %2795
        %2799 = vrot.lane.b32.xlu0 %v2727, 64
        %v2800 = vpop.permute.xlu0 %2799
        %2803 = vrot.lane.b32.xlu0 %v2737, 80
        %v2804 = vpop.permute.xlu0 %2803
        %2807 = vrot.lane.b32.xlu0 %v2747, 96
        %v2808 = vpop.permute.xlu0 %2807
        %2811 = vrot.lane.b32.xlu0 %v2757, 112
        %v2812 = vpop.permute.xlu0 %2811
        %vm2814 = vcmask 130048
        %v2815 = vsel %vm2814, %v2607, %v2760
        %vm2816 = vcmask 261120
        %v2817 = vsel %vm2816, %v2815, %v2764
        %vm2818 = vcmask 392192
        %v2819 = vsel %vm2818, %v2817, %v2768
        %vm2820 = vcmask 523264
        %v2821 = vsel %vm2820, %v2819, %v2772
        %vm2822 = vcmask 654336
        %v2823 = vsel %vm2822, %v2821, %v2776
        %vm2824 = vcmask 785408
        %v2825 = vsel %vm2824, %v2823, %v2780
        %vm2826 = vcmask 916480
        %v2827 = vsel %vm2826, %v2825, %v2784
        %v2828 = vsel %vm2814, %v2687, %v2788
        %v2829 = vsel %vm2816, %v2828, %v2792
        %v2830 = vsel %vm2818, %v2829, %v2796
        %v2831 = vsel %vm2820, %v2830, %v2800
        %v2832 = vsel %vm2822, %v2831, %v2804
        %v2833 = vsel %vm2824, %v2832, %v2808
        %v2834 = vsel %vm2826, %v2833, %v2812
        %v2835 = vmul.f32 %v2827, 0.33333334
        %v2836 = vmul.f32 %v2834, 0.33333334
        %v2839 = vcombine.low %v2835, %v2836
        %2841 = vst [vmem:[%s137] sm:$0xff] %v2839
        %s2842 = sand.u32 %s57, 1
        %s2843 = scalar_lea.sflag [#allocation9], %s2842
        %s2844 = sand.u32 %s57, 1
        %s2845 = smul.addr %s2844, 8
        %s2846 = scalar_lea.vmem [#allocation10], %s2845
        // Predicated region
        $region29: #{tpu_custom_call.1} parent=23 // pred_check
          %p2847 = pneg %p67
        $region30: #{tpu_custom_call.1} parent=23 // pred_check_branch
          %2849 = sbr.rel (%p2847) target = $region32
        $region31: #{tpu_custom_call.1} parent=23 // pred_region
          %s2851 = ssub.s32 128, 128
          %2852 = vsyncadd %s2843, %s2851
          %s2853 = smul.addr %s23, 2
          %s2854 = smul.addr %s2853, 64
          %s2855 = scalar_lea.hbm %s2, %s2854
          %s2857 = sshll.u32 %s2846, 4
          %s2858 = int_to_ptr.vmem [resolvable:$true] %s2857
          %2860 = dma.vmem_to_hbm [thread:$0]  %s2858, 128, %s2855, %s2843
        $region32: #{tpu_custom_call.1} parent=23 // pred_fallthru
          _
      $region24: #{tpu_custom_call.1} parent=5 // pred_fallthru
        _
      %p2861 = scmp.le.s32.totalorder 2, %s18
      // Predicated region
      $region33: #{tpu_custom_call.1} parent=5 // pred_check
        %p2862 = pneg %p2861
      $region34: #{tpu_custom_call.1} parent=5 // pred_check_branch
        %2864 = sbr.rel (%p2862) target = $region36
      $region35: #{tpu_custom_call.1} parent=5 // pred_region
        %s2865 = ssub.s32 %s18, 2
        // Predicated region
        $region37: #{tpu_custom_call.1} parent=35 // pred_check
          %p2866 = pneg %p73
        $region38: #{tpu_custom_call.1} parent=35 // pred_check_branch
          %2868 = sbr.rel (%p2866) target = $region40
        $region39: #{tpu_custom_call.1} parent=35 // pred_region
          %s2869 = sand.u32 %s58, 1
          %s2870 = scalar_lea.sflag [#allocation9], %s2869
          %s2871 = sand.u32 %s58, 1
          %s2872 = smul.addr %s2871, 8
          %s2873 = scalar_lea.vmem [#allocation10], %s2872
          %2874 = dma.done %s2870, 128
        $region40: #{tpu_custom_call.1} parent=35 // pred_fallthru
          _
      $region36: #{tpu_custom_call.1} parent=5 // pred_fallthru
        _
    $region6: #{tpu_custom_call.1} parent=1 // loop_footer
      %s22 = sadd.s32 1, %s18
    $region7: #{tpu_custom_call.1} parent=1 // loop_footer_branch
      %17 = sbr.rel target = $region3
    $region8: #{tpu_custom_call.1} parent=1 // loop_exit
      _
    %2875 = vsyncpa [#allocation8], 1
    %s2876 = scalar_lea.sflag [#allocation8], 1
    %2877 = vsyncpa %s2876, 1
    %2878 = vsyncpa [#allocation9], 1
    %s2879 = scalar_lea.sflag [#allocation9], 1
    %2880 = vsyncpa %s2879, 1

</llo_original>
